<compile_context>
chip_gen: v6e
topology: v6e:2x2x1
jax: 0.10.0
libtpu: 0.0.40
codegen_flags: <defaults>
</compile_context>

<pallas_src>
import numpy as np
import jax
import jax.numpy as jnp
from jax.experimental import pallas as pl
from jax.experimental.pallas import tpu as pltpu


# ---------------------------------------------------------------------------
# Pallas kernel: full forward pass for a block of Bt images
# ---------------------------------------------------------------------------
def model1_kernel(x_ref, w1_ref, b1_ref, w2_ref, b2_ref, wd_ref, bd_ref, o_ref):
    # x_ref:  (Bt, 12, 168) bf16   im2row'd input: lane = r*28 + w_in, row = pooled h
    # w1_ref: (168, 1024)   bf16   conv1 fused weights; col = hs*512+ws*256+wp*16+c
    # b1_ref: (1, 256)      f32    conv1 bias tiled over wp
    # w2_ref: (1280, 256)   bf16   conv2 fused weights; row = dy*256+wp*16+c1,
    #                              col = ws*128+wq*32+c2
    # b2_ref: (1, 128)      f32    conv2 bias tiled over wq
    # wd_ref: (512, 128)    bf16   dense weights, (h,w,c) row order, cols padded 10->128
    # bd_ref: (1, 128)      f32    dense bias padded 10->128
    # o_ref:  (Bt, 128)     f32    logits (cols 10..127 are zero)
    f32 = jnp.float32
    bf16 = jnp.bfloat16
    bt = x_ref.shape[0]

    # ---- conv1 + maxpool1: one MXU matmul, pools = aligned contiguous-half maxes
    lhs1 = x_ref[...].reshape(bt * 12, 168)                          # bf16
    acc1 = jnp.dot(lhs1, w1_ref[...], preferred_element_type=f32)    # (bt*12, 1024)
    h1 = jnp.maximum(acc1[:, :512], acc1[:, 512:])                   # pool over h pairs
    q1 = jnp.maximum(h1[:, :256], h1[:, 256:])                       # pool over w pairs
    p1 = jnp.maximum(q1 + b1_ref[...], 0.0)                          # bias+ReLU (exact post-pool)
    p1 = p1.astype(bf16).reshape(bt, 12, 256)                        # lanes: wp*16 + c

    # ---- conv2: lane im2row (five vreg-aligned 256-lane chunks) -> one matmul
    lhs2 = jnp.concatenate([p1[:, dy:dy + 8, :] for dy in range(5)], axis=-1)
    lhs2 = lhs2.reshape(bt * 8, 1280)                                # bf16
    acc2 = jnp.dot(lhs2, w2_ref[...], preferred_element_type=f32)    # (bt*8, 256)
    q2 = jnp.maximum(acc2[:, :128], acc2[:, 128:])                   # pool over w pairs
    h2 = jnp.max(q2.reshape(bt, 4, 2, 128), axis=2)                  # pool over h pairs
    p2 = jnp.maximum(h2 + b2_ref[...], 0.0)                          # (bt, 4, 128)

    # ---- fused dense layer, lane-dense (128-wide) output ----
    feats = p2.reshape(bt, 512).astype(bf16)                         # (h, w, c) flatten
    o_ref[...] = (jnp.dot(feats, wd_ref[...], preferred_element_type=f32)
                  + bd_ref[...])


# ---------------------------------------------------------------------------
# Wrapper + weight massaging
# ---------------------------------------------------------------------------
def _round_up(n, m):
    return ((n + m - 1) // m) * m


def _conv1_matrix(w1):
    """w1 (5,5,1,16) -> (168, 1024) matrix fusing conv1 with both 2x2-pool halvings.

    Row index    = r*28 + w_in                (r: image-row offset in the 6-row window)
    Column index = hs*512 + ws*256 + wp*16 + c (wp padded 12->16 for lane alignment)
    Entry = w1[dy, dx, 0, c] with dy = r - hs and dx = w_in - (2*wp + ws).
    """
    sel = np.zeros((5, 5, 6, 28, 2, 2, 16), np.float32)   # (dy, dx, r, w_in, hs, ws, wp)
    for dy in range(5):
        for dx in range(5):
            for hs in range(2):
                for ws in range(2):
                    for wp in range(12):
                        sel[dy, dx, hs + dy, 2 * wp + ws + dx, hs, ws, wp] = 1.0
    m = jnp.einsum("abrihsp,abc->rihspc", jnp.asarray(sel),
                   w1[:, :, 0, :].astype(jnp.float32))
    return m.reshape(6 * 28, 2 * 2 * 16 * 16).astype(jnp.bfloat16)


def _conv2_matrix(w2):
    """w2 (5,5,16,32) -> (1280, 256) matrix for the lane-concatenated conv2.

    Row index    = dy*256 + wp*16 + c1        (wp in [0,16); rows with wp>=12 are zero,
                                               killing the padded junk lanes of p1)
    Column index = ws*128 + wq*32 + c2        (w_out = 2*wq + ws)
    Entry = w2[dy, dx, c1, c2] with dx = wp - (2*wq + ws).
    """
    sel = np.zeros((5, 16, 2, 4), np.float32)              # (dx, wp, ws, wq)
    for dx in range(5):
        for ws in range(2):
            for wq in range(4):
                sel[dx, 2 * wq + ws + dx, ws, wq] = 1.0
    m = jnp.einsum("xpsq,yxcd->ypcsqd", jnp.asarray(sel), w2.astype(jnp.float32))
    return m.reshape(5 * 16 * 16, 2 * 4 * 32).astype(jnp.bfloat16)


@jax.jit
def model1_forward(x_nchw, params):
    """x_nchw: (B, 1, 28, 28) float32 -> logits (B, 10)."""
    w1, b1, w2, b2, wd, bd = params
    B = x_nchw.shape[0]

    # Batch tiling: Bt images per grid step.  For B > 16 choose >=2 grid steps
    # (feeds both v7x TensorCores); cap at 128 to stay far under VMEM limits.
    if B <= 16:
        Bt = _round_up(B, 8)
    else:
        Bt = min(128, _round_up((B + 1) // 2, 8))
    Bpad = _round_up(B, Bt)

    # NCHW (C=1) -> (B,28,28) is a pure reshape; pad batch; im2row over pooled rows:
    # x_rows[b, hp, r*28 + w] = x[b, 2*hp + r, w]   (r in [0,6), hp in [0,12)).
    x = x_nchw.reshape(B, 28, 28).astype(jnp.float32)
    if Bpad != B:
        x = jnp.pad(x, ((0, Bpad - B), (0, 0), (0, 0)))
    x_rows = jnp.concatenate([x[:, r:r + 23:2, :] for r in range(6)], axis=-1)
    x_rows = x_rows.astype(jnp.bfloat16)                              # (Bpad, 12, 168)

    # One-time weight massaging (tiny, runs as plain XLA).
    w1m = _conv1_matrix(w1)                                           # (168, 1024) bf16
    w2m = _conv2_matrix(w2)                                           # (1280, 256) bf16
    b1_row = jnp.tile(b1.astype(jnp.float32), (1, 16))                # (1, 256)
    b2_row = jnp.tile(b2.astype(jnp.float32), (1, 4))                 # (1, 128)
    # torch.flatten on NCHW is (c,h,w)-major; the kernel flattens (h,w,c).
    wd_hwc = jnp.transpose(wd.reshape(32, 4, 4, 10), (1, 2, 0, 3)).reshape(512, 10)
    wd_pad = jnp.pad(wd_hwc, ((0, 0), (0, 118))).astype(jnp.bfloat16) # (512, 128)
    bd_pad = jnp.pad(bd.astype(jnp.float32), ((0, 0), (0, 118)))      # (1, 128)

    out = pl.pallas_call(
        model1_kernel,
        out_shape=jax.ShapeDtypeStruct((Bpad, 128), jnp.float32),
        grid=(Bpad // Bt,),
        in_specs=[
            pl.BlockSpec((Bt, 12, 168), lambda i: (i, 0, 0)),
            pl.BlockSpec((168, 1024), lambda i: (0, 0)),
            pl.BlockSpec((1, 256), lambda i: (0, 0)),
            pl.BlockSpec((1280, 256), lambda i: (0, 0)),
            pl.BlockSpec((1, 128), lambda i: (0, 0)),
            pl.BlockSpec((512, 128), lambda i: (0, 0)),
            pl.BlockSpec((1, 128), lambda i: (0, 0)),
        ],
        out_specs=pl.BlockSpec((Bt, 128), lambda i: (i, 0)),
        compiler_params=pltpu.CompilerParams(
            dimension_semantics=("parallel",),
            vmem_limit_bytes=48 * 1024 * 1024,
        ),
    )(x_rows, w1m, b1_row, w2m, b2_row, wd_pad, bd_pad)
    return out[:B, :10]


# ---------------------------------------------------------------------------
# Pure-JAX reference (mirrors the PyTorch module) and params
# ---------------------------------------------------------------------------
def model1_reference(x_nchw, params):
    w1, b1, w2, b2, wd, bd = params
    hi = jax.lax.Precision.HIGHEST
    B = x_nchw.shape[0]
    x = x_nchw[:, 0, :, :]
    y1 = jnp.zeros((B, 24, 24, 16), jnp.float32)
    for dy in range(5):
        for dx in range(5):
            y1 = y1 + x[:, dy:dy + 24, dx:dx + 24, None] * w1[dy, dx, 0]
    y1 = jnp.maximum(y1 + b1.reshape(1, 1, 1, 16), 0.0)
    p1 = jnp.max(y1.reshape(B, 12, 2, 12, 2, 16), axis=(2, 4))
    y2 = jnp.zeros((B, 8, 8, 32), jnp.float32)
    for dy in range(5):
        for dx in range(5):
            y2 = y2 + jnp.einsum("bhwc,cd->bhwd",
                                 p1[:, dy:dy + 8, dx:dx + 8, :], w2[dy, dx],
                                 precision=hi)
    y2 = jnp.maximum(y2 + b2.reshape(1, 1, 1, 32), 0.0)
    p2 = jnp.max(y2.reshape(B, 4, 2, 4, 2, 32), axis=(2, 4))
    feats = jnp.transpose(p2, (0, 3, 1, 2)).reshape(B, 512)   # torch (c,h,w) flatten
    return jnp.dot(feats, wd, precision=hi) + bd


def init_params():
    """Deterministic synthetic parameters matching Model1's shapes."""
    key = jax.random.PRNGKey(0)
    k1, k2, k3, k4, k5, k6 = jax.random.split(key, 6)
    # Conv weights in (kh, kw, Cin, Cout); dense weight rows in torch's
    # channel-major (c, h, w) flatten order of the NCHW feature map.
    w1 = jax.random.normal(k1, (5, 5, 1, 16), jnp.float32) * 0.1
    b1 = jax.random.normal(k2, (1, 16), jnp.float32) * 0.1
    w2 = jax.random.normal(k3, (5, 5, 16, 32), jnp.float32) * 0.05
    b2 = jax.random.normal(k4, (1, 32), jnp.float32) * 0.05
    wd = jax.random.normal(k5, (32 * 4 * 4, 10), jnp.float32) * 0.05
    bd = jax.random.normal(k6, (1, 10), jnp.float32) * 0.05
    return (w1, b1, w2, b2, wd, bd)


if __name__ == "__main__":
    params = init_params()
    # Spatial size must be 28x28 so the flattened feature dim is 32*4*4 = 512.
    x = jax.random.normal(jax.random.PRNGKey(0), (2, 1, 28, 28), jnp.float32)

    logits = model1_forward(x, params)
    logits = jax.block_until_ready(logits)

    assert logits.shape == (2, 10), logits.shape
    assert logits.dtype == jnp.float32

    ref = model1_reference(x, params)
    err = float(jnp.max(jnp.abs(logits - ref)))
    # bf16 MXU operands with f32 accumulation; logits are O(1).
    assert err < 3e-2, f"max abs diff vs reference too large: {err}"
    print("KERNEL_OK")
</pallas_src>

<mosaic_0001>
module attributes {stable_mosaic.version = 11 : i64} {
  func.func @model1_kernel(%arg0: i32, %arg1: memref<8x12x168xbf16, #tpu.memory_space<vmem>>, %arg2: memref<168x1024xbf16, #tpu.memory_space<vmem>>, %arg3: memref<1x256xf32, #tpu.memory_space<vmem>>, %arg4: memref<1280x256xbf16, #tpu.memory_space<vmem>>, %arg5: memref<1x128xf32, #tpu.memory_space<vmem>>, %arg6: memref<512x128xbf16, #tpu.memory_space<vmem>>, %arg7: memref<1x128xf32, #tpu.memory_space<vmem>>, %arg8: memref<8x128xf32, #tpu.memory_space<vmem>>) attributes {dimension_semantics = [#tpu.dimension_semantics<parallel>], iteration_bounds = array<i64: 1>, scalar_prefetch = 0 : i64, scratch_operands = 0 : i64, tpu.core_type = #tpu.core_type<tc>, window_params = [{transform_indices = @transform_0, window_bounds = array<i64: 8, 12, 168>}, {pipeline_mode = #tpu.pipeline_mode<synchronous>, transform_indices = @transform_1, window_bounds = array<i64: 168, 1024>}, {pipeline_mode = #tpu.pipeline_mode<synchronous>, transform_indices = @transform_2, window_bounds = array<i64: 1, 256>}, {pipeline_mode = #tpu.pipeline_mode<synchronous>, transform_indices = @transform_3, window_bounds = array<i64: 1280, 256>}, {pipeline_mode = #tpu.pipeline_mode<synchronous>, transform_indices = @transform_4, window_bounds = array<i64: 1, 128>}, {pipeline_mode = #tpu.pipeline_mode<synchronous>, transform_indices = @transform_5, window_bounds = array<i64: 512, 128>}, {pipeline_mode = #tpu.pipeline_mode<synchronous>, transform_indices = @transform_6, window_bounds = array<i64: 1, 128>}, {transform_indices = @transform_7, window_bounds = array<i64: 8, 128>}]} {
    %c0 = arith.constant 0 : index
    %c0_0 = arith.constant 0 : index
    %c0_1 = arith.constant 0 : index
    %0 = vector.load %arg1[%c0, %c0_0, %c0_1] : memref<8x12x168xbf16, #tpu.memory_space<vmem>>, vector<8x12x168xbf16>
    %1 = vector.shape_cast %0 : vector<8x12x168xbf16> to vector<96x168xbf16>
    %c0_2 = arith.constant 0 : index
    %c0_3 = arith.constant 0 : index
    %2 = vector.load %arg2[%c0_2, %c0_3] : memref<168x1024xbf16, #tpu.memory_space<vmem>>, vector<168x1024xbf16>
    %cst = arith.constant dense<0.000000e+00> : vector<96x1024xf32>
    %3 = tpu.matmul %1, %2, %cst {dimension_numbers = #tpu.dot_dimension_numbers<[1], [0], [0], [1], [0, 0, 1, 1], [], []>} : vector<96x168xbf16>, vector<168x1024xbf16>, vector<96x1024xf32> -> vector<96x1024xf32>
    %4 = vector.extract_strided_slice %3 {offsets = [0, 0], sizes = [96, 512], strides = [1, 1]} : vector<96x1024xf32> to vector<96x512xf32>
    %5 = vector.extract_strided_slice %3 {offsets = [0, 512], sizes = [96, 512], strides = [1, 1]} : vector<96x1024xf32> to vector<96x512xf32>
    %6 = arith.maximumf %4, %5 : vector<96x512xf32>
    %7 = vector.extract_strided_slice %6 {offsets = [0, 0], sizes = [96, 256], strides = [1, 1]} : vector<96x512xf32> to vector<96x256xf32>
    %8 = vector.extract_strided_slice %6 {offsets = [0, 256], sizes = [96, 256], strides = [1, 1]} : vector<96x512xf32> to vector<96x256xf32>
    %9 = arith.maximumf %7, %8 : vector<96x256xf32>
    %c0_4 = arith.constant 0 : index
    %c0_5 = arith.constant 0 : index
    %10 = vector.load %arg3[%c0_4, %c0_5] : memref<1x256xf32, #tpu.memory_space<vmem>>, vector<1x256xf32>
    %11 = vector.broadcast %10 : vector<1x256xf32> to vector<96x256xf32>
    %12 = arith.addf %9, %11 : vector<96x256xf32>
    %cst_6 = arith.constant 0.000000e+00 : f32
    %13 = vector.broadcast %cst_6 : f32 to vector<96x256xf32>
    %14 = arith.maximumf %12, %13 : vector<96x256xf32>
    %15 = arith.truncf %14 : vector<96x256xf32> to vector<96x256xbf16>
    %16 = vector.shape_cast %15 : vector<96x256xbf16> to vector<8x12x256xbf16>
    %17 = vector.extract_strided_slice %16 {offsets = [0, 0, 0], sizes = [8, 8, 256], strides = [1, 1, 1]} : vector<8x12x256xbf16> to vector<8x8x256xbf16>
    %18 = vector.extract_strided_slice %16 {offsets = [0, 1, 0], sizes = [8, 8, 256], strides = [1, 1, 1]} : vector<8x12x256xbf16> to vector<8x8x256xbf16>
    %19 = vector.extract_strided_slice %16 {offsets = [0, 2, 0], sizes = [8, 8, 256], strides = [1, 1, 1]} : vector<8x12x256xbf16> to vector<8x8x256xbf16>
    %20 = vector.extract_strided_slice %16 {offsets = [0, 3, 0], sizes = [8, 8, 256], strides = [1, 1, 1]} : vector<8x12x256xbf16> to vector<8x8x256xbf16>
    %21 = vector.extract_strided_slice %16 {offsets = [0, 4, 0], sizes = [8, 8, 256], strides = [1, 1, 1]} : vector<8x12x256xbf16> to vector<8x8x256xbf16>
    %22 = tpu.concatenate %17, %18, %19, %20, %21 in 2 : vector<8x8x256xbf16>, vector<8x8x256xbf16>, vector<8x8x256xbf16>, vector<8x8x256xbf16>, vector<8x8x256xbf16> -> vector<8x8x1280xbf16>
    %23 = vector.shape_cast %22 : vector<8x8x1280xbf16> to vector<64x1280xbf16>
    %c0_7 = arith.constant 0 : index
    %c0_8 = arith.constant 0 : index
    %24 = vector.load %arg4[%c0_7, %c0_8] : memref<1280x256xbf16, #tpu.memory_space<vmem>>, vector<1280x256xbf16>
    %cst_9 = arith.constant dense<0.000000e+00> : vector<64x256xf32>
    %25 = tpu.matmul %23, %24, %cst_9 {dimension_numbers = #tpu.dot_dimension_numbers<[1], [0], [0], [1], [0, 0, 1, 1], [], []>} : vector<64x1280xbf16>, vector<1280x256xbf16>, vector<64x256xf32> -> vector<64x256xf32>
    %26 = vector.extract_strided_slice %25 {offsets = [0, 0], sizes = [64, 128], strides = [1, 1]} : vector<64x256xf32> to vector<64x128xf32>
    %27 = vector.extract_strided_slice %25 {offsets = [0, 128], sizes = [64, 128], strides = [1, 1]} : vector<64x256xf32> to vector<64x128xf32>
    %28 = arith.maximumf %26, %27 : vector<64x128xf32>
    %29 = vector.shape_cast %28 : vector<64x128xf32> to vector<8x4x2x128xf32>
    %cst_10 = arith.constant dense<0xFF800000> : vector<8x4x128xf32>
    %30 = vector.multi_reduction <maximumf>, %29, %cst_10 [2] : vector<8x4x2x128xf32> to vector<8x4x128xf32>
    %c0_11 = arith.constant 0 : index
    %c0_12 = arith.constant 0 : index
    %31 = vector.load %arg5[%c0_11, %c0_12] : memref<1x128xf32, #tpu.memory_space<vmem>>, vector<1x128xf32>
    %32 = vector.shape_cast %31 : vector<1x128xf32> to vector<1x1x128xf32>
    %33 = vector.broadcast %32 : vector<1x1x128xf32> to vector<8x4x128xf32>
    %34 = arith.addf %30, %33 : vector<8x4x128xf32>
    %cst_13 = arith.constant 0.000000e+00 : f32
    %35 = vector.broadcast %cst_13 : f32 to vector<8x4x128xf32>
    %36 = arith.maximumf %34, %35 : vector<8x4x128xf32>
    %37 = vector.shape_cast %36 : vector<8x4x128xf32> to vector<8x512xf32>
    %38 = arith.truncf %37 : vector<8x512xf32> to vector<8x512xbf16>
    %c0_14 = arith.constant 0 : index
    %c0_15 = arith.constant 0 : index
    %39 = vector.load %arg6[%c0_14, %c0_15] : memref<512x128xbf16, #tpu.memory_space<vmem>>, vector<512x128xbf16>
    %cst_16 = arith.constant dense<0.000000e+00> : vector<8x128xf32>
    %40 = tpu.matmul %38, %39, %cst_16 {dimension_numbers = #tpu.dot_dimension_numbers<[1], [0], [0], [1], [0, 0, 1, 1], [], []>} : vector<8x512xbf16>, vector<512x128xbf16>, vector<8x128xf32> -> vector<8x128xf32>
    %c0_17 = arith.constant 0 : index
    %c0_18 = arith.constant 0 : index
    %41 = vector.load %arg7[%c0_17, %c0_18] : memref<1x128xf32, #tpu.memory_space<vmem>>, vector<1x128xf32>
    %42 = vector.broadcast %41 : vector<1x128xf32> to vector<8x128xf32>
    %43 = arith.addf %40, %42 : vector<8x128xf32>
    %c0_19 = arith.constant 0 : index
    %c0_20 = arith.constant 0 : index
    %44 = vector.load %arg8[%c0_19, %c0_20] : memref<8x128xf32, #tpu.memory_space<vmem>>, vector<8x128xf32>
    tpu.vector_store %arg8[%c0_19, %c0_20], %43 {strides = array<i32>} : memref<8x128xf32, #tpu.memory_space<vmem>>, vector<8x128xf32>,
    return
  }
  func.func @transform_0(%arg0: i32) -> (i32, i32, i32) {
    %c0_i32 = arith.constant 0 : i32
    %c0_i32_0 = arith.constant 0 : i32
    %c0_i32_1 = arith.constant 0 : i32
    return %arg0, %c0_i32, %c0_i32_0 : i32, i32, i32
  }
  func.func @transform_1(%arg0: i32) -> (i32, i32) {
    %c0_i32 = arith.constant 0 : i32
    %c0_i32_0 = arith.constant 0 : i32
    %c0_i32_1 = arith.constant 0 : i32
    return %c0_i32, %c0_i32_0 : i32, i32
  }
  func.func @transform_2(%arg0: i32) -> (i32, i32) {
    %c0_i32 = arith.constant 0 : i32
    %c0_i32_0 = arith.constant 0 : i32
    %c0_i32_1 = arith.constant 0 : i32
    return %c0_i32, %c0_i32_0 : i32, i32
  }
  func.func @transform_3(%arg0: i32) -> (i32, i32) {
    %c0_i32 = arith.constant 0 : i32
    %c0_i32_0 = arith.constant 0 : i32
    %c0_i32_1 = arith.constant 0 : i32
    return %c0_i32, %c0_i32_0 : i32, i32
  }
  func.func @transform_4(%arg0: i32) -> (i32, i32) {
    %c0_i32 = arith.constant 0 : i32
    %c0_i32_0 = arith.constant 0 : i32
    %c0_i32_1 = arith.constant 0 : i32
    return %c0_i32, %c0_i32_0 : i32, i32
  }
  func.func @transform_5(%arg0: i32) -> (i32, i32) {
    %c0_i32 = arith.constant 0 : i32
    %c0_i32_0 = arith.constant 0 : i32
    %c0_i32_1 = arith.constant 0 : i32
    return %c0_i32, %c0_i32_0 : i32, i32
  }
  func.func @transform_6(%arg0: i32) -> (i32, i32) {
    %c0_i32 = arith.constant 0 : i32
    %c0_i32_0 = arith.constant 0 : i32
    %c0_i32_1 = arith.constant 0 : i32
    return %c0_i32, %c0_i32_0 : i32, i32
  }
  func.func @transform_7(%arg0: i32) -> (i32, i32) {
    %c0_i32 = arith.constant 0 : i32
    %c0_i32_0 = arith.constant 0 : i32
    return %arg0, %c0_i32 : i32, i32
  }
}

</mosaic_0001>

<llo_original>
// kernel: model1_forward.1
$region0: #{model1_forward.1}
  #allocation0 [shape = 'u32[]', space=smem, size = 0x4, offset = 0x4, fixed_abs, tag = 'smem constant byte address 0x4 - core index']
  #allocation1 [shape = 'u32[144,128]{1,0:T(1,128)}', space=vmem, size = 0x12000, scoped, tag = 'internal scratch']
  %s0 = inlined_call_operand.vmem [shape: bf16[8,12,168], index: 0, kind: input, shape index: {}]
  %s1 = inlined_call_operand.vmem [shape: bf16[168,1024], index: 1, kind: input, shape index: {}]
  %s2 = inlined_call_operand.vmem [shape: f32[1,256], index: 2, kind: input, shape index: {}]
  %s3 = inlined_call_operand.vmem [shape: bf16[1280,256], index: 3, kind: input, shape index: {}]
  %s4 = inlined_call_operand.vmem [shape: f32[1,128], index: 4, kind: input, shape index: {}]
  %s5 = inlined_call_operand.vmem [shape: bf16[512,128], index: 5, kind: input, shape index: {}]
  %s6 = inlined_call_operand.vmem [shape: f32[1,128], index: 6, kind: input, shape index: {}]
  %s7 = inlined_call_operand.vmem [shape: f32[8,128], index: 7, kind: output, shape index: {}]
  %s8 = sld [smem:[#allocation0]]
  $region38: #{model1_forward.1} parent=0
    _
  %s10 = ssub.s32 1, %s8
  %s11 = scalar_select 0, %s10, %s8
  // Predicated region
  $region2: #{model1_forward.1} parent=0 // pred_check
    _
  $region3: #{model1_forward.1} parent=0 // pred_check_branch
    %13 = sbr.rel (0) target = $region5
  $region4: #{model1_forward.1} parent=0 // pred_region
    _
  $region5: #{model1_forward.1} parent=0 // pred_fallthru
    _
  // Predicated region
  $region6: #{model1_forward.1} parent=0 // pred_check
    _
  $region7: #{model1_forward.1} parent=0 // pred_check_branch
    %15 = sbr.rel (0) target = $region9
  $region8: #{model1_forward.1} parent=0 // pred_region
    _
  $region9: #{model1_forward.1} parent=0 // pred_fallthru
    _
  // Predicated region
  $region10: #{model1_forward.1} parent=0 // pred_check
    _
  $region11: #{model1_forward.1} parent=0 // pred_check_branch
    %17 = sbr.rel (0) target = $region13
  $region12: #{model1_forward.1} parent=0 // pred_region
    _
  $region13: #{model1_forward.1} parent=0 // pred_fallthru
    _
  // Predicated region
  $region14: #{model1_forward.1} parent=0 // pred_check
    _
  $region15: #{model1_forward.1} parent=0 // pred_check_branch
    %19 = sbr.rel (0) target = $region17
  $region16: #{model1_forward.1} parent=0 // pred_region
    _
  $region17: #{model1_forward.1} parent=0 // pred_fallthru
    _
  // Predicated region
  $region18: #{model1_forward.1} parent=0 // pred_check
    _
  $region19: #{model1_forward.1} parent=0 // pred_check_branch
    %21 = sbr.rel (0) target = $region21
  $region20: #{model1_forward.1} parent=0 // pred_region
    _
  $region21: #{model1_forward.1} parent=0 // pred_fallthru
    _
  // Predicated region
  $region22: #{model1_forward.1} parent=0 // pred_check
    _
  $region23: #{model1_forward.1} parent=0 // pred_check_branch
    %23 = sbr.rel (0) target = $region25
  $region24: #{model1_forward.1} parent=0 // pred_region
    _
  $region25: #{model1_forward.1} parent=0 // pred_fallthru
    _
  // Predicated region
  $region26: #{model1_forward.1} parent=0 // pred_check
    _
  $region27: #{model1_forward.1} parent=0 // pred_check_branch
    %25 = sbr.rel (0) target = $region29
  $region28: #{model1_forward.1} parent=0 // pred_region
    _
  $region29: #{model1_forward.1} parent=0 // pred_fallthru
    _
  %v27 = vld [vmem:[%s0] sm:$0xff]
  %v28 = vld [vmem:[%s0 + $0x8] sm:$0x33]
  %v29 = vld [vmem:[%s0 + $0x10] sm:$0xff]
  %v30 = vld [vmem:[%s0 + $0x18] sm:$0x33]
  %v31 = vld [vmem:[%s0 + $0x20] sm:$0xff]
  %v32 = vld [vmem:[%s0 + $0x28] sm:$0x33]
  %v33 = vld [vmem:[%s0 + $0x30] sm:$0xff]
  %v34 = vld [vmem:[%s0 + $0x38] sm:$0x33]
  %v35 = vld [vmem:[%s0 + $0x40] sm:$0xff]
  %v36 = vld [vmem:[%s0 + $0x48] sm:$0x33]
  %v37 = vld [vmem:[%s0 + $0x50] sm:$0xff]
  %v38 = vld [vmem:[%s0 + $0x58] sm:$0x33]
  %v39 = vld [vmem:[%s0 + $0x60] sm:$0xff]
  %v40 = vld [vmem:[%s0 + $0x68] sm:$0x33]
  %v41 = vld [vmem:[%s0 + $0x70] sm:$0xff]
  %v42 = vld [vmem:[%s0 + $0x78] sm:$0x33]
  %v60 = vunpack.c.l.s4 1983009808
  %v61 = vunpack.c.0.s8 %v60
  %v62 = vlaneseq
  %v63 = vshrl.u32 %v62, 7
  %v64 = vsub.s32 %v61, %v63
  %v65 = vrot.slane %v27, %v64
  %v66 = vcombine.high %v65, %v65
  %v68 = vunpack.c.l.s4 1983009808
  %v69 = vunpack.c.0.s8 %v68
  %v70 = vlaneseq
  %v71 = vshrl.u32 %v70, 7
  %v72 = vsub.s32 %v69, %v71
  %v73 = vrot.slane %v28, %v72
  %v75 = vunpack.c.l.s4 1983009808
  %v76 = vunpack.c.0.s8 %v75
  %v77 = vlaneseq
  %v78 = vshrl.u32 %v77, 7
  %v79 = vsub.s32 %v76, %v78
  %v80 = vrot.slane %v29, %v79
  %v81 = vcombine.high %v80, %v80
  %v83 = vunpack.c.l.s4 1983009808
  %v84 = vunpack.c.0.s8 %v83
  %v85 = vlaneseq
  %v86 = vshrl.u32 %v85, 7
  %v87 = vsub.s32 %v84, %v86
  %v88 = vrot.slane %v30, %v87
  %v90 = vunpack.c.l.s4 1983009808
  %v91 = vunpack.c.0.s8 %v90
  %v92 = vlaneseq
  %v93 = vshrl.u32 %v92, 7
  %v94 = vsub.s32 %v91, %v93
  %v95 = vrot.slane %v31, %v94
  %v96 = vcombine.high %v95, %v95
  %v98 = vunpack.c.l.s4 1983009808
  %v99 = vunpack.c.0.s8 %v98
  %v100 = vlaneseq
  %v101 = vshrl.u32 %v100, 7
  %v102 = vsub.s32 %v99, %v101
  %v103 = vrot.slane %v32, %v102
  %v105 = vunpack.c.l.s4 1983009808
  %v106 = vunpack.c.0.s8 %v105
  %v107 = vlaneseq
  %v108 = vshrl.u32 %v107, 7
  %v109 = vsub.s32 %v106, %v108
  %v110 = vrot.slane %v33, %v109
  %v111 = vcombine.high %v110, %v110
  %v113 = vunpack.c.l.s4 1983009808
  %v114 = vunpack.c.0.s8 %v113
  %v115 = vlaneseq
  %v116 = vshrl.u32 %v115, 7
  %v117 = vsub.s32 %v114, %v116
  %v118 = vrot.slane %v34, %v117
  %v120 = vunpack.c.l.s4 1983009808
  %v121 = vunpack.c.0.s8 %v120
  %v122 = vlaneseq
  %v123 = vshrl.u32 %v122, 7
  %v124 = vsub.s32 %v121, %v123
  %v125 = vrot.slane %v35, %v124
  %v126 = vcombine.high %v125, %v125
  %v128 = vunpack.c.l.s4 1983009808
  %v129 = vunpack.c.0.s8 %v128
  %v130 = vlaneseq
  %v131 = vshrl.u32 %v130, 7
  %v132 = vsub.s32 %v129, %v131
  %v133 = vrot.slane %v36, %v132
  %v135 = vunpack.c.l.s4 1983009808
  %v136 = vunpack.c.0.s8 %v135
  %v137 = vlaneseq
  %v138 = vshrl.u32 %v137, 7
  %v139 = vsub.s32 %v136, %v138
  %v140 = vrot.slane %v37, %v139
  %v141 = vcombine.high %v140, %v140
  %v143 = vunpack.c.l.s4 1983009808
  %v144 = vunpack.c.0.s8 %v143
  %v145 = vlaneseq
  %v146 = vshrl.u32 %v145, 7
  %v147 = vsub.s32 %v144, %v146
  %v148 = vrot.slane %v38, %v147
  %v150 = vunpack.c.l.s4 1983009808
  %v151 = vunpack.c.0.s8 %v150
  %v152 = vlaneseq
  %v153 = vshrl.u32 %v152, 7
  %v154 = vsub.s32 %v151, %v153
  %v155 = vrot.slane %v39, %v154
  %v156 = vcombine.high %v155, %v155
  %v158 = vunpack.c.l.s4 1983009808
  %v159 = vunpack.c.0.s8 %v158
  %v160 = vlaneseq
  %v161 = vshrl.u32 %v160, 7
  %v162 = vsub.s32 %v159, %v161
  %v163 = vrot.slane %v40, %v162
  %v165 = vunpack.c.l.s4 1983009808
  %v166 = vunpack.c.0.s8 %v165
  %v167 = vlaneseq
  %v168 = vshrl.u32 %v167, 7
  %v169 = vsub.s32 %v166, %v168
  %v170 = vrot.slane %v41, %v169
  %v171 = vcombine.high %v170, %v170
  %v173 = vunpack.c.l.s4 1983009808
  %v174 = vunpack.c.0.s8 %v173
  %v175 = vlaneseq
  %v176 = vshrl.u32 %v175, 7
  %v177 = vsub.s32 %v174, %v176
  %v178 = vrot.slane %v42, %v177
  %v179 = vld [vmem:[%s1] sm:$0xff]
  %v180 = vld [vmem:[%s1 + $0x8] sm:$0xff]
  %v181 = vld [vmem:[%s1 + $0x10] sm:$0xff]
  %v182 = vld [vmem:[%s1 + $0x18] sm:$0xff]
  %v183 = vld [vmem:[%s1 + $0x20] sm:$0xff]
  %v184 = vld [vmem:[%s1 + $0x28] sm:$0xff]
  %v185 = vld [vmem:[%s1 + $0x30] sm:$0xff]
  %v186 = vld [vmem:[%s1 + $0x38] sm:$0xff]
  %v187 = vld [vmem:[%s1 + $0x40] sm:$0xff]
  %v188 = vld [vmem:[%s1 + $0x48] sm:$0xff]
  %v189 = vld [vmem:[%s1 + $0x50] sm:$0xff]
  %v190 = vld [vmem:[%s1 + $0x58] sm:$0xff]
  %v191 = vld [vmem:[%s1 + $0x60] sm:$0xff]
  %v192 = vld [vmem:[%s1 + $0x68] sm:$0xff]
  %v193 = vld [vmem:[%s1 + $0x70] sm:$0xff]
  %v194 = vld [vmem:[%s1 + $0x78] sm:$0xff]
  %v195 = vld [vmem:[%s1 + $0x80] sm:$0xff]
  %v196 = vld [vmem:[%s1 + $0x88] sm:$0xff]
  %v197 = vld [vmem:[%s1 + $0x90] sm:$0xff]
  %v198 = vld [vmem:[%s1 + $0x98] sm:$0xff]
  %v199 = vld [vmem:[%s1 + $0xa0] sm:$0xff]
  %v200 = vld [vmem:[%s1 + $0xa8] sm:$0xff]
  %v201 = vld [vmem:[%s1 + $0xb0] sm:$0xff]
  %v202 = vld [vmem:[%s1 + $0xb8] sm:$0xff]
  %v203 = vld [vmem:[%s1 + $0xc0] sm:$0xff]
  %v204 = vld [vmem:[%s1 + $0xc8] sm:$0xff]
  %v205 = vld [vmem:[%s1 + $0xd0] sm:$0xff]
  %v206 = vld [vmem:[%s1 + $0xd8] sm:$0xff]
  %v207 = vld [vmem:[%s1 + $0xe0] sm:$0xff]
  %v208 = vld [vmem:[%s1 + $0xe8] sm:$0xff]
  %v209 = vld [vmem:[%s1 + $0xf0] sm:$0xff]
  %v210 = vld [vmem:[%s1 + $0xf8] sm:$0xff]
  %v211 = vld [vmem:[%s1 + $0x100] sm:$0xff]
  %v212 = vld [vmem:[%s1 + $0x108] sm:$0xff]
  %v213 = vld [vmem:[%s1 + $0x110] sm:$0xff]
  %v214 = vld [vmem:[%s1 + $0x118] sm:$0xff]
  %v215 = vld [vmem:[%s1 + $0x120] sm:$0xff]
  %v216 = vld [vmem:[%s1 + $0x128] sm:$0xff]
  %v217 = vld [vmem:[%s1 + $0x130] sm:$0xff]
  %v218 = vld [vmem:[%s1 + $0x138] sm:$0xff]
  %v219 = vld [vmem:[%s1 + $0x140] sm:$0xff]
  %v220 = vld [vmem:[%s1 + $0x148] sm:$0xff]
  %v221 = vld [vmem:[%s1 + $0x150] sm:$0xff]
  %v222 = vld [vmem:[%s1 + $0x158] sm:$0xff]
  %v223 = vld [vmem:[%s1 + $0x160] sm:$0xff]
  %v224 = vld [vmem:[%s1 + $0x168] sm:$0xff]
  %v225 = vld [vmem:[%s1 + $0x170] sm:$0xff]
  %v226 = vld [vmem:[%s1 + $0x178] sm:$0xff]
  %v227 = vld [vmem:[%s1 + $0x180] sm:$0xff]
  %v228 = vld [vmem:[%s1 + $0x188] sm:$0xff]
  %v229 = vld [vmem:[%s1 + $0x190] sm:$0xff]
  %v230 = vld [vmem:[%s1 + $0x198] sm:$0xff]
  %v231 = vld [vmem:[%s1 + $0x1a0] sm:$0xff]
  %v232 = vld [vmem:[%s1 + $0x1a8] sm:$0xff]
  %v233 = vld [vmem:[%s1 + $0x1b0] sm:$0xff]
  %v234 = vld [vmem:[%s1 + $0x1b8] sm:$0xff]
  %v235 = vld [vmem:[%s1 + $0x1c0] sm:$0xff]
  %v236 = vld [vmem:[%s1 + $0x1c8] sm:$0xff]
  %v237 = vld [vmem:[%s1 + $0x1d0] sm:$0xff]
  %v238 = vld [vmem:[%s1 + $0x1d8] sm:$0xff]
  %v239 = vld [vmem:[%s1 + $0x1e0] sm:$0xff]
  %v240 = vld [vmem:[%s1 + $0x1e8] sm:$0xff]
  %v241 = vld [vmem:[%s1 + $0x1f0] sm:$0xff]
  %v242 = vld [vmem:[%s1 + $0x1f8] sm:$0xff]
  %v243 = vld [vmem:[%s1 + $0x200] sm:$0xff]
  %v244 = vld [vmem:[%s1 + $0x208] sm:$0xff]
  %v245 = vld [vmem:[%s1 + $0x210] sm:$0xff]
  %v246 = vld [vmem:[%s1 + $0x218] sm:$0xff]
  %v247 = vld [vmem:[%s1 + $0x220] sm:$0xff]
  %v248 = vld [vmem:[%s1 + $0x228] sm:$0xff]
  %v249 = vld [vmem:[%s1 + $0x230] sm:$0xff]
  %v250 = vld [vmem:[%s1 + $0x238] sm:$0xff]
  %v251 = vld [vmem:[%s1 + $0x240] sm:$0xff]
  %v252 = vld [vmem:[%s1 + $0x248] sm:$0xff]
  %v253 = vld [vmem:[%s1 + $0x250] sm:$0xff]
  %v254 = vld [vmem:[%s1 + $0x258] sm:$0xff]
  %v255 = vld [vmem:[%s1 + $0x260] sm:$0xff]
  %v256 = vld [vmem:[%s1 + $0x268] sm:$0xff]
  %v257 = vld [vmem:[%s1 + $0x270] sm:$0xff]
  %v258 = vld [vmem:[%s1 + $0x278] sm:$0xff]
  %v259 = vld [vmem:[%s1 + $0x280] sm:$0xff]
  %v260 = vld [vmem:[%s1 + $0x288] sm:$0xff]
  %v261 = vld [vmem:[%s1 + $0x290] sm:$0xff]
  %v262 = vld [vmem:[%s1 + $0x298] sm:$0xff]
  %v263 = vcombine.low %v65, %v66
  %v264 = vcombine.low %v73, %v80
  %v266 = vunpack.c.l.s4 1983009808
  %v267 = vunpack.c.0.s8 %v266
  %v268 = vlaneseq
  %v269 = vshrl.u32 %v268, 7
  %v270 = vsub.s32 %v267, %v269
  %v271 = vrot.slane %v263, %v270
  %v273 = vunpack.c.l.s4 1983009808
  %v274 = vunpack.c.0.s8 %v273
  %v275 = vlaneseq
  %v276 = vshrl.u32 %v275, 7
  %v277 = vsub.s32 %v274, %v276
  %v278 = vrot.slane %v264, %v277
  %v279 = vcombine.low %v271, %v278
  %v280 = vcombine.high %v271, %v278
  %v281 = vcombine.low %v81, %v88
  %v282 = vcombine.low %v95, %v96
  %v284 = vunpack.c.l.s4 1983009808
  %v285 = vunpack.c.0.s8 %v284
  %v286 = vlaneseq
  %v287 = vshrl.u32 %v286, 7
  %v288 = vsub.s32 %v285, %v287
  %v289 = vrot.slane %v281, %v288
  %v291 = vunpack.c.l.s4 1983009808
  %v292 = vunpack.c.0.s8 %v291
  %v293 = vlaneseq
  %v294 = vshrl.u32 %v293, 7
  %v295 = vsub.s32 %v292, %v294
  %v296 = vrot.slane %v282, %v295
  %v297 = vcombine.low %v289, %v296
  %v298 = vcombine.high %v289, %v296
  %v299 = vcombine.low %v103, %v110
  %v300 = vcombine.low %v111, %v118
  %v302 = vunpack.c.l.s4 1983009808
  %v303 = vunpack.c.0.s8 %v302
  %v304 = vlaneseq
  %v305 = vshrl.u32 %v304, 7
  %v306 = vsub.s32 %v303, %v305
  %v307 = vrot.slane %v299, %v306
  %v309 = vunpack.c.l.s4 1983009808
  %v310 = vunpack.c.0.s8 %v309
  %v311 = vlaneseq
  %v312 = vshrl.u32 %v311, 7
  %v313 = vsub.s32 %v310, %v312
  %v314 = vrot.slane %v300, %v313
  %v315 = vcombine.low %v307, %v314
  %v316 = vcombine.high %v307, %v314
  %v317 = vcombine.low %v125, %v126
  %v318 = vcombine.low %v133, %v140
  %v320 = vunpack.c.l.s4 1983009808
  %v321 = vunpack.c.0.s8 %v320
  %v322 = vlaneseq
  %v323 = vshrl.u32 %v322, 7
  %v324 = vsub.s32 %v321, %v323
  %v325 = vrot.slane %v317, %v324
  %v327 = vunpack.c.l.s4 1983009808
  %v328 = vunpack.c.0.s8 %v327
  %v329 = vlaneseq
  %v330 = vshrl.u32 %v329, 7
  %v331 = vsub.s32 %v328, %v330
  %v332 = vrot.slane %v318, %v331
  %v333 = vcombine.low %v325, %v332
  %v334 = vcombine.high %v325, %v332
  %v335 = vcombine.low %v141, %v148
  %v336 = vcombine.low %v155, %v156
  %v338 = vunpack.c.l.s4 1983009808
  %v339 = vunpack.c.0.s8 %v338
  %v340 = vlaneseq
  %v341 = vshrl.u32 %v340, 7
  %v342 = vsub.s32 %v339, %v341
  %v343 = vrot.slane %v335, %v342
  %v345 = vunpack.c.l.s4 1983009808
  %v346 = vunpack.c.0.s8 %v345
  %v347 = vlaneseq
  %v348 = vshrl.u32 %v347, 7
  %v349 = vsub.s32 %v346, %v348
  %v350 = vrot.slane %v336, %v349
  %v351 = vcombine.low %v343, %v350
  %v352 = vcombine.high %v343, %v350
  %v353 = vcombine.low %v163, %v170
  %v354 = vcombine.low %v171, %v178
  %v356 = vunpack.c.l.s4 1983009808
  %v357 = vunpack.c.0.s8 %v356
  %v358 = vlaneseq
  %v359 = vshrl.u32 %v358, 7
  %v360 = vsub.s32 %v357, %v359
  %v361 = vrot.slane %v353, %v360
  %v363 = vunpack.c.l.s4 1983009808
  %v364 = vunpack.c.0.s8 %v363
  %v365 = vlaneseq
  %v366 = vshrl.u32 %v365, 7
  %v367 = vsub.s32 %v364, %v366
  %v368 = vrot.slane %v354, %v367
  %v369 = vcombine.low %v361, %v368
  %v370 = vcombine.high %v361, %v368
  %v461 = vunpack.c.l.b16 %v179
  %v462 = vunpack.c.h.b16 %v179
  %v463 = vunpack.c.l.b16 %v180
  %v464 = vunpack.c.h.b16 %v180
  %v465 = vunpack.c.l.b16 %v181
  %v466 = vunpack.c.h.b16 %v181
  %v467 = vunpack.c.l.b16 %v182
  %v468 = vunpack.c.h.b16 %v182
  %v469 = vunpack.c.l.b16 %v183
  %v470 = vunpack.c.h.b16 %v183
  %v471 = vunpack.c.l.b16 %v184
  %v472 = vunpack.c.h.b16 %v184
  %v473 = vunpack.c.l.b16 %v185
  %v474 = vunpack.c.h.b16 %v185
  %v475 = vunpack.c.l.b16 %v186
  %v476 = vunpack.c.h.b16 %v186
  %v477 = vunpack.c.l.b16 %v187
  %v478 = vunpack.c.h.b16 %v187
  %v479 = vunpack.c.l.b16 %v188
  %v480 = vunpack.c.h.b16 %v188
  %v481 = vunpack.c.l.b16 %v189
  %v482 = vunpack.c.h.b16 %v189
  %v483 = vunpack.c.l.b16 %v190
  %v484 = vunpack.c.h.b16 %v190
  %v485 = vunpack.c.l.b16 %v191
  %v486 = vunpack.c.h.b16 %v191
  %v487 = vunpack.c.l.b16 %v192
  %v488 = vunpack.c.h.b16 %v192
  %v489 = vunpack.c.l.b16 %v193
  %v490 = vunpack.c.h.b16 %v193
  %v491 = vunpack.c.l.b16 %v194
  %v492 = vunpack.c.h.b16 %v194
  %v493 = vunpack.c.l.b16 %v195
  %v494 = vunpack.c.h.b16 %v195
  %v495 = vunpack.c.l.b16 %v196
  %v496 = vunpack.c.h.b16 %v196
  %v497 = vunpack.c.l.b16 %v197
  %v498 = vunpack.c.h.b16 %v197
  %v499 = vunpack.c.l.b16 %v198
  %v500 = vunpack.c.h.b16 %v198
  %v501 = vunpack.c.l.b16 %v199
  %v502 = vunpack.c.h.b16 %v199
  %v503 = vunpack.c.l.b16 %v200
  %v504 = vunpack.c.h.b16 %v200
  %v505 = vunpack.c.l.b16 %v201
  %v506 = vunpack.c.h.b16 %v201
  %v507 = vunpack.c.l.b16 %v202
  %v508 = vunpack.c.h.b16 %v202
  %v509 = vunpack.c.l.b16 %v203
  %v510 = vunpack.c.h.b16 %v203
  %v511 = vunpack.c.l.b16 %v204
  %v512 = vunpack.c.h.b16 %v204
  %v513 = vunpack.c.l.b16 %v205
  %v514 = vunpack.c.h.b16 %v205
  %v515 = vunpack.c.l.b16 %v206
  %v516 = vunpack.c.h.b16 %v206
  %v517 = vunpack.c.l.b16 %v207
  %v518 = vunpack.c.h.b16 %v207
  %v519 = vunpack.c.l.b16 %v208
  %v520 = vunpack.c.h.b16 %v208
  %v521 = vunpack.c.l.b16 %v209
  %v522 = vunpack.c.h.b16 %v209
  %v523 = vunpack.c.l.b16 %v210
  %v524 = vunpack.c.h.b16 %v210
  %v525 = vunpack.c.l.b16 %v211
  %v526 = vunpack.c.h.b16 %v211
  %v527 = vunpack.c.l.b16 %v212
  %v528 = vunpack.c.h.b16 %v212
  %v529 = vunpack.c.l.b16 %v213
  %v530 = vunpack.c.h.b16 %v213
  %v531 = vunpack.c.l.b16 %v214
  %v532 = vunpack.c.h.b16 %v214
  %v533 = vunpack.c.l.b16 %v215
  %v534 = vunpack.c.h.b16 %v215
  %v535 = vunpack.c.l.b16 %v216
  %v536 = vunpack.c.h.b16 %v216
  %v537 = vunpack.c.l.b16 %v217
  %v538 = vunpack.c.h.b16 %v217
  %v539 = vunpack.c.l.b16 %v218
  %v540 = vunpack.c.h.b16 %v218
  %v541 = vunpack.c.l.b16 %v219
  %v542 = vunpack.c.h.b16 %v219
  %v543 = vunpack.c.l.b16 %v220
  %v544 = vunpack.c.h.b16 %v220
  %v545 = vunpack.c.l.b16 %v221
  %v546 = vunpack.c.h.b16 %v221
  %v547 = vunpack.c.l.b16 %v222
  %v548 = vunpack.c.h.b16 %v222
  %v549 = vunpack.c.l.b16 %v223
  %v550 = vunpack.c.h.b16 %v223
  %v551 = vunpack.c.l.b16 %v224
  %v552 = vunpack.c.h.b16 %v224
  %v553 = vunpack.c.l.b16 %v225
  %v554 = vunpack.c.h.b16 %v225
  %v555 = vunpack.c.l.b16 %v226
  %v556 = vunpack.c.h.b16 %v226
  %v557 = vunpack.c.l.b16 %v227
  %v558 = vunpack.c.h.b16 %v227
  %v559 = vunpack.c.l.b16 %v228
  %v560 = vunpack.c.h.b16 %v228
  %v561 = vunpack.c.l.b16 %v229
  %v562 = vunpack.c.h.b16 %v229
  %v563 = vunpack.c.l.b16 %v230
  %v564 = vunpack.c.h.b16 %v230
  %v565 = vunpack.c.l.b16 %v231
  %v566 = vunpack.c.h.b16 %v231
  %v567 = vunpack.c.l.b16 %v232
  %v568 = vunpack.c.h.b16 %v232
  %v569 = vunpack.c.l.b16 %v233
  %v570 = vunpack.c.h.b16 %v233
  %v571 = vunpack.c.l.b16 %v234
  %v572 = vunpack.c.h.b16 %v234
  %v573 = vunpack.c.l.b16 %v235
  %v574 = vunpack.c.h.b16 %v235
  %v575 = vunpack.c.l.b16 %v236
  %v576 = vunpack.c.h.b16 %v236
  %v577 = vunpack.c.l.b16 %v237
  %v578 = vunpack.c.h.b16 %v237
  %v579 = vunpack.c.l.b16 %v238
  %v580 = vunpack.c.h.b16 %v238
  %v581 = vunpack.c.l.b16 %v239
  %v582 = vunpack.c.h.b16 %v239
  %v583 = vunpack.c.l.b16 %v240
  %v584 = vunpack.c.h.b16 %v240
  %v585 = vunpack.c.l.b16 %v241
  %v586 = vunpack.c.h.b16 %v241
  %v587 = vunpack.c.l.b16 %v242
  %v588 = vunpack.c.h.b16 %v242
  %v589 = vunpack.c.l.b16 %v243
  %v590 = vunpack.c.h.b16 %v243
  %v591 = vunpack.c.l.b16 %v244
  %v592 = vunpack.c.h.b16 %v244
  %v593 = vunpack.c.l.b16 %v245
  %v594 = vunpack.c.h.b16 %v245
  %v595 = vunpack.c.l.b16 %v246
  %v596 = vunpack.c.h.b16 %v246
  %v597 = vunpack.c.l.b16 %v247
  %v598 = vunpack.c.h.b16 %v247
  %v599 = vunpack.c.l.b16 %v248
  %v600 = vunpack.c.h.b16 %v248
  %v601 = vunpack.c.l.b16 %v249
  %v602 = vunpack.c.h.b16 %v249
  %v603 = vunpack.c.l.b16 %v250
  %v604 = vunpack.c.h.b16 %v250
  %v605 = vunpack.c.l.b16 %v251
  %v606 = vunpack.c.h.b16 %v251
  %v607 = vunpack.c.l.b16 %v252
  %v608 = vunpack.c.h.b16 %v252
  %v609 = vunpack.c.l.b16 %v253
  %v610 = vunpack.c.h.b16 %v253
  %v611 = vunpack.c.l.b16 %v254
  %v612 = vunpack.c.h.b16 %v254
  %v613 = vunpack.c.l.b16 %v255
  %v614 = vunpack.c.h.b16 %v255
  %v615 = vunpack.c.l.b16 %v256
  %v616 = vunpack.c.h.b16 %v256
  %v617 = vunpack.c.l.b16 %v257
  %v618 = vunpack.c.h.b16 %v257
  %v619 = vunpack.c.l.b16 %v258
  %v620 = vunpack.c.h.b16 %v258
  %v621 = vunpack.c.l.b16 %v259
  %v622 = vunpack.c.h.b16 %v259
  %v623 = vunpack.c.l.b16 %v260
  %v624 = vunpack.c.h.b16 %v260
  %v625 = vunpack.c.l.b16 %v261
  %v626 = vunpack.c.h.b16 %v261
  %v627 = vunpack.c.l.b16 %v262
  %v628 = vunpack.c.h.b16 %v262
  %v629 = vpack.c.b16 %v469, %v461
  %v630 = vpack.c.b16 %v470, %v462
  %v631 = vpack.c.b16 %v471, %v463
  %v632 = vpack.c.b16 %v472, %v464
  %v633 = vpack.c.b16 %v473, %v465
  %v634 = vpack.c.b16 %v474, %v466
  %v635 = vpack.c.b16 %v475, %v467
  %v636 = vpack.c.b16 %v476, %v468
  %v637 = vpack.c.b16 %v485, %v477
  %v638 = vpack.c.b16 %v486, %v478
  %v639 = vpack.c.b16 %v487, %v479
  %v640 = vpack.c.b16 %v488, %v480
  %v641 = vpack.c.b16 %v489, %v481
  %v642 = vpack.c.b16 %v490, %v482
  %v643 = vpack.c.b16 %v491, %v483
  %v644 = vpack.c.b16 %v492, %v484
  %v645 = vpack.c.b16 %v501, %v493
  %v646 = vpack.c.b16 %v502, %v494
  %v647 = vpack.c.b16 %v503, %v495
  %v648 = vpack.c.b16 %v504, %v496
  %v649 = vpack.c.b16 %v505, %v497
  %v650 = vpack.c.b16 %v506, %v498
  %v651 = vpack.c.b16 %v507, %v499
  %v652 = vpack.c.b16 %v508, %v500
  %v653 = vpack.c.b16 %v517, %v509
  %v654 = vpack.c.b16 %v518, %v510
  %v655 = vpack.c.b16 %v519, %v511
  %v656 = vpack.c.b16 %v520, %v512
  %v657 = vpack.c.b16 %v521, %v513
  %v658 = vpack.c.b16 %v522, %v514
  %v659 = vpack.c.b16 %v523, %v515
  %v660 = vpack.c.b16 %v524, %v516
  %v661 = vpack.c.b16 %v533, %v525
  %v662 = vpack.c.b16 %v534, %v526
  %v663 = vpack.c.b16 %v535, %v527
  %v664 = vpack.c.b16 %v536, %v528
  %v665 = vpack.c.b16 %v537, %v529
  %v666 = vpack.c.b16 %v538, %v530
  %v667 = vpack.c.b16 %v539, %v531
  %v668 = vpack.c.b16 %v540, %v532
  %v669 = vpack.c.b16 %v549, %v541
  %v670 = vpack.c.b16 %v550, %v542
  %v671 = vpack.c.b16 %v551, %v543
  %v672 = vpack.c.b16 %v552, %v544
  %v673 = vpack.c.b16 %v553, %v545
  %v674 = vpack.c.b16 %v554, %v546
  %v675 = vpack.c.b16 %v555, %v547
  %v676 = vpack.c.b16 %v556, %v548
  %v677 = vpack.c.b16 %v565, %v557
  %v678 = vpack.c.b16 %v566, %v558
  %v679 = vpack.c.b16 %v567, %v559
  %v680 = vpack.c.b16 %v568, %v560
  %v681 = vpack.c.b16 %v569, %v561
  %v682 = vpack.c.b16 %v570, %v562
  %v683 = vpack.c.b16 %v571, %v563
  %v684 = vpack.c.b16 %v572, %v564
  %v685 = vpack.c.b16 %v581, %v573
  %v686 = vpack.c.b16 %v582, %v574
  %v687 = vpack.c.b16 %v583, %v575
  %v688 = vpack.c.b16 %v584, %v576
  %v689 = vpack.c.b16 %v585, %v577
  %v690 = vpack.c.b16 %v586, %v578
  %v691 = vpack.c.b16 %v587, %v579
  %v692 = vpack.c.b16 %v588, %v580
  %v693 = vpack.c.b16 %v597, %v589
  %v694 = vpack.c.b16 %v598, %v590
  %v695 = vpack.c.b16 %v599, %v591
  %v696 = vpack.c.b16 %v600, %v592
  %v697 = vpack.c.b16 %v601, %v593
  %v698 = vpack.c.b16 %v602, %v594
  %v699 = vpack.c.b16 %v603, %v595
  %v700 = vpack.c.b16 %v604, %v596
  %v701 = vpack.c.b16 %v613, %v605
  %v702 = vpack.c.b16 %v614, %v606
  %v703 = vpack.c.b16 %v615, %v607
  %v704 = vpack.c.b16 %v616, %v608
  %v705 = vpack.c.b16 %v617, %v609
  %v706 = vpack.c.b16 %v618, %v610
  %v707 = vpack.c.b16 %v619, %v611
  %v708 = vpack.c.b16 %v620, %v612
  %v709 = vpack.c.b16 %v621, %v621
  %v710 = vpack.c.b16 %v622, %v622
  %v711 = vpack.c.b16 %v623, %v623
  %v712 = vpack.c.b16 %v624, %v624
  %v713 = vpack.c.b16 %v625, %v625
  %v714 = vpack.c.b16 %v626, %v626
  %v715 = vpack.c.b16 %v627, %v627
  %v716 = vpack.c.b16 %v628, %v628
  %vm797 = vcmask 326656
  %v799 = vsel %vm797, %v280, 0
  %v802 = vsel %vm797, %v298, 0
  %v805 = vsel %vm797, %v316, 0
  %v808 = vsel %vm797, %v334, 0
  %v811 = vsel %vm797, %v352, 0
  %v814 = vsel %vm797, %v370, 0
  %vm816 = vcmask 1043456
  %v818 = vsel %vm816, %v709, 0
  %v821 = vsel %vm816, %v710, 0
  %v824 = vsel %vm816, %v711, 0
  %v827 = vsel %vm816, %v712, 0
  %v830 = vsel %vm816, %v713, 0
  %v833 = vsel %vm816, %v714, 0
  %v836 = vsel %vm816, %v715, 0
  %v839 = vsel %vm816, %v716, 0
  %841 = vmatprep.subr.bf16.mxu0 %v686
  %842 = vmatpush1.bf16.msra.mxu0 %v685
  %843 = vmatprep.subr.bf16.mxu0 %v678
  %844 = vmatpush1.bf16.msra.mxu0 %v677
  %845 = vmatprep.subr.bf16.mxu0 %v670
  %846 = vmatpush1.bf16.msra.mxu0 %v669
  %847 = vmatprep.subr.bf16.mxu0 %v662
  %848 = vmatpush1.bf16.msra.mxu0 %v661
  %849 = vmatprep.subr.bf16.mxu0 %v654
  %850 = vmatpush1.bf16.msra.mxu0 %v653
  %851 = vmatprep.subr.bf16.mxu0 %v646
  %852 = vmatpush1.bf16.msra.mxu0 %v645
  %853 = vmatprep.subr.bf16.mxu0 %v638
  %854 = vmatpush1.bf16.msra.mxu0 %v637
  %855 = vmatprep.subr.bf16.mxu0 %v630
  %856 = vmatpush1.bf16.msra.mxu0 %v629
  %857 = vmatprep.subr.bf16.mxu0 0
  %858 = vmatpush2.bf16.msra.mxu0 0
  %859 = vmatprep.subr.bf16.mxu0 0
  %860 = vmatpush2.bf16.msra.mxu0 0
  %861 = vmatprep.subr.bf16.mxu0 0
  %862 = vmatpush2.bf16.msra.mxu0 0
  %863 = vmatprep.subr.bf16.mxu0 0
  %864 = vmatpush2.bf16.msra.mxu0 0
  %865 = vmatprep.subr.bf16.mxu0 0
  %866 = vmatpush2.bf16.msra.mxu0 0
  %867 = vmatprep.subr.bf16.mxu0 %v821
  %868 = vmatpush2.bf16.msra.mxu0 %v818
  %869 = vmatprep.subr.bf16.mxu0 %v702
  %870 = vmatpush2.bf16.msra.mxu0 %v701
  %871 = vmatprep.subr.bf16.mxu0 %v694
  %872 = vmatpush2.bf16.msra.mxu0 %v693
  %873 = vmatprep.mubr.bf16.mxu0 %v799
  %874 = vmatmul.mubr.bf16.gmra.mxu0 %v279
  %v875 = vpop.f32.mrf.mxu0
  %v876 = vadd.f32 0.0, %v875
  %v877 = vpop.f32.mrf.mxu0
  %v878 = vadd.f32 0.0, %v877
  %v879 = vpop.f32.mrf.mxu0
  %v880 = vadd.f32 0.0, %v879
  %v881 = vpop.f32.mrf.mxu0
  %v882 = vadd.f32 0.0, %v881
  %883 = vmatprep.mubr.bf16.mxu0 %v802
  %884 = vmatmul.mubr.bf16.gmra.mxu0 %v297
  %v885 = vpop.f32.mrf.mxu0
  %v886 = vadd.f32 0.0, %v885
  %v887 = vpop.f32.mrf.mxu0
  %v888 = vadd.f32 0.0, %v887
  %v889 = vpop.f32.mrf.mxu0
  %v890 = vadd.f32 0.0, %v889
  %v891 = vpop.f32.mrf.mxu0
  %v892 = vadd.f32 0.0, %v891
  %893 = vmatprep.mubr.bf16.mxu0 %v805
  %894 = vmatmul.mubr.bf16.gmra.mxu0 %v315
  %v895 = vpop.f32.mrf.mxu0
  %v896 = vadd.f32 0.0, %v895
  %v897 = vpop.f32.mrf.mxu0
  %v898 = vadd.f32 0.0, %v897
  %v899 = vpop.f32.mrf.mxu0
  %v900 = vadd.f32 0.0, %v899
  %v901 = vpop.f32.mrf.mxu0
  %v902 = vadd.f32 0.0, %v901
  %903 = vmatprep.mubr.bf16.mxu0 %v808
  %904 = vmatmul.mubr.bf16.gmra.mxu0 %v333
  %v905 = vpop.f32.mrf.mxu0
  %v906 = vadd.f32 0.0, %v905
  %v907 = vpop.f32.mrf.mxu0
  %v908 = vadd.f32 0.0, %v907
  %v909 = vpop.f32.mrf.mxu0
  %v910 = vadd.f32 0.0, %v909
  %v911 = vpop.f32.mrf.mxu0
  %v912 = vadd.f32 0.0, %v911
  %913 = vmatprep.mubr.bf16.mxu0 %v811
  %914 = vmatmul.mubr.bf16.gmra.mxu0 %v351
  %v915 = vpop.f32.mrf.mxu0
  %v916 = vadd.f32 0.0, %v915
  %v917 = vpop.f32.mrf.mxu0
  %v918 = vadd.f32 0.0, %v917
  %v919 = vpop.f32.mrf.mxu0
  %v920 = vadd.f32 0.0, %v919
  %v921 = vpop.f32.mrf.mxu0
  %v922 = vadd.f32 0.0, %v921
  %923 = vmatprep.mubr.bf16.mxu0 %v814
  %924 = vmatmul.mubr.bf16.gmra.mxu0 %v369
  %v925 = vpop.f32.mrf.mxu0
  %v926 = vadd.f32 0.0, %v925
  %v927 = vpop.f32.mrf.mxu0
  %v928 = vadd.f32 0.0, %v927
  %v929 = vpop.f32.mrf.mxu0
  %v930 = vadd.f32 0.0, %v929
  %v931 = vpop.f32.mrf.mxu0
  %v932 = vadd.f32 0.0, %v931
  %933 = vdwg.mxu0
  %934 = vmatprep.subr.bf16.mxu0 %v688
  %935 = vmatpush1.bf16.msra.mxu0 %v687
  %936 = vmatprep.subr.bf16.mxu0 %v680
  %937 = vmatpush1.bf16.msra.mxu0 %v679
  %938 = vmatprep.subr.bf16.mxu0 %v672
  %939 = vmatpush1.bf16.msra.mxu0 %v671
  %940 = vmatprep.subr.bf16.mxu0 %v664
  %941 = vmatpush1.bf16.msra.mxu0 %v663
  %942 = vmatprep.subr.bf16.mxu0 %v656
  %943 = vmatpush1.bf16.msra.mxu0 %v655
  %944 = vmatprep.subr.bf16.mxu0 %v648
  %945 = vmatpush1.bf16.msra.mxu0 %v647
  %946 = vmatprep.subr.bf16.mxu0 %v640
  %947 = vmatpush1.bf16.msra.mxu0 %v639
  %948 = vmatprep.subr.bf16.mxu0 %v632
  %949 = vmatpush1.bf16.msra.mxu0 %v631
  %950 = vmatprep.subr.bf16.mxu0 0
  %951 = vmatpush2.bf16.msra.mxu0 0
  %952 = vmatprep.subr.bf16.mxu0 0
  %953 = vmatpush2.bf16.msra.mxu0 0
  %954 = vmatprep.subr.bf16.mxu0 0
  %955 = vmatpush2.bf16.msra.mxu0 0
  %956 = vmatprep.subr.bf16.mxu0 0
  %957 = vmatpush2.bf16.msra.mxu0 0
  %958 = vmatprep.subr.bf16.mxu0 0
  %959 = vmatpush2.bf16.msra.mxu0 0
  %960 = vmatprep.subr.bf16.mxu0 %v827
  %961 = vmatpush2.bf16.msra.mxu0 %v824
  %962 = vmatprep.subr.bf16.mxu0 %v704
  %963 = vmatpush2.bf16.msra.mxu0 %v703
  %964 = vmatprep.subr.bf16.mxu0 %v696
  %965 = vmatpush2.bf16.msra.mxu0 %v695
  %966 = vmatprep.mubr.bf16.mxu0 %v799
  %967 = vmatmul.mubr.bf16.gmra.mxu0 %v279
  %v968 = vpop.f32.mrf.mxu0
  %v969 = vadd.f32 0.0, %v968
  %v970 = vpop.f32.mrf.mxu0
  %v971 = vadd.f32 0.0, %v970
  %v972 = vpop.f32.mrf.mxu0
  %v973 = vadd.f32 0.0, %v972
  %v974 = vpop.f32.mrf.mxu0
  %v975 = vadd.f32 0.0, %v974
  %976 = vmatprep.mubr.bf16.mxu0 %v802
  %977 = vmatmul.mubr.bf16.gmra.mxu0 %v297
  %v978 = vpop.f32.mrf.mxu0
  %v979 = vadd.f32 0.0, %v978
  %v980 = vpop.f32.mrf.mxu0
  %v981 = vadd.f32 0.0, %v980
  %v982 = vpop.f32.mrf.mxu0
  %v983 = vadd.f32 0.0, %v982
  %v984 = vpop.f32.mrf.mxu0
  %v985 = vadd.f32 0.0, %v984
  %986 = vmatprep.mubr.bf16.mxu0 %v805
  %987 = vmatmul.mubr.bf16.gmra.mxu0 %v315
  %v988 = vpop.f32.mrf.mxu0
  %v989 = vadd.f32 0.0, %v988
  %v990 = vpop.f32.mrf.mxu0
  %v991 = vadd.f32 0.0, %v990
  %v992 = vpop.f32.mrf.mxu0
  %v993 = vadd.f32 0.0, %v992
  %v994 = vpop.f32.mrf.mxu0
  %v995 = vadd.f32 0.0, %v994
  %996 = vmatprep.mubr.bf16.mxu0 %v808
  %997 = vmatmul.mubr.bf16.gmra.mxu0 %v333
  %v998 = vpop.f32.mrf.mxu0
  %v999 = vadd.f32 0.0, %v998
  %v1000 = vpop.f32.mrf.mxu0
  %v1001 = vadd.f32 0.0, %v1000
  %v1002 = vpop.f32.mrf.mxu0
  %v1003 = vadd.f32 0.0, %v1002
  %v1004 = vpop.f32.mrf.mxu0
  %v1005 = vadd.f32 0.0, %v1004
  %1006 = vmatprep.mubr.bf16.mxu0 %v811
  %1007 = vmatmul.mubr.bf16.gmra.mxu0 %v351
  %v1008 = vpop.f32.mrf.mxu0
  %v1009 = vadd.f32 0.0, %v1008
  %v1010 = vpop.f32.mrf.mxu0
  %v1011 = vadd.f32 0.0, %v1010
  %v1012 = vpop.f32.mrf.mxu0
  %v1013 = vadd.f32 0.0, %v1012
  %v1014 = vpop.f32.mrf.mxu0
  %v1015 = vadd.f32 0.0, %v1014
  %1016 = vmatprep.mubr.bf16.mxu0 %v814
  %1017 = vmatmul.mubr.bf16.gmra.mxu0 %v369
  %v1018 = vpop.f32.mrf.mxu0
  %v1019 = vadd.f32 0.0, %v1018
  %v1020 = vpop.f32.mrf.mxu0
  %v1021 = vadd.f32 0.0, %v1020
  %v1022 = vpop.f32.mrf.mxu0
  %v1023 = vadd.f32 0.0, %v1022
  %v1024 = vpop.f32.mrf.mxu0
  %v1025 = vadd.f32 0.0, %v1024
  %1026 = vdwg.mxu0
  %1027 = vmatprep.subr.bf16.mxu0 %v690
  %1028 = vmatpush1.bf16.msra.mxu0 %v689
  %1029 = vmatprep.subr.bf16.mxu0 %v682
  %1030 = vmatpush1.bf16.msra.mxu0 %v681
  %1031 = vmatprep.subr.bf16.mxu0 %v674
  %1032 = vmatpush1.bf16.msra.mxu0 %v673
  %1033 = vmatprep.subr.bf16.mxu0 %v666
  %1034 = vmatpush1.bf16.msra.mxu0 %v665
  %1035 = vmatprep.subr.bf16.mxu0 %v658
  %1036 = vmatpush1.bf16.msra.mxu0 %v657
  %1037 = vmatprep.subr.bf16.mxu0 %v650
  %1038 = vmatpush1.bf16.msra.mxu0 %v649
  %1039 = vmatprep.subr.bf16.mxu0 %v642
  %1040 = vmatpush1.bf16.msra.mxu0 %v641
  %1041 = vmatprep.subr.bf16.mxu0 %v634
  %1042 = vmatpush1.bf16.msra.mxu0 %v633
  %1043 = vmatprep.subr.bf16.mxu0 0
  %1044 = vmatpush2.bf16.msra.mxu0 0
  %1045 = vmatprep.subr.bf16.mxu0 0
  %1046 = vmatpush2.bf16.msra.mxu0 0
  %1047 = vmatprep.subr.bf16.mxu0 0
  %1048 = vmatpush2.bf16.msra.mxu0 0
  %1049 = vmatprep.subr.bf16.mxu0 0
  %1050 = vmatpush2.bf16.msra.mxu0 0
  %1051 = vmatprep.subr.bf16.mxu0 0
  %1052 = vmatpush2.bf16.msra.mxu0 0
  %1053 = vmatprep.subr.bf16.mxu0 %v833
  %1054 = vmatpush2.bf16.msra.mxu0 %v830
  %1055 = vmatprep.subr.bf16.mxu0 %v706
  %1056 = vmatpush2.bf16.msra.mxu0 %v705
  %1057 = vmatprep.subr.bf16.mxu0 %v698
  %1058 = vmatpush2.bf16.msra.mxu0 %v697
  %1059 = vmatprep.mubr.bf16.mxu0 %v799
  %1060 = vmatmul.mubr.bf16.gmra.mxu0 %v279
  %v1061 = vpop.f32.mrf.mxu0
  %v1062 = vadd.f32 0.0, %v1061
  %v1063 = vpop.f32.mrf.mxu0
  %v1064 = vadd.f32 0.0, %v1063
  %v1065 = vpop.f32.mrf.mxu0
  %v1066 = vadd.f32 0.0, %v1065
  %v1067 = vpop.f32.mrf.mxu0
  %v1068 = vadd.f32 0.0, %v1067
  %1069 = vmatprep.mubr.bf16.mxu0 %v802
  %1070 = vmatmul.mubr.bf16.gmra.mxu0 %v297
  %v1071 = vpop.f32.mrf.mxu0
  %v1072 = vadd.f32 0.0, %v1071
  %v1073 = vpop.f32.mrf.mxu0
  %v1074 = vadd.f32 0.0, %v1073
  %v1075 = vpop.f32.mrf.mxu0
  %v1076 = vadd.f32 0.0, %v1075
  %v1077 = vpop.f32.mrf.mxu0
  %v1078 = vadd.f32 0.0, %v1077
  %1079 = vmatprep.mubr.bf16.mxu0 %v805
  %1080 = vmatmul.mubr.bf16.gmra.mxu0 %v315
  %v1081 = vpop.f32.mrf.mxu0
  %v1082 = vadd.f32 0.0, %v1081
  %v1083 = vpop.f32.mrf.mxu0
  %v1084 = vadd.f32 0.0, %v1083
  %v1085 = vpop.f32.mrf.mxu0
  %v1086 = vadd.f32 0.0, %v1085
  %v1087 = vpop.f32.mrf.mxu0
  %v1088 = vadd.f32 0.0, %v1087
  %1089 = vmatprep.mubr.bf16.mxu0 %v808
  %1090 = vmatmul.mubr.bf16.gmra.mxu0 %v333
  %v1091 = vpop.f32.mrf.mxu0
  %v1092 = vadd.f32 0.0, %v1091
  %v1093 = vpop.f32.mrf.mxu0
  %v1094 = vadd.f32 0.0, %v1093
  %v1095 = vpop.f32.mrf.mxu0
  %v1096 = vadd.f32 0.0, %v1095
  %v1097 = vpop.f32.mrf.mxu0
  %v1098 = vadd.f32 0.0, %v1097
  %1099 = vmatprep.mubr.bf16.mxu0 %v811
  %1100 = vmatmul.mubr.bf16.gmra.mxu0 %v351
  %v1101 = vpop.f32.mrf.mxu0
  %v1102 = vadd.f32 0.0, %v1101
  %v1103 = vpop.f32.mrf.mxu0
  %v1104 = vadd.f32 0.0, %v1103
  %v1105 = vpop.f32.mrf.mxu0
  %v1106 = vadd.f32 0.0, %v1105
  %v1107 = vpop.f32.mrf.mxu0
  %v1108 = vadd.f32 0.0, %v1107
  %1109 = vmatprep.mubr.bf16.mxu0 %v814
  %1110 = vmatmul.mubr.bf16.gmra.mxu0 %v369
  %v1111 = vpop.f32.mrf.mxu0
  %v1112 = vadd.f32 0.0, %v1111
  %v1113 = vpop.f32.mrf.mxu0
  %v1114 = vadd.f32 0.0, %v1113
  %v1115 = vpop.f32.mrf.mxu0
  %v1116 = vadd.f32 0.0, %v1115
  %v1117 = vpop.f32.mrf.mxu0
  %v1118 = vadd.f32 0.0, %v1117
  %1119 = vdwg.mxu0
  %1120 = vmatprep.subr.bf16.mxu0 %v692
  %1121 = vmatpush1.bf16.msra.mxu0 %v691
  %1122 = vmatprep.subr.bf16.mxu0 %v684
  %1123 = vmatpush1.bf16.msra.mxu0 %v683
  %1124 = vmatprep.subr.bf16.mxu0 %v676
  %1125 = vmatpush1.bf16.msra.mxu0 %v675
  %1126 = vmatprep.subr.bf16.mxu0 %v668
  %1127 = vmatpush1.bf16.msra.mxu0 %v667
  %1128 = vmatprep.subr.bf16.mxu0 %v660
  %1129 = vmatpush1.bf16.msra.mxu0 %v659
  %1130 = vmatprep.subr.bf16.mxu0 %v652
  %1131 = vmatpush1.bf16.msra.mxu0 %v651
  %1132 = vmatprep.subr.bf16.mxu0 %v644
  %1133 = vmatpush1.bf16.msra.mxu0 %v643
  %1134 = vmatprep.subr.bf16.mxu0 %v636
  %1135 = vmatpush1.bf16.msra.mxu0 %v635
  %1136 = vmatprep.subr.bf16.mxu0 0
  %1137 = vmatpush2.bf16.msra.mxu0 0
  %1138 = vmatprep.subr.bf16.mxu0 0
  %1139 = vmatpush2.bf16.msra.mxu0 0
  %1140 = vmatprep.subr.bf16.mxu0 0
  %1141 = vmatpush2.bf16.msra.mxu0 0
  %1142 = vmatprep.subr.bf16.mxu0 0
  %1143 = vmatpush2.bf16.msra.mxu0 0
  %1144 = vmatprep.subr.bf16.mxu0 0
  %1145 = vmatpush2.bf16.msra.mxu0 0
  %1146 = vmatprep.subr.bf16.mxu0 %v839
  %1147 = vmatpush2.bf16.msra.mxu0 %v836
  %1148 = vmatprep.subr.bf16.mxu0 %v708
  %1149 = vmatpush2.bf16.msra.mxu0 %v707
  %1150 = vmatprep.subr.bf16.mxu0 %v700
  %1151 = vmatpush2.bf16.msra.mxu0 %v699
  %1152 = vmatprep.mubr.bf16.mxu0 %v799
  %1153 = vmatmul.mubr.bf16.gmra.mxu0 %v279
  %v1154 = vpop.f32.mrf.mxu0
  %v1155 = vadd.f32 0.0, %v1154
  %v1156 = vpop.f32.mrf.mxu0
  %v1157 = vadd.f32 0.0, %v1156
  %v1158 = vpop.f32.mrf.mxu0
  %v1159 = vadd.f32 0.0, %v1158
  %v1160 = vpop.f32.mrf.mxu0
  %v1161 = vadd.f32 0.0, %v1160
  %1162 = vmatprep.mubr.bf16.mxu0 %v802
  %1163 = vmatmul.mubr.bf16.gmra.mxu0 %v297
  %v1164 = vpop.f32.mrf.mxu0
  %v1165 = vadd.f32 0.0, %v1164
  %v1166 = vpop.f32.mrf.mxu0
  %v1167 = vadd.f32 0.0, %v1166
  %v1168 = vpop.f32.mrf.mxu0
  %v1169 = vadd.f32 0.0, %v1168
  %v1170 = vpop.f32.mrf.mxu0
  %v1171 = vadd.f32 0.0, %v1170
  %1172 = vmatprep.mubr.bf16.mxu0 %v805
  %1173 = vmatmul.mubr.bf16.gmra.mxu0 %v315
  %v1174 = vpop.f32.mrf.mxu0
  %v1175 = vadd.f32 0.0, %v1174
  %v1176 = vpop.f32.mrf.mxu0
  %v1177 = vadd.f32 0.0, %v1176
  %v1178 = vpop.f32.mrf.mxu0
  %v1179 = vadd.f32 0.0, %v1178
  %v1180 = vpop.f32.mrf.mxu0
  %v1181 = vadd.f32 0.0, %v1180
  %1182 = vmatprep.mubr.bf16.mxu0 %v808
  %1183 = vmatmul.mubr.bf16.gmra.mxu0 %v333
  %v1184 = vpop.f32.mrf.mxu0
  %v1185 = vadd.f32 0.0, %v1184
  %v1186 = vpop.f32.mrf.mxu0
  %v1187 = vadd.f32 0.0, %v1186
  %v1188 = vpop.f32.mrf.mxu0
  %v1189 = vadd.f32 0.0, %v1188
  %v1190 = vpop.f32.mrf.mxu0
  %v1191 = vadd.f32 0.0, %v1190
  %1192 = vmatprep.mubr.bf16.mxu0 %v811
  %1193 = vmatmul.mubr.bf16.gmra.mxu0 %v351
  %v1194 = vpop.f32.mrf.mxu0
  %v1195 = vadd.f32 0.0, %v1194
  %v1196 = vpop.f32.mrf.mxu0
  %v1197 = vadd.f32 0.0, %v1196
  %v1198 = vpop.f32.mrf.mxu0
  %v1199 = vadd.f32 0.0, %v1198
  %v1200 = vpop.f32.mrf.mxu0
  %v1201 = vadd.f32 0.0, %v1200
  %1202 = vmatprep.mubr.bf16.mxu0 %v814
  %1203 = vmatmul.mubr.bf16.gmra.mxu0 %v369
  %v1204 = vpop.f32.mrf.mxu0
  %v1205 = vadd.f32 0.0, %v1204
  %v1206 = vpop.f32.mrf.mxu0
  %v1207 = vadd.f32 0.0, %v1206
  %v1208 = vpop.f32.mrf.mxu0
  %v1209 = vadd.f32 0.0, %v1208
  %v1210 = vpop.f32.mrf.mxu0
  %v1211 = vadd.f32 0.0, %v1210
  %1212 = vdwg.mxu0
  %v1213 = vmax.f32 %v876, %v1062
  %v1214 = vmax.f32 %v878, %v1064
  %v1215 = vmax.f32 %v969, %v1155
  %v1216 = vmax.f32 %v971, %v1157
  %v1217 = vmax.f32 %v880, %v1066
  %v1218 = vmax.f32 %v882, %v1068
  %v1219 = vmax.f32 %v973, %v1159
  %v1220 = vmax.f32 %v975, %v1161
  %v1221 = vmax.f32 %v886, %v1072
  %v1222 = vmax.f32 %v888, %v1074
  %v1223 = vmax.f32 %v979, %v1165
  %v1224 = vmax.f32 %v981, %v1167
  %v1225 = vmax.f32 %v890, %v1076
  %v1226 = vmax.f32 %v892, %v1078
  %v1227 = vmax.f32 %v983, %v1169
  %v1228 = vmax.f32 %v985, %v1171
  %v1229 = vmax.f32 %v896, %v1082
  %v1230 = vmax.f32 %v898, %v1084
  %v1231 = vmax.f32 %v989, %v1175
  %v1232 = vmax.f32 %v991, %v1177
  %v1233 = vmax.f32 %v900, %v1086
  %v1234 = vmax.f32 %v902, %v1088
  %v1235 = vmax.f32 %v993, %v1179
  %v1236 = vmax.f32 %v995, %v1181
  %v1237 = vmax.f32 %v906, %v1092
  %v1238 = vmax.f32 %v908, %v1094
  %v1239 = vmax.f32 %v999, %v1185
  %v1240 = vmax.f32 %v1001, %v1187
  %v1241 = vmax.f32 %v910, %v1096
  %v1242 = vmax.f32 %v912, %v1098
  %v1243 = vmax.f32 %v1003, %v1189
  %v1244 = vmax.f32 %v1005, %v1191
  %v1245 = vmax.f32 %v916, %v1102
  %v1246 = vmax.f32 %v918, %v1104
  %v1247 = vmax.f32 %v1009, %v1195
  %v1248 = vmax.f32 %v1011, %v1197
  %v1249 = vmax.f32 %v920, %v1106
  %v1250 = vmax.f32 %v922, %v1108
  %v1251 = vmax.f32 %v1013, %v1199
  %v1252 = vmax.f32 %v1015, %v1201
  %v1253 = vmax.f32 %v926, %v1112
  %v1254 = vmax.f32 %v928, %v1114
  %v1255 = vmax.f32 %v1019, %v1205
  %v1256 = vmax.f32 %v1021, %v1207
  %v1257 = vmax.f32 %v930, %v1116
  %v1258 = vmax.f32 %v932, %v1118
  %v1259 = vmax.f32 %v1023, %v1209
  %v1260 = vmax.f32 %v1025, %v1211
  %v1261 = vmax.f32 %v1213, %v1215
  %v1262 = vmax.f32 %v1214, %v1216
  %v1263 = vmax.f32 %v1217, %v1219
  %v1264 = vmax.f32 %v1218, %v1220
  %v1265 = vmax.f32 %v1221, %v1223
  %v1266 = vmax.f32 %v1222, %v1224
  %v1267 = vmax.f32 %v1225, %v1227
  %v1268 = vmax.f32 %v1226, %v1228
  %v1269 = vmax.f32 %v1229, %v1231
  %v1270 = vmax.f32 %v1230, %v1232
  %v1271 = vmax.f32 %v1233, %v1235
  %v1272 = vmax.f32 %v1234, %v1236
  %v1273 = vmax.f32 %v1237, %v1239
  %v1274 = vmax.f32 %v1238, %v1240
  %v1275 = vmax.f32 %v1241, %v1243
  %v1276 = vmax.f32 %v1242, %v1244
  %v1277 = vmax.f32 %v1245, %v1247
  %v1278 = vmax.f32 %v1246, %v1248
  %v1279 = vmax.f32 %v1249, %v1251
  %v1280 = vmax.f32 %v1250, %v1252
  %v1281 = vmax.f32 %v1253, %v1255
  %v1282 = vmax.f32 %v1254, %v1256
  %v1283 = vmax.f32 %v1257, %v1259
  %v1284 = vmax.f32 %v1258, %v1260
  %v1285 = vld [vmem:[%s2] sm:$0x3]
  %v1287 = vlaneseq
  %v1288 = vshrl.u32 %v1287, 7
  %v1289 = vsub.s32 0, %v1288
  %v1290 = vrot.slane %v1285, %v1289
  %v1291 = vlaneseq
  %v1292 = vshrl.u32 %v1291, 7
  %v1293 = vsub.s32 1, %v1292
  %v1294 = vrot.slane %v1285, %v1293
  %v1297 = vadd.f32 %v1261, %v1290
  %v1298 = vadd.f32 %v1262, %v1294
  %v1299 = vadd.f32 %v1263, %v1290
  %v1300 = vadd.f32 %v1264, %v1294
  %v1301 = vadd.f32 %v1265, %v1290
  %v1302 = vadd.f32 %v1266, %v1294
  %v1303 = vadd.f32 %v1267, %v1290
  %v1304 = vadd.f32 %v1268, %v1294
  %v1305 = vadd.f32 %v1269, %v1290
  %v1306 = vadd.f32 %v1270, %v1294
  %v1307 = vadd.f32 %v1271, %v1290
  %v1308 = vadd.f32 %v1272, %v1294
  %v1309 = vadd.f32 %v1273, %v1290
  %v1310 = vadd.f32 %v1274, %v1294
  %v1311 = vadd.f32 %v1275, %v1290
  %v1312 = vadd.f32 %v1276, %v1294
  %v1313 = vadd.f32 %v1277, %v1290
  %v1314 = vadd.f32 %v1278, %v1294
  %v1315 = vadd.f32 %v1279, %v1290
  %v1316 = vadd.f32 %v1280, %v1294
  %v1317 = vadd.f32 %v1281, %v1290
  %v1318 = vadd.f32 %v1282, %v1294
  %v1319 = vadd.f32 %v1283, %v1290
  %v1320 = vadd.f32 %v1284, %v1294
  %v1321 = vmax.f32 %v1297, 0.0
  %v1322 = vmax.f32 %v1298, 0.0
  %v1323 = vmax.f32 %v1299, 0.0
  %v1324 = vmax.f32 %v1300, 0.0
  %v1325 = vmax.f32 %v1301, 0.0
  %v1326 = vmax.f32 %v1302, 0.0
  %v1327 = vmax.f32 %v1303, 0.0
  %v1328 = vmax.f32 %v1304, 0.0
  %v1329 = vmax.f32 %v1305, 0.0
  %v1330 = vmax.f32 %v1306, 0.0
  %v1331 = vmax.f32 %v1307, 0.0
  %v1332 = vmax.f32 %v1308, 0.0
  %v1333 = vmax.f32 %v1309, 0.0
  %v1334 = vmax.f32 %v1310, 0.0
  %v1335 = vmax.f32 %v1311, 0.0
  %v1336 = vmax.f32 %v1312, 0.0
  %v1337 = vmax.f32 %v1313, 0.0
  %v1338 = vmax.f32 %v1314, 0.0
  %v1339 = vmax.f32 %v1315, 0.0
  %v1340 = vmax.f32 %v1316, 0.0
  %v1341 = vmax.f32 %v1317, 0.0
  %v1342 = vmax.f32 %v1318, 0.0
  %v1343 = vmax.f32 %v1319, 0.0
  %v1344 = vmax.f32 %v1320, 0.0
  %v1345 = vpack.c.bf16 %v1323, %v1321
  %v1346 = vpack.c.bf16 %v1324, %v1322
  %v1347 = vpack.c.bf16 %v1327, %v1325
  %v1348 = vpack.c.bf16 %v1328, %v1326
  %v1349 = vpack.c.bf16 %v1331, %v1329
  %v1350 = vpack.c.bf16 %v1332, %v1330
  %v1351 = vpack.c.bf16 %v1335, %v1333
  %v1352 = vpack.c.bf16 %v1336, %v1334
  %v1353 = vpack.c.bf16 %v1339, %v1337
  %v1354 = vpack.c.bf16 %v1340, %v1338
  %v1355 = vpack.c.bf16 %v1343, %v1341
  %v1356 = vpack.c.bf16 %v1344, %v1342
  %v1369 = vcombine.low %v1345, %v1346
  %v1370 = vcombine.high %v1345, %v1346
  %v1372 = vunpack.c.l.s4 1983009808
  %v1373 = vunpack.c.0.s8 %v1372
  %v1374 = vlaneseq
  %v1375 = vshrl.u32 %v1374, 7
  %v1376 = vsub.s32 %v1373, %v1375
  %v1377 = vrot.slane %v1369, %v1376
  %v1379 = vunpack.c.l.s4 1983009808
  %v1380 = vunpack.c.0.s8 %v1379
  %v1381 = vlaneseq
  %v1382 = vshrl.u32 %v1381, 7
  %v1383 = vsub.s32 %v1380, %v1382
  %v1384 = vrot.slane %v1370, %v1383
  %v1385 = vcombine.high %v1377, %v1377
  %v1386 = vcombine.high %v1384, %v1384
  %v1387 = vcombine.low %v1347, %v1348
  %v1388 = vcombine.high %v1347, %v1348
  %v1390 = vunpack.c.l.s4 1983009808
  %v1391 = vunpack.c.0.s8 %v1390
  %v1392 = vlaneseq
  %v1393 = vshrl.u32 %v1392, 7
  %v1394 = vsub.s32 %v1391, %v1393
  %v1395 = vrot.slane %v1387, %v1394
  %v1397 = vunpack.c.l.s4 1983009808
  %v1398 = vunpack.c.0.s8 %v1397
  %v1399 = vlaneseq
  %v1400 = vshrl.u32 %v1399, 7
  %v1401 = vsub.s32 %v1398, %v1400
  %v1402 = vrot.slane %v1388, %v1401
  %v1403 = vcombine.high %v1395, %v1395
  %v1404 = vcombine.high %v1402, %v1402
  %v1405 = vcombine.low %v1349, %v1350
  %v1406 = vcombine.high %v1349, %v1350
  %v1408 = vunpack.c.l.s4 1983009808
  %v1409 = vunpack.c.0.s8 %v1408
  %v1410 = vlaneseq
  %v1411 = vshrl.u32 %v1410, 7
  %v1412 = vsub.s32 %v1409, %v1411
  %v1413 = vrot.slane %v1405, %v1412
  %v1415 = vunpack.c.l.s4 1983009808
  %v1416 = vunpack.c.0.s8 %v1415
  %v1417 = vlaneseq
  %v1418 = vshrl.u32 %v1417, 7
  %v1419 = vsub.s32 %v1416, %v1418
  %v1420 = vrot.slane %v1406, %v1419
  %v1421 = vcombine.high %v1413, %v1413
  %v1422 = vcombine.high %v1420, %v1420
  %v1423 = vcombine.low %v1351, %v1352
  %v1424 = vcombine.high %v1351, %v1352
  %v1426 = vunpack.c.l.s4 1983009808
  %v1427 = vunpack.c.0.s8 %v1426
  %v1428 = vlaneseq
  %v1429 = vshrl.u32 %v1428, 7
  %v1430 = vsub.s32 %v1427, %v1429
  %v1431 = vrot.slane %v1423, %v1430
  %v1433 = vunpack.c.l.s4 1983009808
  %v1434 = vunpack.c.0.s8 %v1433
  %v1435 = vlaneseq
  %v1436 = vshrl.u32 %v1435, 7
  %v1437 = vsub.s32 %v1434, %v1436
  %v1438 = vrot.slane %v1424, %v1437
  %v1439 = vcombine.high %v1431, %v1431
  %v1440 = vcombine.high %v1438, %v1438
  %v1441 = vcombine.low %v1353, %v1354
  %v1442 = vcombine.high %v1353, %v1354
  %v1444 = vunpack.c.l.s4 1983009808
  %v1445 = vunpack.c.0.s8 %v1444
  %v1446 = vlaneseq
  %v1447 = vshrl.u32 %v1446, 7
  %v1448 = vsub.s32 %v1445, %v1447
  %v1449 = vrot.slane %v1441, %v1448
  %v1451 = vunpack.c.l.s4 1983009808
  %v1452 = vunpack.c.0.s8 %v1451
  %v1453 = vlaneseq
  %v1454 = vshrl.u32 %v1453, 7
  %v1455 = vsub.s32 %v1452, %v1454
  %v1456 = vrot.slane %v1442, %v1455
  %v1457 = vcombine.high %v1449, %v1449
  %v1458 = vcombine.high %v1456, %v1456
  %v1459 = vcombine.low %v1355, %v1356
  %v1460 = vcombine.high %v1355, %v1356
  %v1462 = vunpack.c.l.s4 1983009808
  %v1463 = vunpack.c.0.s8 %v1462
  %v1464 = vlaneseq
  %v1465 = vshrl.u32 %v1464, 7
  %v1466 = vsub.s32 %v1463, %v1465
  %v1467 = vrot.slane %v1459, %v1466
  %v1469 = vunpack.c.l.s4 1983009808
  %v1470 = vunpack.c.0.s8 %v1469
  %v1471 = vlaneseq
  %v1472 = vshrl.u32 %v1471, 7
  %v1473 = vsub.s32 %v1470, %v1472
  %v1474 = vrot.slane %v1460, %v1473
  %v1475 = vcombine.high %v1467, %v1467
  %v1476 = vcombine.high %v1474, %v1474
  %v1477 = vcombine.low %v1377, %v1385
  %v1479 = vunpack.c.l.s4 1983009808
  %v1480 = vunpack.c.0.s8 %v1479
  %v1481 = vlaneseq
  %v1482 = vshrl.u32 %v1481, 7
  %v1483 = vsub.s32 %v1480, %v1482
  %v1484 = vrot.slane %v1477, %v1483
  %v1485 = vcombine.high %v1484, %v1484
  %v1486 = vcombine.low %v1386, %v1395
  %v1488 = vunpack.c.l.s4 1983009808
  %v1489 = vunpack.c.0.s8 %v1488
  %v1490 = vlaneseq
  %v1491 = vshrl.u32 %v1490, 7
  %v1492 = vsub.s32 %v1489, %v1491
  %v1493 = vrot.slane %v1486, %v1492
  %v1494 = vcombine.high %v1493, %v1493
  %v1495 = vcombine.low %v1402, %v1404
  %v1497 = vunpack.c.l.s4 1983009808
  %v1498 = vunpack.c.0.s8 %v1497
  %v1499 = vlaneseq
  %v1500 = vshrl.u32 %v1499, 7
  %v1501 = vsub.s32 %v1498, %v1500
  %v1502 = vrot.slane %v1495, %v1501
  %v1503 = vcombine.high %v1502, %v1502
  %v1504 = vcombine.low %v1421, %v1420
  %v1506 = vunpack.c.l.s4 1983009808
  %v1507 = vunpack.c.0.s8 %v1506
  %v1508 = vlaneseq
  %v1509 = vshrl.u32 %v1508, 7
  %v1510 = vsub.s32 %v1507, %v1509
  %v1511 = vrot.slane %v1504, %v1510
  %v1512 = vcombine.high %v1511, %v1511
  %v1513 = vcombine.low %v1431, %v1439
  %v1515 = vunpack.c.l.s4 1983009808
  %v1516 = vunpack.c.0.s8 %v1515
  %v1517 = vlaneseq
  %v1518 = vshrl.u32 %v1517, 7
  %v1519 = vsub.s32 %v1516, %v1518
  %v1520 = vrot.slane %v1513, %v1519
  %v1521 = vcombine.high %v1520, %v1520
  %v1522 = vcombine.low %v1440, %v1449
  %v1524 = vunpack.c.l.s4 1983009808
  %v1525 = vunpack.c.0.s8 %v1524
  %v1526 = vlaneseq
  %v1527 = vshrl.u32 %v1526, 7
  %v1528 = vsub.s32 %v1525, %v1527
  %v1529 = vrot.slane %v1522, %v1528
  %v1530 = vcombine.high %v1529, %v1529
  %v1531 = vcombine.low %v1456, %v1458
  %v1533 = vunpack.c.l.s4 1983009808
  %v1534 = vunpack.c.0.s8 %v1533
  %v1535 = vlaneseq
  %v1536 = vshrl.u32 %v1535, 7
  %v1537 = vsub.s32 %v1534, %v1536
  %v1538 = vrot.slane %v1531, %v1537
  %v1539 = vcombine.high %v1538, %v1538
  %v1540 = vcombine.low %v1475, %v1474
  %v1542 = vunpack.c.l.s4 1983009808
  %v1543 = vunpack.c.0.s8 %v1542
  %v1544 = vlaneseq
  %v1545 = vshrl.u32 %v1544, 7
  %v1546 = vsub.s32 %v1543, %v1545
  %v1547 = vrot.slane %v1540, %v1546
  %v1548 = vcombine.high %v1547, %v1547
  %v1550 = vunpack.c.l.s4 1983009808
  %v1551 = vunpack.c.0.s8 %v1550
  %v1552 = vlaneseq
  %v1553 = vshrl.u32 %v1552, 7
  %v1554 = vsub.s32 %v1551, %v1553
  %v1555 = vrot.slane %v1384, %v1554
  %v1556 = vcombine.low %v1484, %v1555
  %v1557 = vcombine.high %v1484, %v1555
  %v1559 = vunpack.c.l.s4 1983009808
  %v1560 = vunpack.c.0.s8 %v1559
  %v1561 = vlaneseq
  %v1562 = vshrl.u32 %v1561, 7
  %v1563 = vsub.s32 %v1560, %v1562
  %v1564 = vrot.slane %v1403, %v1563
  %v1565 = vcombine.low %v1493, %v1564
  %v1566 = vcombine.high %v1493, %v1564
  %v1568 = vunpack.c.l.s4 1983009808
  %v1569 = vunpack.c.0.s8 %v1568
  %v1570 = vlaneseq
  %v1571 = vshrl.u32 %v1570, 7
  %v1572 = vsub.s32 %v1569, %v1571
  %v1573 = vrot.slane %v1413, %v1572
  %v1574 = vcombine.low %v1502, %v1573
  %v1575 = vcombine.high %v1502, %v1573
  %v1577 = vunpack.c.l.s4 1983009808
  %v1578 = vunpack.c.0.s8 %v1577
  %v1579 = vlaneseq
  %v1580 = vshrl.u32 %v1579, 7
  %v1581 = vsub.s32 %v1578, %v1580
  %v1582 = vrot.slane %v1422, %v1581
  %v1583 = vcombine.low %v1511, %v1582
  %v1584 = vcombine.high %v1511, %v1582
  %v1586 = vunpack.c.l.s4 1983009808
  %v1587 = vunpack.c.0.s8 %v1586
  %v1588 = vlaneseq
  %v1589 = vshrl.u32 %v1588, 7
  %v1590 = vsub.s32 %v1587, %v1589
  %v1591 = vrot.slane %v1438, %v1590
  %v1592 = vcombine.low %v1520, %v1591
  %v1593 = vcombine.high %v1520, %v1591
  %v1595 = vunpack.c.l.s4 1983009808
  %v1596 = vunpack.c.0.s8 %v1595
  %v1597 = vlaneseq
  %v1598 = vshrl.u32 %v1597, 7
  %v1599 = vsub.s32 %v1596, %v1598
  %v1600 = vrot.slane %v1457, %v1599
  %v1601 = vcombine.low %v1529, %v1600
  %v1602 = vcombine.high %v1529, %v1600
  %v1604 = vunpack.c.l.s4 1983009808
  %v1605 = vunpack.c.0.s8 %v1604
  %v1606 = vlaneseq
  %v1607 = vshrl.u32 %v1606, 7
  %v1608 = vsub.s32 %v1605, %v1607
  %v1609 = vrot.slane %v1467, %v1608
  %v1610 = vcombine.low %v1538, %v1609
  %v1611 = vcombine.high %v1538, %v1609
  %v1613 = vunpack.c.l.s4 1983009808
  %v1614 = vunpack.c.0.s8 %v1613
  %v1615 = vlaneseq
  %v1616 = vshrl.u32 %v1615, 7
  %v1617 = vsub.s32 %v1614, %v1616
  %v1618 = vrot.slane %v1476, %v1617
  %v1619 = vcombine.low %v1547, %v1618
  %v1620 = vcombine.high %v1547, %v1618
  %v1622 = vshrl.u32 %v1556, 16
  %v1624 = vshll.u32 %v1556, 16
  %v1626 = vrot.slane %v1624, 1
  %v1627 = vor.u32 %v1622, %v1626
  %v1629 = vshrl.u32 %v1557, 16
  %v1631 = vshll.u32 %v1557, 16
  %v1633 = vrot.slane %v1631, 1
  %v1634 = vor.u32 %v1629, %v1633
  %v1636 = vshrl.u32 %v1565, 16
  %v1638 = vshll.u32 %v1565, 16
  %v1640 = vrot.slane %v1638, 1
  %v1641 = vor.u32 %v1636, %v1640
  %v1643 = vshrl.u32 %v1566, 16
  %v1645 = vshll.u32 %v1566, 16
  %v1647 = vrot.slane %v1645, 1
  %v1648 = vor.u32 %v1643, %v1647
  %v1650 = vshrl.u32 %v1574, 16
  %v1652 = vshll.u32 %v1574, 16
  %v1654 = vrot.slane %v1652, 1
  %v1655 = vor.u32 %v1650, %v1654
  %v1657 = vshrl.u32 %v1575, 16
  %v1659 = vshll.u32 %v1575, 16
  %v1661 = vrot.slane %v1659, 1
  %v1662 = vor.u32 %v1657, %v1661
  %v1664 = vshrl.u32 %v1583, 16
  %v1666 = vshll.u32 %v1583, 16
  %v1668 = vrot.slane %v1666, 1
  %v1669 = vor.u32 %v1664, %v1668
  %v1671 = vshrl.u32 %v1584, 16
  %v1673 = vshll.u32 %v1584, 16
  %v1675 = vrot.slane %v1673, 1
  %v1676 = vor.u32 %v1671, %v1675
  %v1678 = vshrl.u32 %v1592, 16
  %v1680 = vshll.u32 %v1592, 16
  %v1682 = vrot.slane %v1680, 1
  %v1683 = vor.u32 %v1678, %v1682
  %v1685 = vshrl.u32 %v1593, 16
  %v1687 = vshll.u32 %v1593, 16
  %v1689 = vrot.slane %v1687, 1
  %v1690 = vor.u32 %v1685, %v1689
  %v1692 = vshrl.u32 %v1601, 16
  %v1694 = vshll.u32 %v1601, 16
  %v1696 = vrot.slane %v1694, 1
  %v1697 = vor.u32 %v1692, %v1696
  %v1699 = vshrl.u32 %v1602, 16
  %v1701 = vshll.u32 %v1602, 16
  %v1703 = vrot.slane %v1701, 1
  %v1704 = vor.u32 %v1699, %v1703
  %v1706 = vshrl.u32 %v1610, 16
  %v1708 = vshll.u32 %v1610, 16
  %v1710 = vrot.slane %v1708, 1
  %v1711 = vor.u32 %v1706, %v1710
  %v1713 = vshrl.u32 %v1611, 16
  %v1715 = vshll.u32 %v1611, 16
  %v1717 = vrot.slane %v1715, 1
  %v1718 = vor.u32 %v1713, %v1717
  %v1720 = vshrl.u32 %v1619, 16
  %v1722 = vshll.u32 %v1619, 16
  %v1724 = vrot.slane %v1722, 1
  %v1725 = vor.u32 %v1720, %v1724
  %v1727 = vshrl.u32 %v1620, 16
  %v1729 = vshll.u32 %v1620, 16
  %v1731 = vrot.slane %v1729, 1
  %v1732 = vor.u32 %v1727, %v1731
  %v1733 = vrot.slane %v1556, 1
  %v1734 = vrot.slane %v1557, 1
  %v1735 = vrot.slane %v1565, 1
  %v1736 = vrot.slane %v1566, 1
  %v1737 = vrot.slane %v1574, 1
  %v1738 = vrot.slane %v1575, 1
  %v1739 = vrot.slane %v1583, 1
  %v1740 = vrot.slane %v1584, 1
  %v1741 = vrot.slane %v1592, 1
  %v1742 = vrot.slane %v1593, 1
  %v1743 = vrot.slane %v1601, 1
  %v1744 = vrot.slane %v1602, 1
  %v1745 = vrot.slane %v1610, 1
  %v1746 = vrot.slane %v1611, 1
  %v1747 = vrot.slane %v1619, 1
  %v1748 = vrot.slane %v1620, 1
  %v1749 = vrot.slane %v1622, 1
  %v1750 = vrot.slane %v1624, 2
  %v1751 = vor.u32 %v1749, %v1750
  %v1752 = vrot.slane %v1629, 1
  %v1753 = vrot.slane %v1631, 2
  %v1754 = vor.u32 %v1752, %v1753
  %v1755 = vrot.slane %v1636, 1
  %v1756 = vrot.slane %v1638, 2
  %v1757 = vor.u32 %v1755, %v1756
  %v1758 = vrot.slane %v1643, 1
  %v1759 = vrot.slane %v1645, 2
  %v1760 = vor.u32 %v1758, %v1759
  %v1761 = vrot.slane %v1650, 1
  %v1762 = vrot.slane %v1652, 2
  %v1763 = vor.u32 %v1761, %v1762
  %v1764 = vrot.slane %v1657, 1
  %v1765 = vrot.slane %v1659, 2
  %v1766 = vor.u32 %v1764, %v1765
  %v1767 = vrot.slane %v1664, 1
  %v1768 = vrot.slane %v1666, 2
  %v1769 = vor.u32 %v1767, %v1768
  %v1770 = vrot.slane %v1671, 1
  %v1771 = vrot.slane %v1673, 2
  %v1772 = vor.u32 %v1770, %v1771
  %v1773 = vrot.slane %v1678, 1
  %v1774 = vrot.slane %v1680, 2
  %v1775 = vor.u32 %v1773, %v1774
  %v1776 = vrot.slane %v1685, 1
  %v1777 = vrot.slane %v1687, 2
  %v1778 = vor.u32 %v1776, %v1777
  %v1779 = vrot.slane %v1692, 1
  %v1780 = vrot.slane %v1694, 2
  %v1781 = vor.u32 %v1779, %v1780
  %v1782 = vrot.slane %v1699, 1
  %v1783 = vrot.slane %v1701, 2
  %v1784 = vor.u32 %v1782, %v1783
  %v1785 = vrot.slane %v1706, 1
  %v1786 = vrot.slane %v1708, 2
  %v1787 = vor.u32 %v1785, %v1786
  %v1788 = vrot.slane %v1713, 1
  %v1789 = vrot.slane %v1715, 2
  %v1790 = vor.u32 %v1788, %v1789
  %v1791 = vrot.slane %v1720, 1
  %v1792 = vrot.slane %v1722, 2
  %v1793 = vor.u32 %v1791, %v1792
  %v1794 = vrot.slane %v1727, 1
  %v1795 = vrot.slane %v1729, 2
  %v1796 = vor.u32 %v1794, %v1795
  %v1797 = vcombine.low %v1385, %v1384
  %v1799 = vunpack.c.l.s4 1983009808
  %v1800 = vunpack.c.0.s8 %v1799
  %v1801 = vlaneseq
  %v1802 = vshrl.u32 %v1801, 7
  %v1803 = vsub.s32 %v1800, %v1802
  %v1804 = vrot.slane %v1797, %v1803
  %v1805 = vcombine.high %v1804, %v1804
  %v1806 = vcombine.low %v1395, %v1403
  %v1808 = vunpack.c.l.s4 1983009808
  %v1809 = vunpack.c.0.s8 %v1808
  %v1810 = vlaneseq
  %v1811 = vshrl.u32 %v1810, 7
  %v1812 = vsub.s32 %v1809, %v1811
  %v1813 = vrot.slane %v1806, %v1812
  %v1814 = vcombine.high %v1813, %v1813
  %v1815 = vcombine.low %v1404, %v1413
  %v1817 = vunpack.c.l.s4 1983009808
  %v1818 = vunpack.c.0.s8 %v1817
  %v1819 = vlaneseq
  %v1820 = vshrl.u32 %v1819, 7
  %v1821 = vsub.s32 %v1818, %v1820
  %v1822 = vrot.slane %v1815, %v1821
  %v1823 = vcombine.high %v1822, %v1822
  %v1824 = vcombine.low %v1420, %v1422
  %v1826 = vunpack.c.l.s4 1983009808
  %v1827 = vunpack.c.0.s8 %v1826
  %v1828 = vlaneseq
  %v1829 = vshrl.u32 %v1828, 7
  %v1830 = vsub.s32 %v1827, %v1829
  %v1831 = vrot.slane %v1824, %v1830
  %v1832 = vcombine.high %v1831, %v1831
  %v1833 = vcombine.low %v1439, %v1438
  %v1835 = vunpack.c.l.s4 1983009808
  %v1836 = vunpack.c.0.s8 %v1835
  %v1837 = vlaneseq
  %v1838 = vshrl.u32 %v1837, 7
  %v1839 = vsub.s32 %v1836, %v1838
  %v1840 = vrot.slane %v1833, %v1839
  %v1841 = vcombine.high %v1840, %v1840
  %v1842 = vcombine.low %v1449, %v1457
  %v1844 = vunpack.c.l.s4 1983009808
  %v1845 = vunpack.c.0.s8 %v1844
  %v1846 = vlaneseq
  %v1847 = vshrl.u32 %v1846, 7
  %v1848 = vsub.s32 %v1845, %v1847
  %v1849 = vrot.slane %v1842, %v1848
  %v1850 = vcombine.high %v1849, %v1849
  %v1851 = vcombine.low %v1458, %v1467
  %v1853 = vunpack.c.l.s4 1983009808
  %v1854 = vunpack.c.0.s8 %v1853
  %v1855 = vlaneseq
  %v1856 = vshrl.u32 %v1855, 7
  %v1857 = vsub.s32 %v1854, %v1856
  %v1858 = vrot.slane %v1851, %v1857
  %v1859 = vcombine.high %v1858, %v1858
  %v1860 = vcombine.low %v1474, %v1476
  %v1862 = vunpack.c.l.s4 1983009808
  %v1863 = vunpack.c.0.s8 %v1862
  %v1864 = vlaneseq
  %v1865 = vshrl.u32 %v1864, 7
  %v1866 = vsub.s32 %v1863, %v1865
  %v1867 = vrot.slane %v1860, %v1866
  %v1868 = vcombine.high %v1867, %v1867
  %v1869 = vunpack.c.l.b16 %v1484
  %v1870 = vunpack.c.l.b16 %v1485
  %v1871 = vunpack.c.l.b16 %v1627
  %v1872 = vunpack.c.l.b16 %v1634
  %v1873 = vunpack.c.l.b16 %v1733
  %v1874 = vunpack.c.l.b16 %v1734
  %v1875 = vunpack.c.l.b16 %v1751
  %v1876 = vunpack.c.l.b16 %v1754
  %v1877 = vunpack.c.l.b16 %v1804
  %v1878 = vunpack.c.l.b16 %v1805
  %v1879 = vunpack.c.l.b16 %v1493
  %v1880 = vunpack.c.l.b16 %v1494
  %v1881 = vunpack.c.l.b16 %v1641
  %v1882 = vunpack.c.l.b16 %v1648
  %v1883 = vunpack.c.l.b16 %v1735
  %v1884 = vunpack.c.l.b16 %v1736
  %v1885 = vunpack.c.l.b16 %v1757
  %v1886 = vunpack.c.l.b16 %v1760
  %v1887 = vunpack.c.l.b16 %v1813
  %v1888 = vunpack.c.l.b16 %v1814
  %v1889 = vunpack.c.l.b16 %v1502
  %v1890 = vunpack.c.l.b16 %v1503
  %v1891 = vunpack.c.l.b16 %v1655
  %v1892 = vunpack.c.l.b16 %v1662
  %v1893 = vunpack.c.l.b16 %v1737
  %v1894 = vunpack.c.l.b16 %v1738
  %v1895 = vunpack.c.l.b16 %v1763
  %v1896 = vunpack.c.l.b16 %v1766
  %v1897 = vunpack.c.l.b16 %v1822
  %v1898 = vunpack.c.l.b16 %v1823
  %v1899 = vunpack.c.l.b16 %v1511
  %v1900 = vunpack.c.l.b16 %v1512
  %v1901 = vunpack.c.l.b16 %v1669
  %v1902 = vunpack.c.l.b16 %v1676
  %v1903 = vunpack.c.l.b16 %v1739
  %v1904 = vunpack.c.l.b16 %v1740
  %v1905 = vunpack.c.l.b16 %v1769
  %v1906 = vunpack.c.l.b16 %v1772
  %v1907 = vunpack.c.l.b16 %v1831
  %v1908 = vunpack.c.l.b16 %v1832
  %v1909 = vunpack.c.l.b16 %v1520
  %v1910 = vunpack.c.l.b16 %v1521
  %v1911 = vunpack.c.l.b16 %v1683
  %v1912 = vunpack.c.l.b16 %v1690
  %v1913 = vunpack.c.l.b16 %v1741
  %v1914 = vunpack.c.l.b16 %v1742
  %v1915 = vunpack.c.l.b16 %v1775
  %v1916 = vunpack.c.l.b16 %v1778
  %v1917 = vunpack.c.l.b16 %v1840
  %v1918 = vunpack.c.l.b16 %v1841
  %v1919 = vunpack.c.l.b16 %v1529
  %v1920 = vunpack.c.l.b16 %v1530
  %v1921 = vunpack.c.l.b16 %v1697
  %v1922 = vunpack.c.l.b16 %v1704
  %v1923 = vunpack.c.l.b16 %v1743
  %v1924 = vunpack.c.l.b16 %v1744
  %v1925 = vunpack.c.l.b16 %v1781
  %v1926 = vunpack.c.l.b16 %v1784
  %v1927 = vunpack.c.l.b16 %v1849
  %v1928 = vunpack.c.l.b16 %v1850
  %v1929 = vunpack.c.l.b16 %v1538
  %v1930 = vunpack.c.l.b16 %v1539
  %v1931 = vunpack.c.l.b16 %v1711
  %v1932 = vunpack.c.l.b16 %v1718
  %v1933 = vunpack.c.l.b16 %v1745
  %v1934 = vunpack.c.l.b16 %v1746
  %v1935 = vunpack.c.l.b16 %v1787
  %v1936 = vunpack.c.l.b16 %v1790
  %v1937 = vunpack.c.l.b16 %v1858
  %v1938 = vunpack.c.l.b16 %v1859
  %v1939 = vunpack.c.l.b16 %v1547
  %v1940 = vunpack.c.l.b16 %v1548
  %v1941 = vunpack.c.l.b16 %v1725
  %v1942 = vunpack.c.l.b16 %v1732
  %v1943 = vunpack.c.l.b16 %v1747
  %v1944 = vunpack.c.l.b16 %v1748
  %v1945 = vunpack.c.l.b16 %v1793
  %v1946 = vunpack.c.l.b16 %v1796
  %v1947 = vunpack.c.l.b16 %v1867
  %v1948 = vunpack.c.l.b16 %v1868
  %v1949 = vld [vmem:[%s3] sm:$0xff]
  %v1950 = vld [vmem:[%s3 + $0x8] sm:$0xff]
  %v1951 = vld [vmem:[%s3 + $0x10] sm:$0xff]
  %v1952 = vld [vmem:[%s3 + $0x18] sm:$0xff]
  %v1953 = vld [vmem:[%s3 + $0x20] sm:$0xff]
  %v1954 = vld [vmem:[%s3 + $0x28] sm:$0xff]
  %v1955 = vld [vmem:[%s3 + $0x30] sm:$0xff]
  %v1956 = vld [vmem:[%s3 + $0x38] sm:$0xff]
  %v1957 = vld [vmem:[%s3 + $0x40] sm:$0xff]
  %v1958 = vld [vmem:[%s3 + $0x48] sm:$0xff]
  %v1959 = vld [vmem:[%s3 + $0x50] sm:$0xff]
  %v1960 = vld [vmem:[%s3 + $0x58] sm:$0xff]
  %v1961 = vld [vmem:[%s3 + $0x60] sm:$0xff]
  %v1962 = vld [vmem:[%s3 + $0x68] sm:$0xff]
  %v1963 = vld [vmem:[%s3 + $0x70] sm:$0xff]
  %v1964 = vld [vmem:[%s3 + $0x78] sm:$0xff]
  %v1965 = vld [vmem:[%s3 + $0x80] sm:$0xff]
  %v1966 = vld [vmem:[%s3 + $0x88] sm:$0xff]
  %v1967 = vld [vmem:[%s3 + $0x90] sm:$0xff]
  %v1968 = vld [vmem:[%s3 + $0x98] sm:$0xff]
  %v1969 = vld [vmem:[%s3 + $0xa0] sm:$0xff]
  %v1970 = vld [vmem:[%s3 + $0xa8] sm:$0xff]
  %v1971 = vld [vmem:[%s3 + $0xb0] sm:$0xff]
  %v1972 = vld [vmem:[%s3 + $0xb8] sm:$0xff]
  %v1973 = vld [vmem:[%s3 + $0xc0] sm:$0xff]
  %v1974 = vld [vmem:[%s3 + $0xc8] sm:$0xff]
  %v1975 = vld [vmem:[%s3 + $0xd0] sm:$0xff]
  %v1976 = vld [vmem:[%s3 + $0xd8] sm:$0xff]
  %v1977 = vld [vmem:[%s3 + $0xe0] sm:$0xff]
  %v1978 = vld [vmem:[%s3 + $0xe8] sm:$0xff]
  %v1979 = vld [vmem:[%s3 + $0xf0] sm:$0xff]
  %v1980 = vld [vmem:[%s3 + $0xf8] sm:$0xff]
  %v1981 = vld [vmem:[%s3 + $0x100] sm:$0xff]
  %v1982 = vld [vmem:[%s3 + $0x108] sm:$0xff]
  %v1983 = vld [vmem:[%s3 + $0x110] sm:$0xff]
  %v1984 = vld [vmem:[%s3 + $0x118] sm:$0xff]
  %v1985 = vld [vmem:[%s3 + $0x120] sm:$0xff]
  %v1986 = vld [vmem:[%s3 + $0x128] sm:$0xff]
  %v1987 = vld [vmem:[%s3 + $0x130] sm:$0xff]
  %v1988 = vld [vmem:[%s3 + $0x138] sm:$0xff]
  %v1989 = vld [vmem:[%s3 + $0x140] sm:$0xff]
  %v1990 = vld [vmem:[%s3 + $0x148] sm:$0xff]
  %v1991 = vld [vmem:[%s3 + $0x150] sm:$0xff]
  %v1992 = vld [vmem:[%s3 + $0x158] sm:$0xff]
  %v1993 = vld [vmem:[%s3 + $0x160] sm:$0xff]
  %v1994 = vld [vmem:[%s3 + $0x168] sm:$0xff]
  %v1995 = vld [vmem:[%s3 + $0x170] sm:$0xff]
  %v1996 = vld [vmem:[%s3 + $0x178] sm:$0xff]
  %v1997 = vld [vmem:[%s3 + $0x180] sm:$0xff]
  %v1998 = vld [vmem:[%s3 + $0x188] sm:$0xff]
  %v1999 = vld [vmem:[%s3 + $0x190] sm:$0xff]
  %v2000 = vld [vmem:[%s3 + $0x198] sm:$0xff]
  %v2001 = vld [vmem:[%s3 + $0x1a0] sm:$0xff]
  %v2002 = vld [vmem:[%s3 + $0x1a8] sm:$0xff]
  %v2003 = vld [vmem:[%s3 + $0x1b0] sm:$0xff]
  %v2004 = vld [vmem:[%s3 + $0x1b8] sm:$0xff]
  %v2005 = vld [vmem:[%s3 + $0x1c0] sm:$0xff]
  %v2006 = vld [vmem:[%s3 + $0x1c8] sm:$0xff]
  %v2007 = vld [vmem:[%s3 + $0x1d0] sm:$0xff]
  %v2008 = vld [vmem:[%s3 + $0x1d8] sm:$0xff]
  %v2009 = vld [vmem:[%s3 + $0x1e0] sm:$0xff]
  %v2010 = vld [vmem:[%s3 + $0x1e8] sm:$0xff]
  %v2011 = vld [vmem:[%s3 + $0x1f0] sm:$0xff]
  %v2012 = vld [vmem:[%s3 + $0x1f8] sm:$0xff]
  %v2013 = vld [vmem:[%s3 + $0x200] sm:$0xff]
  %v2014 = vld [vmem:[%s3 + $0x208] sm:$0xff]
  %v2015 = vld [vmem:[%s3 + $0x210] sm:$0xff]
  %v2016 = vld [vmem:[%s3 + $0x218] sm:$0xff]
  %v2017 = vld [vmem:[%s3 + $0x220] sm:$0xff]
  %v2018 = vld [vmem:[%s3 + $0x228] sm:$0xff]
  %v2019 = vld [vmem:[%s3 + $0x230] sm:$0xff]
  %v2020 = vld [vmem:[%s3 + $0x238] sm:$0xff]
  %v2021 = vld [vmem:[%s3 + $0x240] sm:$0xff]
  %v2022 = vld [vmem:[%s3 + $0x248] sm:$0xff]
  %v2023 = vld [vmem:[%s3 + $0x250] sm:$0xff]
  %v2024 = vld [vmem:[%s3 + $0x258] sm:$0xff]
  %v2025 = vld [vmem:[%s3 + $0x260] sm:$0xff]
  %v2026 = vld [vmem:[%s3 + $0x268] sm:$0xff]
  %v2027 = vld [vmem:[%s3 + $0x270] sm:$0xff]
  %v2028 = vld [vmem:[%s3 + $0x278] sm:$0xff]
  %v2029 = vld [vmem:[%s3 + $0x280] sm:$0xff]
  %v2030 = vld [vmem:[%s3 + $0x288] sm:$0xff]
  %v2031 = vld [vmem:[%s3 + $0x290] sm:$0xff]
  %v2032 = vld [vmem:[%s3 + $0x298] sm:$0xff]
  %v2033 = vld [vmem:[%s3 + $0x2a0] sm:$0xff]
  %v2034 = vld [vmem:[%s3 + $0x2a8] sm:$0xff]
  %v2035 = vld [vmem:[%s3 + $0x2b0] sm:$0xff]
  %v2036 = vld [vmem:[%s3 + $0x2b8] sm:$0xff]
  %v2037 = vld [vmem:[%s3 + $0x2c0] sm:$0xff]
  %v2038 = vld [vmem:[%s3 + $0x2c8] sm:$0xff]
  %v2039 = vld [vmem:[%s3 + $0x2d0] sm:$0xff]
  %v2040 = vld [vmem:[%s3 + $0x2d8] sm:$0xff]
  %v2041 = vld [vmem:[%s3 + $0x2e0] sm:$0xff]
  %v2042 = vld [vmem:[%s3 + $0x2e8] sm:$0xff]
  %v2043 = vld [vmem:[%s3 + $0x2f0] sm:$0xff]
  %v2044 = vld [vmem:[%s3 + $0x2f8] sm:$0xff]
  %v2045 = vld [vmem:[%s3 + $0x300] sm:$0xff]
  %v2046 = vld [vmem:[%s3 + $0x308] sm:$0xff]
  %v2047 = vld [vmem:[%s3 + $0x310] sm:$0xff]
  %v2048 = vld [vmem:[%s3 + $0x318] sm:$0xff]
  %v2049 = vld [vmem:[%s3 + $0x320] sm:$0xff]
  %v2050 = vld [vmem:[%s3 + $0x328] sm:$0xff]
  %v2051 = vld [vmem:[%s3 + $0x330] sm:$0xff]
  %v2052 = vld [vmem:[%s3 + $0x338] sm:$0xff]
  %v2053 = vld [vmem:[%s3 + $0x340] sm:$0xff]
  %v2054 = vld [vmem:[%s3 + $0x348] sm:$0xff]
  %v2055 = vld [vmem:[%s3 + $0x350] sm:$0xff]
  %v2056 = vld [vmem:[%s3 + $0x358] sm:$0xff]
  %v2057 = vld [vmem:[%s3 + $0x360] sm:$0xff]
  %v2058 = vld [vmem:[%s3 + $0x368] sm:$0xff]
  %v2059 = vld [vmem:[%s3 + $0x370] sm:$0xff]
  %v2060 = vld [vmem:[%s3 + $0x378] sm:$0xff]
  %v2061 = vld [vmem:[%s3 + $0x380] sm:$0xff]
  %v2062 = vld [vmem:[%s3 + $0x388] sm:$0xff]
  %v2063 = vld [vmem:[%s3 + $0x390] sm:$0xff]
  %v2064 = vld [vmem:[%s3 + $0x398] sm:$0xff]
  %v2065 = vld [vmem:[%s3 + $0x3a0] sm:$0xff]
  %v2066 = vld [vmem:[%s3 + $0x3a8] sm:$0xff]
  %v2067 = vld [vmem:[%s3 + $0x3b0] sm:$0xff]
  %v2068 = vld [vmem:[%s3 + $0x3b8] sm:$0xff]
  %v2069 = vld [vmem:[%s3 + $0x3c0] sm:$0xff]
  %v2070 = vld [vmem:[%s3 + $0x3c8] sm:$0xff]
  %v2071 = vld [vmem:[%s3 + $0x3d0] sm:$0xff]
  %v2072 = vld [vmem:[%s3 + $0x3d8] sm:$0xff]
  %v2073 = vld [vmem:[%s3 + $0x3e0] sm:$0xff]
  %v2074 = vld [vmem:[%s3 + $0x3e8] sm:$0xff]
  %v2075 = vld [vmem:[%s3 + $0x3f0] sm:$0xff]
  %v2076 = vld [vmem:[%s3 + $0x3f8] sm:$0xff]
  %v2077 = vld [vmem:[%s3 + $0x400] sm:$0xff]
  %v2078 = vld [vmem:[%s3 + $0x408] sm:$0xff]
  %v2079 = vld [vmem:[%s3 + $0x410] sm:$0xff]
  %v2080 = vld [vmem:[%s3 + $0x418] sm:$0xff]
  %v2081 = vld [vmem:[%s3 + $0x420] sm:$0xff]
  %v2082 = vld [vmem:[%s3 + $0x428] sm:$0xff]
  %v2083 = vld [vmem:[%s3 + $0x430] sm:$0xff]
  %v2084 = vld [vmem:[%s3 + $0x438] sm:$0xff]
  %v2085 = vld [vmem:[%s3 + $0x440] sm:$0xff]
  %v2086 = vld [vmem:[%s3 + $0x448] sm:$0xff]
  %v2087 = vld [vmem:[%s3 + $0x450] sm:$0xff]
  %v2088 = vld [vmem:[%s3 + $0x458] sm:$0xff]
  %v2089 = vld [vmem:[%s3 + $0x460] sm:$0xff]
  %v2090 = vld [vmem:[%s3 + $0x468] sm:$0xff]
  %v2091 = vld [vmem:[%s3 + $0x470] sm:$0xff]
  %v2092 = vld [vmem:[%s3 + $0x478] sm:$0xff]
  %v2093 = vld [vmem:[%s3 + $0x480] sm:$0xff]
  %v2094 = vld [vmem:[%s3 + $0x488] sm:$0xff]
  %v2095 = vld [vmem:[%s3 + $0x490] sm:$0xff]
  %v2096 = vld [vmem:[%s3 + $0x498] sm:$0xff]
  %v2097 = vld [vmem:[%s3 + $0x4a0] sm:$0xff]
  %v2098 = vld [vmem:[%s3 + $0x4a8] sm:$0xff]
  %v2099 = vld [vmem:[%s3 + $0x4b0] sm:$0xff]
  %v2100 = vld [vmem:[%s3 + $0x4b8] sm:$0xff]
  %v2101 = vld [vmem:[%s3 + $0x4c0] sm:$0xff]
  %v2102 = vld [vmem:[%s3 + $0x4c8] sm:$0xff]
  %v2103 = vld [vmem:[%s3 + $0x4d0] sm:$0xff]
  %v2104 = vld [vmem:[%s3 + $0x4d8] sm:$0xff]
  %v2105 = vld [vmem:[%s3 + $0x4e0] sm:$0xff]
  %v2106 = vld [vmem:[%s3 + $0x4e8] sm:$0xff]
  %v2107 = vld [vmem:[%s3 + $0x4f0] sm:$0xff]
  %v2108 = vld [vmem:[%s3 + $0x4f8] sm:$0xff]
  %v2109 = vpack.c.b16 %v1879, %v1869
  %v2110 = vpack.c.b16 %v1880, %v1870
  %v2111 = vpack.c.b16 %v1881, %v1871
  %v2112 = vpack.c.b16 %v1882, %v1872
  %v2113 = vpack.c.b16 %v1883, %v1873
  %v2114 = vpack.c.b16 %v1884, %v1874
  %v2115 = vpack.c.b16 %v1885, %v1875
  %v2116 = vpack.c.b16 %v1886, %v1876
  %v2117 = vpack.c.b16 %v1887, %v1877
  %v2118 = vpack.c.b16 %v1888, %v1878
  %v2119 = vpack.c.b16 %v1899, %v1889
  %v2120 = vpack.c.b16 %v1900, %v1890
  %v2121 = vpack.c.b16 %v1901, %v1891
  %v2122 = vpack.c.b16 %v1902, %v1892
  %v2123 = vpack.c.b16 %v1903, %v1893
  %v2124 = vpack.c.b16 %v1904, %v1894
  %v2125 = vpack.c.b16 %v1905, %v1895
  %v2126 = vpack.c.b16 %v1906, %v1896
  %v2127 = vpack.c.b16 %v1907, %v1897
  %v2128 = vpack.c.b16 %v1908, %v1898
  %v2129 = vpack.c.b16 %v1919, %v1909
  %v2130 = vpack.c.b16 %v1920, %v1910
  %v2131 = vpack.c.b16 %v1921, %v1911
  %v2132 = vpack.c.b16 %v1922, %v1912
  %v2133 = vpack.c.b16 %v1923, %v1913
  %v2134 = vpack.c.b16 %v1924, %v1914
  %v2135 = vpack.c.b16 %v1925, %v1915
  %v2136 = vpack.c.b16 %v1926, %v1916
  %v2137 = vpack.c.b16 %v1927, %v1917
  %v2138 = vpack.c.b16 %v1928, %v1918
  %v2139 = vpack.c.b16 %v1939, %v1929
  %v2140 = vpack.c.b16 %v1940, %v1930
  %v2141 = vpack.c.b16 %v1941, %v1931
  %v2142 = vpack.c.b16 %v1942, %v1932
  %v2143 = vpack.c.b16 %v1943, %v1933
  %v2144 = vpack.c.b16 %v1944, %v1934
  %v2145 = vpack.c.b16 %v1945, %v1935
  %v2146 = vpack.c.b16 %v1946, %v1936
  %v2147 = vpack.c.b16 %v1947, %v1937
  %v2148 = vpack.c.b16 %v1948, %v1938
  %v2349 = vunpack.c.l.b16 %v1949
  %v2350 = vunpack.c.h.b16 %v1949
  %v2351 = vunpack.c.l.b16 %v1950
  %v2352 = vunpack.c.h.b16 %v1950
  %v2353 = vunpack.c.l.b16 %v1951
  %v2354 = vunpack.c.h.b16 %v1951
  %v2355 = vunpack.c.l.b16 %v1952
  %v2356 = vunpack.c.h.b16 %v1952
  %v2357 = vunpack.c.l.b16 %v1953
  %v2358 = vunpack.c.h.b16 %v1953
  %v2359 = vunpack.c.l.b16 %v1954
  %v2360 = vunpack.c.h.b16 %v1954
  %v2361 = vunpack.c.l.b16 %v1955
  %v2362 = vunpack.c.h.b16 %v1955
  %v2363 = vunpack.c.l.b16 %v1956
  %v2364 = vunpack.c.h.b16 %v1956
  %v2365 = vunpack.c.l.b16 %v1957
  %v2366 = vunpack.c.h.b16 %v1957
  %v2367 = vunpack.c.l.b16 %v1958
  %v2368 = vunpack.c.h.b16 %v1958
  %v2369 = vunpack.c.l.b16 %v1959
  %v2370 = vunpack.c.h.b16 %v1959
  %v2371 = vunpack.c.l.b16 %v1960
  %v2372 = vunpack.c.h.b16 %v1960
  %v2373 = vunpack.c.l.b16 %v1961
  %v2374 = vunpack.c.h.b16 %v1961
  %v2375 = vunpack.c.l.b16 %v1962
  %v2376 = vunpack.c.h.b16 %v1962
  %v2377 = vunpack.c.l.b16 %v1963
  %v2378 = vunpack.c.h.b16 %v1963
  %v2379 = vunpack.c.l.b16 %v1964
  %v2380 = vunpack.c.h.b16 %v1964
  %v2381 = vunpack.c.l.b16 %v1965
  %v2382 = vunpack.c.h.b16 %v1965
  %v2383 = vunpack.c.l.b16 %v1966
  %v2384 = vunpack.c.h.b16 %v1966
  %v2385 = vunpack.c.l.b16 %v1967
  %v2386 = vunpack.c.h.b16 %v1967
  %v2387 = vunpack.c.l.b16 %v1968
  %v2388 = vunpack.c.h.b16 %v1968
  %v2389 = vunpack.c.l.b16 %v1969
  %v2390 = vunpack.c.h.b16 %v1969
  %v2391 = vunpack.c.l.b16 %v1970
  %v2392 = vunpack.c.h.b16 %v1970
  %v2393 = vunpack.c.l.b16 %v1971
  %v2394 = vunpack.c.h.b16 %v1971
  %v2395 = vunpack.c.l.b16 %v1972
  %v2396 = vunpack.c.h.b16 %v1972
  %v2397 = vunpack.c.l.b16 %v1973
  %v2398 = vunpack.c.h.b16 %v1973
  %v2399 = vunpack.c.l.b16 %v1974
  %v2400 = vunpack.c.h.b16 %v1974
  %v2401 = vunpack.c.l.b16 %v1975
  %v2402 = vunpack.c.h.b16 %v1975
  %v2403 = vunpack.c.l.b16 %v1976
  %v2404 = vunpack.c.h.b16 %v1976
  %v2405 = vunpack.c.l.b16 %v1977
  %v2406 = vunpack.c.h.b16 %v1977
  %v2407 = vunpack.c.l.b16 %v1978
  %v2408 = vunpack.c.h.b16 %v1978
  %v2409 = vunpack.c.l.b16 %v1979
  %v2410 = vunpack.c.h.b16 %v1979
  %v2411 = vunpack.c.l.b16 %v1980
  %v2412 = vunpack.c.h.b16 %v1980
  %v2413 = vunpack.c.l.b16 %v1981
  %v2414 = vunpack.c.h.b16 %v1981
  %v2415 = vunpack.c.l.b16 %v1982
  %v2416 = vunpack.c.h.b16 %v1982
  %v2417 = vunpack.c.l.b16 %v1983
  %v2418 = vunpack.c.h.b16 %v1983
  %v2419 = vunpack.c.l.b16 %v1984
  %v2420 = vunpack.c.h.b16 %v1984
  %v2421 = vunpack.c.l.b16 %v1985
  %v2422 = vunpack.c.h.b16 %v1985
  %v2423 = vunpack.c.l.b16 %v1986
  %v2424 = vunpack.c.h.b16 %v1986
  %v2425 = vunpack.c.l.b16 %v1987
  %v2426 = vunpack.c.h.b16 %v1987
  %v2427 = vunpack.c.l.b16 %v1988
  %v2428 = vunpack.c.h.b16 %v1988
  %v2429 = vunpack.c.l.b16 %v1989
  %v2430 = vunpack.c.h.b16 %v1989
  %v2431 = vunpack.c.l.b16 %v1990
  %v2432 = vunpack.c.h.b16 %v1990
  %v2433 = vunpack.c.l.b16 %v1991
  %v2434 = vunpack.c.h.b16 %v1991
  %v2435 = vunpack.c.l.b16 %v1992
  %v2436 = vunpack.c.h.b16 %v1992
  %v2437 = vunpack.c.l.b16 %v1993
  %v2438 = vunpack.c.h.b16 %v1993
  %v2439 = vunpack.c.l.b16 %v1994
  %v2440 = vunpack.c.h.b16 %v1994
  %v2441 = vunpack.c.l.b16 %v1995
  %v2442 = vunpack.c.h.b16 %v1995
  %v2443 = vunpack.c.l.b16 %v1996
  %v2444 = vunpack.c.h.b16 %v1996
  %v2445 = vunpack.c.l.b16 %v1997
  %v2446 = vunpack.c.h.b16 %v1997
  %v2447 = vunpack.c.l.b16 %v1998
  %v2448 = vunpack.c.h.b16 %v1998
  %v2449 = vunpack.c.l.b16 %v1999
  %v2450 = vunpack.c.h.b16 %v1999
  %v2451 = vunpack.c.l.b16 %v2000
  %v2452 = vunpack.c.h.b16 %v2000
  %v2453 = vunpack.c.l.b16 %v2001
  %v2454 = vunpack.c.h.b16 %v2001
  %v2455 = vunpack.c.l.b16 %v2002
  %v2456 = vunpack.c.h.b16 %v2002
  %v2457 = vunpack.c.l.b16 %v2003
  %v2458 = vunpack.c.h.b16 %v2003
  %v2459 = vunpack.c.l.b16 %v2004
  %v2460 = vunpack.c.h.b16 %v2004
  %v2461 = vunpack.c.l.b16 %v2005
  %v2462 = vunpack.c.h.b16 %v2005
  %v2463 = vunpack.c.l.b16 %v2006
  %v2464 = vunpack.c.h.b16 %v2006
  %v2465 = vunpack.c.l.b16 %v2007
  %v2466 = vunpack.c.h.b16 %v2007
  %v2467 = vunpack.c.l.b16 %v2008
  %v2468 = vunpack.c.h.b16 %v2008
  %v2469 = vunpack.c.l.b16 %v2009
  %v2470 = vunpack.c.h.b16 %v2009
  %v2471 = vunpack.c.l.b16 %v2010
  %v2472 = vunpack.c.h.b16 %v2010
  %v2473 = vunpack.c.l.b16 %v2011
  %v2474 = vunpack.c.h.b16 %v2011
  %v2475 = vunpack.c.l.b16 %v2012
  %v2476 = vunpack.c.h.b16 %v2012
  %v2477 = vunpack.c.l.b16 %v2013
  %v2478 = vunpack.c.h.b16 %v2013
  %v2479 = vunpack.c.l.b16 %v2014
  %v2480 = vunpack.c.h.b16 %v2014
  %v2481 = vunpack.c.l.b16 %v2015
  %v2482 = vunpack.c.h.b16 %v2015
  %v2483 = vunpack.c.l.b16 %v2016
  %v2484 = vunpack.c.h.b16 %v2016
  %v2485 = vunpack.c.l.b16 %v2017
  %v2486 = vunpack.c.h.b16 %v2017
  %v2487 = vunpack.c.l.b16 %v2018
  %v2488 = vunpack.c.h.b16 %v2018
  %v2489 = vunpack.c.l.b16 %v2019
  %v2490 = vunpack.c.h.b16 %v2019
  %v2491 = vunpack.c.l.b16 %v2020
  %v2492 = vunpack.c.h.b16 %v2020
  %v2493 = vunpack.c.l.b16 %v2021
  %v2494 = vunpack.c.h.b16 %v2021
  %v2495 = vunpack.c.l.b16 %v2022
  %v2496 = vunpack.c.h.b16 %v2022
  %v2497 = vunpack.c.l.b16 %v2023
  %v2498 = vunpack.c.h.b16 %v2023
  %v2499 = vunpack.c.l.b16 %v2024
  %v2500 = vunpack.c.h.b16 %v2024
  %v2501 = vunpack.c.l.b16 %v2025
  %v2502 = vunpack.c.h.b16 %v2025
  %v2503 = vunpack.c.l.b16 %v2026
  %v2504 = vunpack.c.h.b16 %v2026
  %v2505 = vunpack.c.l.b16 %v2027
  %v2506 = vunpack.c.h.b16 %v2027
  %v2507 = vunpack.c.l.b16 %v2028
  %v2508 = vunpack.c.h.b16 %v2028
  %v2509 = vunpack.c.l.b16 %v2029
  %v2510 = vunpack.c.h.b16 %v2029
  %v2511 = vunpack.c.l.b16 %v2030
  %v2512 = vunpack.c.h.b16 %v2030
  %v2513 = vunpack.c.l.b16 %v2031
  %v2514 = vunpack.c.h.b16 %v2031
  %v2515 = vunpack.c.l.b16 %v2032
  %v2516 = vunpack.c.h.b16 %v2032
  %v2517 = vunpack.c.l.b16 %v2033
  %v2518 = vunpack.c.h.b16 %v2033
  %v2519 = vunpack.c.l.b16 %v2034
  %v2520 = vunpack.c.h.b16 %v2034
  %v2521 = vunpack.c.l.b16 %v2035
  %v2522 = vunpack.c.h.b16 %v2035
  %v2523 = vunpack.c.l.b16 %v2036
  %v2524 = vunpack.c.h.b16 %v2036
  %v2525 = vunpack.c.l.b16 %v2037
  %v2526 = vunpack.c.h.b16 %v2037
  %v2527 = vunpack.c.l.b16 %v2038
  %v2528 = vunpack.c.h.b16 %v2038
  %v2529 = vunpack.c.l.b16 %v2039
  %v2530 = vunpack.c.h.b16 %v2039
  %v2531 = vunpack.c.l.b16 %v2040
  %v2532 = vunpack.c.h.b16 %v2040
  %v2533 = vunpack.c.l.b16 %v2041
  %v2534 = vunpack.c.h.b16 %v2041
  %v2535 = vunpack.c.l.b16 %v2042
  %v2536 = vunpack.c.h.b16 %v2042
  %v2537 = vunpack.c.l.b16 %v2043
  %v2538 = vunpack.c.h.b16 %v2043
  %v2539 = vunpack.c.l.b16 %v2044
  %v2540 = vunpack.c.h.b16 %v2044
  %v2541 = vunpack.c.l.b16 %v2045
  %v2542 = vunpack.c.h.b16 %v2045
  %v2543 = vunpack.c.l.b16 %v2046
  %v2544 = vunpack.c.h.b16 %v2046
  %v2545 = vunpack.c.l.b16 %v2047
  %v2546 = vunpack.c.h.b16 %v2047
  %v2547 = vunpack.c.l.b16 %v2048
  %v2548 = vunpack.c.h.b16 %v2048
  %v2549 = vunpack.c.l.b16 %v2049
  %v2550 = vunpack.c.h.b16 %v2049
  %v2551 = vunpack.c.l.b16 %v2050
  %v2552 = vunpack.c.h.b16 %v2050
  %v2553 = vunpack.c.l.b16 %v2051
  %v2554 = vunpack.c.h.b16 %v2051
  %v2555 = vunpack.c.l.b16 %v2052
  %v2556 = vunpack.c.h.b16 %v2052
  %v2557 = vunpack.c.l.b16 %v2053
  %v2558 = vunpack.c.h.b16 %v2053
  %v2559 = vunpack.c.l.b16 %v2054
  %v2560 = vunpack.c.h.b16 %v2054
  %v2561 = vunpack.c.l.b16 %v2055
  %v2562 = vunpack.c.h.b16 %v2055
  %v2563 = vunpack.c.l.b16 %v2056
  %v2564 = vunpack.c.h.b16 %v2056
  %v2565 = vunpack.c.l.b16 %v2057
  %v2566 = vunpack.c.h.b16 %v2057
  %v2567 = vunpack.c.l.b16 %v2058
  %v2568 = vunpack.c.h.b16 %v2058
  %v2569 = vunpack.c.l.b16 %v2059
  %v2570 = vunpack.c.h.b16 %v2059
  %v2571 = vunpack.c.l.b16 %v2060
  %v2572 = vunpack.c.h.b16 %v2060
  %v2573 = vunpack.c.l.b16 %v2061
  %v2574 = vunpack.c.h.b16 %v2061
  %v2575 = vunpack.c.l.b16 %v2062
  %v2576 = vunpack.c.h.b16 %v2062
  %v2577 = vunpack.c.l.b16 %v2063
  %v2578 = vunpack.c.h.b16 %v2063
  %v2579 = vunpack.c.l.b16 %v2064
  %v2580 = vunpack.c.h.b16 %v2064
  %v2581 = vunpack.c.l.b16 %v2065
  %v2582 = vunpack.c.h.b16 %v2065
  %v2583 = vunpack.c.l.b16 %v2066
  %v2584 = vunpack.c.h.b16 %v2066
  %v2585 = vunpack.c.l.b16 %v2067
  %v2586 = vunpack.c.h.b16 %v2067
  %v2587 = vunpack.c.l.b16 %v2068
  %v2588 = vunpack.c.h.b16 %v2068
  %v2589 = vunpack.c.l.b16 %v2069
  %v2590 = vunpack.c.h.b16 %v2069
  %v2591 = vunpack.c.l.b16 %v2070
  %v2592 = vunpack.c.h.b16 %v2070
  %v2593 = vunpack.c.l.b16 %v2071
  %v2594 = vunpack.c.h.b16 %v2071
  %v2595 = vunpack.c.l.b16 %v2072
  %v2596 = vunpack.c.h.b16 %v2072
  %v2597 = vunpack.c.l.b16 %v2073
  %v2598 = vunpack.c.h.b16 %v2073
  %v2599 = vunpack.c.l.b16 %v2074
  %v2600 = vunpack.c.h.b16 %v2074
  %v2601 = vunpack.c.l.b16 %v2075
  %v2602 = vunpack.c.h.b16 %v2075
  %v2603 = vunpack.c.l.b16 %v2076
  %v2604 = vunpack.c.h.b16 %v2076
  %v2605 = vunpack.c.l.b16 %v2077
  %v2606 = vunpack.c.h.b16 %v2077
  %v2607 = vunpack.c.l.b16 %v2078
  %v2608 = vunpack.c.h.b16 %v2078
  %v2609 = vunpack.c.l.b16 %v2079
  %v2610 = vunpack.c.h.b16 %v2079
  %v2611 = vunpack.c.l.b16 %v2080
  %v2612 = vunpack.c.h.b16 %v2080
  %v2613 = vunpack.c.l.b16 %v2081
  %v2614 = vunpack.c.h.b16 %v2081
  %v2615 = vunpack.c.l.b16 %v2082
  %v2616 = vunpack.c.h.b16 %v2082
  %v2617 = vunpack.c.l.b16 %v2083
  %v2618 = vunpack.c.h.b16 %v2083
  %v2619 = vunpack.c.l.b16 %v2084
  %v2620 = vunpack.c.h.b16 %v2084
  %v2621 = vunpack.c.l.b16 %v2085
  %v2622 = vunpack.c.h.b16 %v2085
  %v2623 = vunpack.c.l.b16 %v2086
  %v2624 = vunpack.c.h.b16 %v2086
  %v2625 = vunpack.c.l.b16 %v2087
  %v2626 = vunpack.c.h.b16 %v2087
  %v2627 = vunpack.c.l.b16 %v2088
  %v2628 = vunpack.c.h.b16 %v2088
  %v2629 = vunpack.c.l.b16 %v2089
  %v2630 = vunpack.c.h.b16 %v2089
  %v2631 = vunpack.c.l.b16 %v2090
  %v2632 = vunpack.c.h.b16 %v2090
  %v2633 = vunpack.c.l.b16 %v2091
  %v2634 = vunpack.c.h.b16 %v2091
  %v2635 = vunpack.c.l.b16 %v2092
  %v2636 = vunpack.c.h.b16 %v2092
  %v2637 = vunpack.c.l.b16 %v2093
  %v2638 = vunpack.c.h.b16 %v2093
  %v2639 = vunpack.c.l.b16 %v2094
  %v2640 = vunpack.c.h.b16 %v2094
  %v2641 = vunpack.c.l.b16 %v2095
  %v2642 = vunpack.c.h.b16 %v2095
  %v2643 = vunpack.c.l.b16 %v2096
  %v2644 = vunpack.c.h.b16 %v2096
  %v2645 = vunpack.c.l.b16 %v2097
  %v2646 = vunpack.c.h.b16 %v2097
  %v2647 = vunpack.c.l.b16 %v2098
  %v2648 = vunpack.c.h.b16 %v2098
  %v2649 = vunpack.c.l.b16 %v2099
  %v2650 = vunpack.c.h.b16 %v2099
  %v2651 = vunpack.c.l.b16 %v2100
  %v2652 = vunpack.c.h.b16 %v2100
  %v2653 = vunpack.c.l.b16 %v2101
  %v2654 = vunpack.c.h.b16 %v2101
  %v2655 = vunpack.c.l.b16 %v2102
  %v2656 = vunpack.c.h.b16 %v2102
  %v2657 = vunpack.c.l.b16 %v2103
  %v2658 = vunpack.c.h.b16 %v2103
  %v2659 = vunpack.c.l.b16 %v2104
  %v2660 = vunpack.c.h.b16 %v2104
  %v2661 = vunpack.c.l.b16 %v2105
  %v2662 = vunpack.c.h.b16 %v2105
  %v2663 = vunpack.c.l.b16 %v2106
  %v2664 = vunpack.c.h.b16 %v2106
  %v2665 = vunpack.c.l.b16 %v2107
  %v2666 = vunpack.c.h.b16 %v2107
  %v2667 = vunpack.c.l.b16 %v2108
  %v2668 = vunpack.c.h.b16 %v2108
  %v2669 = vpack.c.b16 %v2351, %v2349
  %v2670 = vpack.c.b16 %v2352, %v2350
  %v2671 = vpack.c.b16 %v2355, %v2353
  %v2672 = vpack.c.b16 %v2356, %v2354
  %v2673 = vpack.c.b16 %v2359, %v2357
  %v2674 = vpack.c.b16 %v2360, %v2358
  %v2675 = vpack.c.b16 %v2363, %v2361
  %v2676 = vpack.c.b16 %v2364, %v2362
  %v2677 = vpack.c.b16 %v2367, %v2365
  %v2678 = vpack.c.b16 %v2368, %v2366
  %v2679 = vpack.c.b16 %v2371, %v2369
  %v2680 = vpack.c.b16 %v2372, %v2370
  %v2681 = vpack.c.b16 %v2375, %v2373
  %v2682 = vpack.c.b16 %v2376, %v2374
  %v2683 = vpack.c.b16 %v2379, %v2377
  %v2684 = vpack.c.b16 %v2380, %v2378
  %v2685 = vpack.c.b16 %v2383, %v2381
  %v2686 = vpack.c.b16 %v2384, %v2382
  %v2687 = vpack.c.b16 %v2387, %v2385
  %v2688 = vpack.c.b16 %v2388, %v2386
  %v2689 = vpack.c.b16 %v2391, %v2389
  %v2690 = vpack.c.b16 %v2392, %v2390
  %v2691 = vpack.c.b16 %v2395, %v2393
  %v2692 = vpack.c.b16 %v2396, %v2394
  %v2693 = vpack.c.b16 %v2399, %v2397
  %v2694 = vpack.c.b16 %v2400, %v2398
  %v2695 = vpack.c.b16 %v2403, %v2401
  %v2696 = vpack.c.b16 %v2404, %v2402
  %v2697 = vpack.c.b16 %v2407, %v2405
  %v2698 = vpack.c.b16 %v2408, %v2406
  %v2699 = vpack.c.b16 %v2411, %v2409
  %v2700 = vpack.c.b16 %v2412, %v2410
  %v2701 = vpack.c.b16 %v2415, %v2413
  %v2702 = vpack.c.b16 %v2416, %v2414
  %v2703 = vpack.c.b16 %v2419, %v2417
  %v2704 = vpack.c.b16 %v2420, %v2418
  %v2705 = vpack.c.b16 %v2423, %v2421
  %v2706 = vpack.c.b16 %v2424, %v2422
  %v2707 = vpack.c.b16 %v2427, %v2425
  %v2708 = vpack.c.b16 %v2428, %v2426
  %v2709 = vpack.c.b16 %v2431, %v2429
  %v2710 = vpack.c.b16 %v2432, %v2430
  %v2711 = vpack.c.b16 %v2435, %v2433
  %v2712 = vpack.c.b16 %v2436, %v2434
  %v2713 = vpack.c.b16 %v2439, %v2437
  %v2714 = vpack.c.b16 %v2440, %v2438
  %v2715 = vpack.c.b16 %v2443, %v2441
  %v2716 = vpack.c.b16 %v2444, %v2442
  %v2717 = vpack.c.b16 %v2447, %v2445
  %v2718 = vpack.c.b16 %v2448, %v2446
  %v2719 = vpack.c.b16 %v2451, %v2449
  %v2720 = vpack.c.b16 %v2452, %v2450
  %v2721 = vpack.c.b16 %v2455, %v2453
  %v2722 = vpack.c.b16 %v2456, %v2454
  %v2723 = vpack.c.b16 %v2459, %v2457
  %v2724 = vpack.c.b16 %v2460, %v2458
  %v2725 = vpack.c.b16 %v2463, %v2461
  %v2726 = vpack.c.b16 %v2464, %v2462
  %v2727 = vpack.c.b16 %v2467, %v2465
  %v2728 = vpack.c.b16 %v2468, %v2466
  %v2729 = vpack.c.b16 %v2471, %v2469
  %v2730 = vpack.c.b16 %v2472, %v2470
  %v2731 = vpack.c.b16 %v2475, %v2473
  %v2732 = vpack.c.b16 %v2476, %v2474
  %v2733 = vpack.c.b16 %v2479, %v2477
  %v2734 = vpack.c.b16 %v2480, %v2478
  %v2735 = vpack.c.b16 %v2483, %v2481
  %v2736 = vpack.c.b16 %v2484, %v2482
  %v2737 = vpack.c.b16 %v2487, %v2485
  %v2738 = vpack.c.b16 %v2488, %v2486
  %v2739 = vpack.c.b16 %v2491, %v2489
  %v2740 = vpack.c.b16 %v2492, %v2490
  %v2741 = vpack.c.b16 %v2495, %v2493
  %v2742 = vpack.c.b16 %v2496, %v2494
  %v2743 = vpack.c.b16 %v2499, %v2497
  %v2744 = vpack.c.b16 %v2500, %v2498
  %v2745 = vpack.c.b16 %v2503, %v2501
  %v2746 = vpack.c.b16 %v2504, %v2502
  %v2747 = vpack.c.b16 %v2507, %v2505
  %v2748 = vpack.c.b16 %v2508, %v2506
  %v2749 = vpack.c.b16 %v2511, %v2509
  %v2750 = vpack.c.b16 %v2512, %v2510
  %v2751 = vpack.c.b16 %v2515, %v2513
  %v2752 = vpack.c.b16 %v2516, %v2514
  %v2753 = vpack.c.b16 %v2519, %v2517
  %v2754 = vpack.c.b16 %v2520, %v2518
  %v2755 = vpack.c.b16 %v2523, %v2521
  %v2756 = vpack.c.b16 %v2524, %v2522
  %v2757 = vpack.c.b16 %v2527, %v2525
  %v2758 = vpack.c.b16 %v2528, %v2526
  %v2759 = vpack.c.b16 %v2531, %v2529
  %v2760 = vpack.c.b16 %v2532, %v2530
  %v2761 = vpack.c.b16 %v2535, %v2533
  %v2762 = vpack.c.b16 %v2536, %v2534
  %v2763 = vpack.c.b16 %v2539, %v2537
  %v2764 = vpack.c.b16 %v2540, %v2538
  %v2765 = vpack.c.b16 %v2543, %v2541
  %v2766 = vpack.c.b16 %v2544, %v2542
  %v2767 = vpack.c.b16 %v2547, %v2545
  %v2768 = vpack.c.b16 %v2548, %v2546
  %v2769 = vpack.c.b16 %v2551, %v2549
  %v2770 = vpack.c.b16 %v2552, %v2550
  %v2771 = vpack.c.b16 %v2555, %v2553
  %v2772 = vpack.c.b16 %v2556, %v2554
  %v2773 = vpack.c.b16 %v2559, %v2557
  %v2774 = vpack.c.b16 %v2560, %v2558
  %v2775 = vpack.c.b16 %v2563, %v2561
  %v2776 = vpack.c.b16 %v2564, %v2562
  %v2777 = vpack.c.b16 %v2567, %v2565
  %v2778 = vpack.c.b16 %v2568, %v2566
  %v2779 = vpack.c.b16 %v2571, %v2569
  %v2780 = vpack.c.b16 %v2572, %v2570
  %v2781 = vpack.c.b16 %v2575, %v2573
  %v2782 = vpack.c.b16 %v2576, %v2574
  %v2783 = vpack.c.b16 %v2579, %v2577
  %v2784 = vpack.c.b16 %v2580, %v2578
  %v2785 = vpack.c.b16 %v2583, %v2581
  %v2786 = vpack.c.b16 %v2584, %v2582
  %v2787 = vpack.c.b16 %v2587, %v2585
  %v2788 = vpack.c.b16 %v2588, %v2586
  %v2789 = vpack.c.b16 %v2591, %v2589
  %v2790 = vpack.c.b16 %v2592, %v2590
  %v2791 = vpack.c.b16 %v2595, %v2593
  %v2792 = vpack.c.b16 %v2596, %v2594
  %v2793 = vpack.c.b16 %v2599, %v2597
  %v2794 = vpack.c.b16 %v2600, %v2598
  %v2795 = vpack.c.b16 %v2603, %v2601
  %v2796 = vpack.c.b16 %v2604, %v2602
  %v2797 = vpack.c.b16 %v2607, %v2605
  %v2798 = vpack.c.b16 %v2608, %v2606
  %v2799 = vpack.c.b16 %v2611, %v2609
  %v2800 = vpack.c.b16 %v2612, %v2610
  %v2801 = vpack.c.b16 %v2615, %v2613
  %v2802 = vpack.c.b16 %v2616, %v2614
  %v2803 = vpack.c.b16 %v2619, %v2617
  %v2804 = vpack.c.b16 %v2620, %v2618
  %v2805 = vpack.c.b16 %v2623, %v2621
  %v2806 = vpack.c.b16 %v2624, %v2622
  %v2807 = vpack.c.b16 %v2627, %v2625
  %v2808 = vpack.c.b16 %v2628, %v2626
  %v2809 = vpack.c.b16 %v2631, %v2629
  %v2810 = vpack.c.b16 %v2632, %v2630
  %v2811 = vpack.c.b16 %v2635, %v2633
  %v2812 = vpack.c.b16 %v2636, %v2634
  %v2813 = vpack.c.b16 %v2639, %v2637
  %v2814 = vpack.c.b16 %v2640, %v2638
  %v2815 = vpack.c.b16 %v2643, %v2641
  %v2816 = vpack.c.b16 %v2644, %v2642
  %v2817 = vpack.c.b16 %v2647, %v2645
  %v2818 = vpack.c.b16 %v2648, %v2646
  %v2819 = vpack.c.b16 %v2651, %v2649
  %v2820 = vpack.c.b16 %v2652, %v2650
  %v2821 = vpack.c.b16 %v2655, %v2653
  %v2822 = vpack.c.b16 %v2656, %v2654
  %v2823 = vpack.c.b16 %v2659, %v2657
  %v2824 = vpack.c.b16 %v2660, %v2658
  %v2825 = vpack.c.b16 %v2663, %v2661
  %v2826 = vpack.c.b16 %v2664, %v2662
  %v2827 = vpack.c.b16 %v2667, %v2665
  %v2828 = vpack.c.b16 %v2668, %v2666
  %2989 = vmatprep.subr.bf16.mxu0 %v2684
  %2990 = vmatpush1.bf16.msra.mxu0 %v2683
  %2991 = vmatprep.subr.bf16.mxu0 %v2682
  %2992 = vmatpush1.bf16.msra.mxu0 %v2681
  %2993 = vmatprep.subr.bf16.mxu0 %v2680
  %2994 = vmatpush1.bf16.msra.mxu0 %v2679
  %2995 = vmatprep.subr.bf16.mxu0 %v2678
  %2996 = vmatpush1.bf16.msra.mxu0 %v2677
  %2997 = vmatprep.subr.bf16.mxu0 %v2676
  %2998 = vmatpush1.bf16.msra.mxu0 %v2675
  %2999 = vmatprep.subr.bf16.mxu0 %v2674
  %3000 = vmatpush1.bf16.msra.mxu0 %v2673
  %3001 = vmatprep.subr.bf16.mxu0 %v2672
  %3002 = vmatpush1.bf16.msra.mxu0 %v2671
  %3003 = vmatprep.subr.bf16.mxu0 %v2670
  %3004 = vmatpush1.bf16.msra.mxu0 %v2669
  %3005 = vmatprep.subr.bf16.mxu0 %v2700
  %3006 = vmatpush2.bf16.msra.mxu0 %v2699
  %3007 = vmatprep.subr.bf16.mxu0 %v2698
  %3008 = vmatpush2.bf16.msra.mxu0 %v2697
  %3009 = vmatprep.subr.bf16.mxu0 %v2696
  %3010 = vmatpush2.bf16.msra.mxu0 %v2695
  %3011 = vmatprep.subr.bf16.mxu0 %v2694
  %3012 = vmatpush2.bf16.msra.mxu0 %v2693
  %3013 = vmatprep.subr.bf16.mxu0 %v2692
  %3014 = vmatpush2.bf16.msra.mxu0 %v2691
  %3015 = vmatprep.subr.bf16.mxu0 %v2690
  %3016 = vmatpush2.bf16.msra.mxu0 %v2689
  %3017 = vmatprep.subr.bf16.mxu0 %v2688
  %3018 = vmatpush2.bf16.msra.mxu0 %v2687
  %3019 = vmatprep.subr.bf16.mxu0 %v2686
  %3020 = vmatpush2.bf16.msra.mxu0 %v2685
  %3021 = vmatprep.mubr.bf16.mxu0 %v2110
  %3022 = vmatmul.mubr.bf16.gmra.mxu0 %v2109
  %v3023 = vpop.f32.mrf.mxu0
  %v3024 = vadd.f32 0.0, %v3023
  %v3025 = vpop.f32.mrf.mxu0
  %v3026 = vadd.f32 0.0, %v3025
  %v3027 = vpop.f32.mrf.mxu0
  %v3028 = vadd.f32 0.0, %v3027
  %v3029 = vpop.f32.mrf.mxu0
  %v3030 = vadd.f32 0.0, %v3029
  %3031 = vmatprep.mubr.bf16.mxu0 %v2120
  %3032 = vmatmul.mubr.bf16.gmra.mxu0 %v2119
  %v3033 = vpop.f32.mrf.mxu0
  %v3034 = vadd.f32 0.0, %v3033
  %v3035 = vpop.f32.mrf.mxu0
  %v3036 = vadd.f32 0.0, %v3035
  %v3037 = vpop.f32.mrf.mxu0
  %v3038 = vadd.f32 0.0, %v3037
  %v3039 = vpop.f32.mrf.mxu0
  %v3040 = vadd.f32 0.0, %v3039
  %3041 = vmatprep.mubr.bf16.mxu0 %v2130
  %3042 = vmatmul.mubr.bf16.gmra.mxu0 %v2129
  %v3043 = vpop.f32.mrf.mxu0
  %v3044 = vadd.f32 0.0, %v3043
  %v3045 = vpop.f32.mrf.mxu0
  %v3046 = vadd.f32 0.0, %v3045
  %v3047 = vpop.f32.mrf.mxu0
  %v3048 = vadd.f32 0.0, %v3047
  %v3049 = vpop.f32.mrf.mxu0
  %v3050 = vadd.f32 0.0, %v3049
  %3051 = vmatprep.mubr.bf16.mxu0 %v2140
  %3052 = vmatmul.mubr.bf16.gmra.mxu0 %v2139
  %v3053 = vpop.f32.mrf.mxu0
  %v3054 = vadd.f32 0.0, %v3053
  %v3055 = vpop.f32.mrf.mxu0
  %v3056 = vadd.f32 0.0, %v3055
  %v3057 = vpop.f32.mrf.mxu0
  %v3058 = vadd.f32 0.0, %v3057
  %v3059 = vpop.f32.mrf.mxu0
  %v3060 = vadd.f32 0.0, %v3059
  %3061 = vdwg.mxu0
  %3062 = vmatprep.subr.bf16.mxu0 %v2716
  %3063 = vmatpush1.bf16.msra.mxu0 %v2715
  %3064 = vmatprep.subr.bf16.mxu0 %v2714
  %3065 = vmatpush1.bf16.msra.mxu0 %v2713
  %3066 = vmatprep.subr.bf16.mxu0 %v2712
  %3067 = vmatpush1.bf16.msra.mxu0 %v2711
  %3068 = vmatprep.subr.bf16.mxu0 %v2710
  %3069 = vmatpush1.bf16.msra.mxu0 %v2709
  %3070 = vmatprep.subr.bf16.mxu0 %v2708
  %3071 = vmatpush1.bf16.msra.mxu0 %v2707
  %3072 = vmatprep.subr.bf16.mxu0 %v2706
  %3073 = vmatpush1.bf16.msra.mxu0 %v2705
  %3074 = vmatprep.subr.bf16.mxu0 %v2704
  %3075 = vmatpush1.bf16.msra.mxu0 %v2703
  %3076 = vmatprep.subr.bf16.mxu0 %v2702
  %3077 = vmatpush1.bf16.msra.mxu0 %v2701
  %3078 = vmatprep.subr.bf16.mxu0 %v2732
  %3079 = vmatpush2.bf16.msra.mxu0 %v2731
  %3080 = vmatprep.subr.bf16.mxu0 %v2730
  %3081 = vmatpush2.bf16.msra.mxu0 %v2729
  %3082 = vmatprep.subr.bf16.mxu0 %v2728
  %3083 = vmatpush2.bf16.msra.mxu0 %v2727
  %3084 = vmatprep.subr.bf16.mxu0 %v2726
  %3085 = vmatpush2.bf16.msra.mxu0 %v2725
  %3086 = vmatprep.subr.bf16.mxu0 %v2724
  %3087 = vmatpush2.bf16.msra.mxu0 %v2723
  %3088 = vmatprep.subr.bf16.mxu0 %v2722
  %3089 = vmatpush2.bf16.msra.mxu0 %v2721
  %3090 = vmatprep.subr.bf16.mxu0 %v2720
  %3091 = vmatpush2.bf16.msra.mxu0 %v2719
  %3092 = vmatprep.subr.bf16.mxu0 %v2718
  %3093 = vmatpush2.bf16.msra.mxu0 %v2717
  %3094 = vmatprep.mubr.bf16.mxu0 %v2112
  %3095 = vmatmul.mubr.bf16.gmra.mxu0 %v2111
  %v3096 = vpop.f32.mrf.mxu0
  %v3097 = vadd.f32 %v3024, %v3096
  %v3098 = vpop.f32.mrf.mxu0
  %v3099 = vadd.f32 %v3026, %v3098
  %v3100 = vpop.f32.mrf.mxu0
  %v3101 = vadd.f32 %v3028, %v3100
  %v3102 = vpop.f32.mrf.mxu0
  %v3103 = vadd.f32 %v3030, %v3102
  %3104 = vmatprep.mubr.bf16.mxu0 %v2122
  %3105 = vmatmul.mubr.bf16.gmra.mxu0 %v2121
  %v3106 = vpop.f32.mrf.mxu0
  %v3107 = vadd.f32 %v3034, %v3106
  %v3108 = vpop.f32.mrf.mxu0
  %v3109 = vadd.f32 %v3036, %v3108
  %v3110 = vpop.f32.mrf.mxu0
  %v3111 = vadd.f32 %v3038, %v3110
  %v3112 = vpop.f32.mrf.mxu0
  %v3113 = vadd.f32 %v3040, %v3112
  %3114 = vmatprep.mubr.bf16.mxu0 %v2132
  %3115 = vmatmul.mubr.bf16.gmra.mxu0 %v2131
  %v3116 = vpop.f32.mrf.mxu0
  %v3117 = vadd.f32 %v3044, %v3116
  %v3118 = vpop.f32.mrf.mxu0
  %v3119 = vadd.f32 %v3046, %v3118
  %v3120 = vpop.f32.mrf.mxu0
  %v3121 = vadd.f32 %v3048, %v3120
  %v3122 = vpop.f32.mrf.mxu0
  %v3123 = vadd.f32 %v3050, %v3122
  %3124 = vmatprep.mubr.bf16.mxu0 %v2142
  %3125 = vmatmul.mubr.bf16.gmra.mxu0 %v2141
  %v3126 = vpop.f32.mrf.mxu0
  %v3127 = vadd.f32 %v3054, %v3126
  %v3128 = vpop.f32.mrf.mxu0
  %v3129 = vadd.f32 %v3056, %v3128
  %v3130 = vpop.f32.mrf.mxu0
  %v3131 = vadd.f32 %v3058, %v3130
  %v3132 = vpop.f32.mrf.mxu0
  %v3133 = vadd.f32 %v3060, %v3132
  %3134 = vdwg.mxu0
  %3135 = vmatprep.subr.bf16.mxu0 %v2748
  %3136 = vmatpush1.bf16.msra.mxu0 %v2747
  %3137 = vmatprep.subr.bf16.mxu0 %v2746
  %3138 = vmatpush1.bf16.msra.mxu0 %v2745
  %3139 = vmatprep.subr.bf16.mxu0 %v2744
  %3140 = vmatpush1.bf16.msra.mxu0 %v2743
  %3141 = vmatprep.subr.bf16.mxu0 %v2742
  %3142 = vmatpush1.bf16.msra.mxu0 %v2741
  %3143 = vmatprep.subr.bf16.mxu0 %v2740
  %3144 = vmatpush1.bf16.msra.mxu0 %v2739
  %3145 = vmatprep.subr.bf16.mxu0 %v2738
  %3146 = vmatpush1.bf16.msra.mxu0 %v2737
  %3147 = vmatprep.subr.bf16.mxu0 %v2736
  %3148 = vmatpush1.bf16.msra.mxu0 %v2735
  %3149 = vmatprep.subr.bf16.mxu0 %v2734
  %3150 = vmatpush1.bf16.msra.mxu0 %v2733
  %3151 = vmatprep.subr.bf16.mxu0 %v2764
  %3152 = vmatpush2.bf16.msra.mxu0 %v2763
  %3153 = vmatprep.subr.bf16.mxu0 %v2762
  %3154 = vmatpush2.bf16.msra.mxu0 %v2761
  %3155 = vmatprep.subr.bf16.mxu0 %v2760
  %3156 = vmatpush2.bf16.msra.mxu0 %v2759
  %3157 = vmatprep.subr.bf16.mxu0 %v2758
  %3158 = vmatpush2.bf16.msra.mxu0 %v2757
  %3159 = vmatprep.subr.bf16.mxu0 %v2756
  %3160 = vmatpush2.bf16.msra.mxu0 %v2755
  %3161 = vmatprep.subr.bf16.mxu0 %v2754
  %3162 = vmatpush2.bf16.msra.mxu0 %v2753
  %3163 = vmatprep.subr.bf16.mxu0 %v2752
  %3164 = vmatpush2.bf16.msra.mxu0 %v2751
  %3165 = vmatprep.subr.bf16.mxu0 %v2750
  %3166 = vmatpush2.bf16.msra.mxu0 %v2749
  %3167 = vmatprep.mubr.bf16.mxu0 %v2114
  %3168 = vmatmul.mubr.bf16.gmra.mxu0 %v2113
  %v3169 = vpop.f32.mrf.mxu0
  %v3170 = vadd.f32 %v3097, %v3169
  %v3171 = vpop.f32.mrf.mxu0
  %v3172 = vadd.f32 %v3099, %v3171
  %v3173 = vpop.f32.mrf.mxu0
  %v3174 = vadd.f32 %v3101, %v3173
  %v3175 = vpop.f32.mrf.mxu0
  %v3176 = vadd.f32 %v3103, %v3175
  %3177 = vmatprep.mubr.bf16.mxu0 %v2124
  %3178 = vmatmul.mubr.bf16.gmra.mxu0 %v2123
  %v3179 = vpop.f32.mrf.mxu0
  %v3180 = vadd.f32 %v3107, %v3179
  %v3181 = vpop.f32.mrf.mxu0
  %v3182 = vadd.f32 %v3109, %v3181
  %v3183 = vpop.f32.mrf.mxu0
  %v3184 = vadd.f32 %v3111, %v3183
  %v3185 = vpop.f32.mrf.mxu0
  %v3186 = vadd.f32 %v3113, %v3185
  %3187 = vmatprep.mubr.bf16.mxu0 %v2134
  %3188 = vmatmul.mubr.bf16.gmra.mxu0 %v2133
  %v3189 = vpop.f32.mrf.mxu0
  %v3190 = vadd.f32 %v3117, %v3189
  %v3191 = vpop.f32.mrf.mxu0
  %v3192 = vadd.f32 %v3119, %v3191
  %v3193 = vpop.f32.mrf.mxu0
  %v3194 = vadd.f32 %v3121, %v3193
  %v3195 = vpop.f32.mrf.mxu0
  %v3196 = vadd.f32 %v3123, %v3195
  %3197 = vmatprep.mubr.bf16.mxu0 %v2144
  %3198 = vmatmul.mubr.bf16.gmra.mxu0 %v2143
  %v3199 = vpop.f32.mrf.mxu0
  %v3200 = vadd.f32 %v3127, %v3199
  %v3201 = vpop.f32.mrf.mxu0
  %v3202 = vadd.f32 %v3129, %v3201
  %v3203 = vpop.f32.mrf.mxu0
  %v3204 = vadd.f32 %v3131, %v3203
  %v3205 = vpop.f32.mrf.mxu0
  %v3206 = vadd.f32 %v3133, %v3205
  %3207 = vdwg.mxu0
  %3208 = vmatprep.subr.bf16.mxu0 %v2780
  %3209 = vmatpush1.bf16.msra.mxu0 %v2779
  %3210 = vmatprep.subr.bf16.mxu0 %v2778
  %3211 = vmatpush1.bf16.msra.mxu0 %v2777
  %3212 = vmatprep.subr.bf16.mxu0 %v2776
  %3213 = vmatpush1.bf16.msra.mxu0 %v2775
  %3214 = vmatprep.subr.bf16.mxu0 %v2774
  %3215 = vmatpush1.bf16.msra.mxu0 %v2773
  %3216 = vmatprep.subr.bf16.mxu0 %v2772
  %3217 = vmatpush1.bf16.msra.mxu0 %v2771
  %3218 = vmatprep.subr.bf16.mxu0 %v2770
  %3219 = vmatpush1.bf16.msra.mxu0 %v2769
  %3220 = vmatprep.subr.bf16.mxu0 %v2768
  %3221 = vmatpush1.bf16.msra.mxu0 %v2767
  %3222 = vmatprep.subr.bf16.mxu0 %v2766
  %3223 = vmatpush1.bf16.msra.mxu0 %v2765
  %3224 = vmatprep.subr.bf16.mxu0 %v2796
  %3225 = vmatpush2.bf16.msra.mxu0 %v2795
  %3226 = vmatprep.subr.bf16.mxu0 %v2794
  %3227 = vmatpush2.bf16.msra.mxu0 %v2793
  %3228 = vmatprep.subr.bf16.mxu0 %v2792
  %3229 = vmatpush2.bf16.msra.mxu0 %v2791
  %3230 = vmatprep.subr.bf16.mxu0 %v2790
  %3231 = vmatpush2.bf16.msra.mxu0 %v2789
  %3232 = vmatprep.subr.bf16.mxu0 %v2788
  %3233 = vmatpush2.bf16.msra.mxu0 %v2787
  %3234 = vmatprep.subr.bf16.mxu0 %v2786
  %3235 = vmatpush2.bf16.msra.mxu0 %v2785
  %3236 = vmatprep.subr.bf16.mxu0 %v2784
  %3237 = vmatpush2.bf16.msra.mxu0 %v2783
  %3238 = vmatprep.subr.bf16.mxu0 %v2782
  %3239 = vmatpush2.bf16.msra.mxu0 %v2781
  %3240 = vmatprep.mubr.bf16.mxu0 %v2116
  %3241 = vmatmul.mubr.bf16.gmra.mxu0 %v2115
  %v3242 = vpop.f32.mrf.mxu0
  %v3243 = vadd.f32 %v3170, %v3242
  %v3244 = vpop.f32.mrf.mxu0
  %v3245 = vadd.f32 %v3172, %v3244
  %v3246 = vpop.f32.mrf.mxu0
  %v3247 = vadd.f32 %v3174, %v3246
  %v3248 = vpop.f32.mrf.mxu0
  %v3249 = vadd.f32 %v3176, %v3248
  %3250 = vmatprep.mubr.bf16.mxu0 %v2126
  %3251 = vmatmul.mubr.bf16.gmra.mxu0 %v2125
  %v3252 = vpop.f32.mrf.mxu0
  %v3253 = vadd.f32 %v3180, %v3252
  %v3254 = vpop.f32.mrf.mxu0
  %v3255 = vadd.f32 %v3182, %v3254
  %v3256 = vpop.f32.mrf.mxu0
  %v3257 = vadd.f32 %v3184, %v3256
  %v3258 = vpop.f32.mrf.mxu0
  %v3259 = vadd.f32 %v3186, %v3258
  %3260 = vmatprep.mubr.bf16.mxu0 %v2136
  %3261 = vmatmul.mubr.bf16.gmra.mxu0 %v2135
  %v3262 = vpop.f32.mrf.mxu0
  %v3263 = vadd.f32 %v3190, %v3262
  %v3264 = vpop.f32.mrf.mxu0
  %v3265 = vadd.f32 %v3192, %v3264
  %v3266 = vpop.f32.mrf.mxu0
  %v3267 = vadd.f32 %v3194, %v3266
  %v3268 = vpop.f32.mrf.mxu0
  %v3269 = vadd.f32 %v3196, %v3268
  %3270 = vmatprep.mubr.bf16.mxu0 %v2146
  %3271 = vmatmul.mubr.bf16.gmra.mxu0 %v2145
  %v3272 = vpop.f32.mrf.mxu0
  %v3273 = vadd.f32 %v3200, %v3272
  %v3274 = vpop.f32.mrf.mxu0
  %v3275 = vadd.f32 %v3202, %v3274
  %v3276 = vpop.f32.mrf.mxu0
  %v3277 = vadd.f32 %v3204, %v3276
  %v3278 = vpop.f32.mrf.mxu0
  %v3279 = vadd.f32 %v3206, %v3278
  %3280 = vdwg.mxu0
  %3281 = vmatprep.subr.bf16.mxu0 %v2812
  %3282 = vmatpush1.bf16.msra.mxu0 %v2811
  %3283 = vmatprep.subr.bf16.mxu0 %v2810
  %3284 = vmatpush1.bf16.msra.mxu0 %v2809
  %3285 = vmatprep.subr.bf16.mxu0 %v2808
  %3286 = vmatpush1.bf16.msra.mxu0 %v2807
  %3287 = vmatprep.subr.bf16.mxu0 %v2806
  %3288 = vmatpush1.bf16.msra.mxu0 %v2805
  %3289 = vmatprep.subr.bf16.mxu0 %v2804
  %3290 = vmatpush1.bf16.msra.mxu0 %v2803
  %3291 = vmatprep.subr.bf16.mxu0 %v2802
  %3292 = vmatpush1.bf16.msra.mxu0 %v2801
  %3293 = vmatprep.subr.bf16.mxu0 %v2800
  %3294 = vmatpush1.bf16.msra.mxu0 %v2799
  %3295 = vmatprep.subr.bf16.mxu0 %v2798
  %3296 = vmatpush1.bf16.msra.mxu0 %v2797
  %3297 = vmatprep.subr.bf16.mxu0 %v2828
  %3298 = vmatpush2.bf16.msra.mxu0 %v2827
  %3299 = vmatprep.subr.bf16.mxu0 %v2826
  %3300 = vmatpush2.bf16.msra.mxu0 %v2825
  %3301 = vmatprep.subr.bf16.mxu0 %v2824
  %3302 = vmatpush2.bf16.msra.mxu0 %v2823
  %3303 = vmatprep.subr.bf16.mxu0 %v2822
  %3304 = vmatpush2.bf16.msra.mxu0 %v2821
  %3305 = vmatprep.subr.bf16.mxu0 %v2820
  %3306 = vmatpush2.bf16.msra.mxu0 %v2819
  %3307 = vmatprep.subr.bf16.mxu0 %v2818
  %3308 = vmatpush2.bf16.msra.mxu0 %v2817
  %3309 = vmatprep.subr.bf16.mxu0 %v2816
  %3310 = vmatpush2.bf16.msra.mxu0 %v2815
  %3311 = vmatprep.subr.bf16.mxu0 %v2814
  %3312 = vmatpush2.bf16.msra.mxu0 %v2813
  %3313 = vmatprep.mubr.bf16.mxu0 %v2118
  %3314 = vmatmul.mubr.bf16.gmra.mxu0 %v2117
  %v3315 = vpop.f32.mrf.mxu0
  %v3316 = vadd.f32 %v3243, %v3315
  %v3317 = vpop.f32.mrf.mxu0
  %v3318 = vadd.f32 %v3245, %v3317
  %v3319 = vpop.f32.mrf.mxu0
  %v3320 = vadd.f32 %v3247, %v3319
  %v3321 = vpop.f32.mrf.mxu0
  %v3322 = vadd.f32 %v3249, %v3321
  %3323 = vmatprep.mubr.bf16.mxu0 %v2128
  %3324 = vmatmul.mubr.bf16.gmra.mxu0 %v2127
  %v3325 = vpop.f32.mrf.mxu0
  %v3326 = vadd.f32 %v3253, %v3325
  %v3327 = vpop.f32.mrf.mxu0
  %v3328 = vadd.f32 %v3255, %v3327
  %v3329 = vpop.f32.mrf.mxu0
  %v3330 = vadd.f32 %v3257, %v3329
  %v3331 = vpop.f32.mrf.mxu0
  %v3332 = vadd.f32 %v3259, %v3331
  %3333 = vmatprep.mubr.bf16.mxu0 %v2138
  %3334 = vmatmul.mubr.bf16.gmra.mxu0 %v2137
  %v3335 = vpop.f32.mrf.mxu0
  %v3336 = vadd.f32 %v3263, %v3335
  %v3337 = vpop.f32.mrf.mxu0
  %v3338 = vadd.f32 %v3265, %v3337
  %v3339 = vpop.f32.mrf.mxu0
  %v3340 = vadd.f32 %v3267, %v3339
  %v3341 = vpop.f32.mrf.mxu0
  %v3342 = vadd.f32 %v3269, %v3341
  %3343 = vmatprep.mubr.bf16.mxu0 %v2148
  %3344 = vmatmul.mubr.bf16.gmra.mxu0 %v2147
  %v3345 = vpop.f32.mrf.mxu0
  %v3346 = vadd.f32 %v3273, %v3345
  %v3347 = vpop.f32.mrf.mxu0
  %v3348 = vadd.f32 %v3275, %v3347
  %v3349 = vpop.f32.mrf.mxu0
  %v3350 = vadd.f32 %v3277, %v3349
  %v3351 = vpop.f32.mrf.mxu0
  %v3352 = vadd.f32 %v3279, %v3351
  %3353 = vdwg.mxu0
  %v3354 = vmax.f32 %v3316, %v3318
  %v3355 = vmax.f32 %v3320, %v3322
  %v3356 = vmax.f32 %v3326, %v3328
  %v3357 = vmax.f32 %v3330, %v3332
  %v3358 = vmax.f32 %v3336, %v3338
  %v3359 = vmax.f32 %v3340, %v3342
  %v3360 = vmax.f32 %v3346, %v3348
  %v3361 = vmax.f32 %v3350, %v3352
  %v3370 = vcombine.high %v3354, %v3354
  %v3372 = vunpack.c.l.s4 1983009808
  %v3373 = vunpack.c.0.s8 %v3372
  %v3374 = vlaneseq
  %v3375 = vshrl.u32 %v3374, 7
  %v3376 = vsub.s32 %v3373, %v3375
  %v3377 = vrot.slane %v3354, %v3376
  %v3379 = vunpack.c.l.s4 1983009808
  %v3380 = vunpack.c.0.s8 %v3379
  %v3381 = vlaneseq
  %v3382 = vshrl.u32 %v3381, 7
  %v3383 = vsub.s32 %v3380, %v3382
  %v3384 = vrot.slane %v3370, %v3383
  %v3385 = vcombine.high %v3377, %v3377
  %v3386 = vcombine.high %v3384, %v3384
  %v3387 = vcombine.high %v3355, %v3355
  %v3389 = vunpack.c.l.s4 1983009808
  %v3390 = vunpack.c.0.s8 %v3389
  %v3391 = vlaneseq
  %v3392 = vshrl.u32 %v3391, 7
  %v3393 = vsub.s32 %v3390, %v3392
  %v3394 = vrot.slane %v3355, %v3393
  %v3396 = vunpack.c.l.s4 1983009808
  %v3397 = vunpack.c.0.s8 %v3396
  %v3398 = vlaneseq
  %v3399 = vshrl.u32 %v3398, 7
  %v3400 = vsub.s32 %v3397, %v3399
  %v3401 = vrot.slane %v3387, %v3400
  %v3402 = vcombine.high %v3394, %v3394
  %v3403 = vcombine.high %v3401, %v3401
  %v3404 = vcombine.high %v3356, %v3356
  %v3406 = vunpack.c.l.s4 1983009808
  %v3407 = vunpack.c.0.s8 %v3406
  %v3408 = vlaneseq
  %v3409 = vshrl.u32 %v3408, 7
  %v3410 = vsub.s32 %v3407, %v3409
  %v3411 = vrot.slane %v3356, %v3410
  %v3413 = vunpack.c.l.s4 1983009808
  %v3414 = vunpack.c.0.s8 %v3413
  %v3415 = vlaneseq
  %v3416 = vshrl.u32 %v3415, 7
  %v3417 = vsub.s32 %v3414, %v3416
  %v3418 = vrot.slane %v3404, %v3417
  %v3419 = vcombine.high %v3411, %v3411
  %v3420 = vcombine.high %v3418, %v3418
  %v3421 = vcombine.high %v3357, %v3357
  %v3423 = vunpack.c.l.s4 1983009808
  %v3424 = vunpack.c.0.s8 %v3423
  %v3425 = vlaneseq
  %v3426 = vshrl.u32 %v3425, 7
  %v3427 = vsub.s32 %v3424, %v3426
  %v3428 = vrot.slane %v3357, %v3427
  %v3430 = vunpack.c.l.s4 1983009808
  %v3431 = vunpack.c.0.s8 %v3430
  %v3432 = vlaneseq
  %v3433 = vshrl.u32 %v3432, 7
  %v3434 = vsub.s32 %v3431, %v3433
  %v3435 = vrot.slane %v3421, %v3434
  %v3436 = vcombine.high %v3428, %v3428
  %v3437 = vcombine.high %v3435, %v3435
  %v3438 = vcombine.high %v3358, %v3358
  %v3440 = vunpack.c.l.s4 1983009808
  %v3441 = vunpack.c.0.s8 %v3440
  %v3442 = vlaneseq
  %v3443 = vshrl.u32 %v3442, 7
  %v3444 = vsub.s32 %v3441, %v3443
  %v3445 = vrot.slane %v3358, %v3444
  %v3447 = vunpack.c.l.s4 1983009808
  %v3448 = vunpack.c.0.s8 %v3447
  %v3449 = vlaneseq
  %v3450 = vshrl.u32 %v3449, 7
  %v3451 = vsub.s32 %v3448, %v3450
  %v3452 = vrot.slane %v3438, %v3451
  %v3453 = vcombine.high %v3445, %v3445
  %v3454 = vcombine.high %v3452, %v3452
  %v3455 = vcombine.high %v3359, %v3359
  %v3457 = vunpack.c.l.s4 1983009808
  %v3458 = vunpack.c.0.s8 %v3457
  %v3459 = vlaneseq
  %v3460 = vshrl.u32 %v3459, 7
  %v3461 = vsub.s32 %v3458, %v3460
  %v3462 = vrot.slane %v3359, %v3461
  %v3464 = vunpack.c.l.s4 1983009808
  %v3465 = vunpack.c.0.s8 %v3464
  %v3466 = vlaneseq
  %v3467 = vshrl.u32 %v3466, 7
  %v3468 = vsub.s32 %v3465, %v3467
  %v3469 = vrot.slane %v3455, %v3468
  %v3470 = vcombine.high %v3462, %v3462
  %v3471 = vcombine.high %v3469, %v3469
  %v3472 = vcombine.high %v3360, %v3360
  %v3474 = vunpack.c.l.s4 1983009808
  %v3475 = vunpack.c.0.s8 %v3474
  %v3476 = vlaneseq
  %v3477 = vshrl.u32 %v3476, 7
  %v3478 = vsub.s32 %v3475, %v3477
  %v3479 = vrot.slane %v3360, %v3478
  %v3481 = vunpack.c.l.s4 1983009808
  %v3482 = vunpack.c.0.s8 %v3481
  %v3483 = vlaneseq
  %v3484 = vshrl.u32 %v3483, 7
  %v3485 = vsub.s32 %v3482, %v3484
  %v3486 = vrot.slane %v3472, %v3485
  %v3487 = vcombine.high %v3479, %v3479
  %v3488 = vcombine.high %v3486, %v3486
  %v3489 = vcombine.high %v3361, %v3361
  %v3491 = vunpack.c.l.s4 1983009808
  %v3492 = vunpack.c.0.s8 %v3491
  %v3493 = vlaneseq
  %v3494 = vshrl.u32 %v3493, 7
  %v3495 = vsub.s32 %v3492, %v3494
  %v3496 = vrot.slane %v3361, %v3495
  %v3498 = vunpack.c.l.s4 1983009808
  %v3499 = vunpack.c.0.s8 %v3498
  %v3500 = vlaneseq
  %v3501 = vshrl.u32 %v3500, 7
  %v3502 = vsub.s32 %v3499, %v3501
  %v3503 = vrot.slane %v3489, %v3502
  %v3504 = vcombine.high %v3496, %v3496
  %v3505 = vcombine.high %v3503, %v3503
  %vm3538 = vcmask 1041408
  %v3539 = vsel %vm3538, %v3377, -inf
  %v3540 = vrot.slane %v3539, 4
  %v3541 = vmax.f32 %v3539, %v3540
  %v3542 = vrot.slane %v3541, 2
  %v3543 = vmax.f32 %v3541, %v3542
  %v3544 = vrot.slane %v3543, 1
  %v3545 = vmax.f32 %v3543, %v3544
  %v3546 = vsel %vm3538, %v3385, -inf
  %v3547 = vrot.slane %v3546, 4
  %v3548 = vmax.f32 %v3546, %v3547
  %v3549 = vrot.slane %v3548, 2
  %v3550 = vmax.f32 %v3548, %v3549
  %v3551 = vrot.slane %v3550, 1
  %v3552 = vmax.f32 %v3550, %v3551
  %v3553 = vsel %vm3538, %v3384, -inf
  %v3554 = vrot.slane %v3553, 4
  %v3555 = vmax.f32 %v3553, %v3554
  %v3556 = vrot.slane %v3555, 2
  %v3557 = vmax.f32 %v3555, %v3556
  %v3558 = vrot.slane %v3557, 1
  %v3559 = vmax.f32 %v3557, %v3558
  %v3560 = vsel %vm3538, %v3386, -inf
  %v3561 = vrot.slane %v3560, 4
  %v3562 = vmax.f32 %v3560, %v3561
  %v3563 = vrot.slane %v3562, 2
  %v3564 = vmax.f32 %v3562, %v3563
  %v3565 = vrot.slane %v3564, 1
  %v3566 = vmax.f32 %v3564, %v3565
  %v3567 = vsel %vm3538, %v3394, -inf
  %v3568 = vrot.slane %v3567, 4
  %v3569 = vmax.f32 %v3567, %v3568
  %v3570 = vrot.slane %v3569, 2
  %v3571 = vmax.f32 %v3569, %v3570
  %v3572 = vrot.slane %v3571, 1
  %v3573 = vmax.f32 %v3571, %v3572
  %v3574 = vsel %vm3538, %v3402, -inf
  %v3575 = vrot.slane %v3574, 4
  %v3576 = vmax.f32 %v3574, %v3575
  %v3577 = vrot.slane %v3576, 2
  %v3578 = vmax.f32 %v3576, %v3577
  %v3579 = vrot.slane %v3578, 1
  %v3580 = vmax.f32 %v3578, %v3579
  %v3581 = vsel %vm3538, %v3401, -inf
  %v3582 = vrot.slane %v3581, 4
  %v3583 = vmax.f32 %v3581, %v3582
  %v3584 = vrot.slane %v3583, 2
  %v3585 = vmax.f32 %v3583, %v3584
  %v3586 = vrot.slane %v3585, 1
  %v3587 = vmax.f32 %v3585, %v3586
  %v3588 = vsel %vm3538, %v3403, -inf
  %v3589 = vrot.slane %v3588, 4
  %v3590 = vmax.f32 %v3588, %v3589
  %v3591 = vrot.slane %v3590, 2
  %v3592 = vmax.f32 %v3590, %v3591
  %v3593 = vrot.slane %v3592, 1
  %v3594 = vmax.f32 %v3592, %v3593
  %v3595 = vsel %vm3538, %v3411, -inf
  %v3596 = vrot.slane %v3595, 4
  %v3597 = vmax.f32 %v3595, %v3596
  %v3598 = vrot.slane %v3597, 2
  %v3599 = vmax.f32 %v3597, %v3598
  %v3600 = vrot.slane %v3599, 1
  %v3601 = vmax.f32 %v3599, %v3600
  %v3602 = vsel %vm3538, %v3419, -inf
  %v3603 = vrot.slane %v3602, 4
  %v3604 = vmax.f32 %v3602, %v3603
  %v3605 = vrot.slane %v3604, 2
  %v3606 = vmax.f32 %v3604, %v3605
  %v3607 = vrot.slane %v3606, 1
  %v3608 = vmax.f32 %v3606, %v3607
  %v3609 = vsel %vm3538, %v3418, -inf
  %v3610 = vrot.slane %v3609, 4
  %v3611 = vmax.f32 %v3609, %v3610
  %v3612 = vrot.slane %v3611, 2
  %v3613 = vmax.f32 %v3611, %v3612
  %v3614 = vrot.slane %v3613, 1
  %v3615 = vmax.f32 %v3613, %v3614
  %v3616 = vsel %vm3538, %v3420, -inf
  %v3617 = vrot.slane %v3616, 4
  %v3618 = vmax.f32 %v3616, %v3617
  %v3619 = vrot.slane %v3618, 2
  %v3620 = vmax.f32 %v3618, %v3619
  %v3621 = vrot.slane %v3620, 1
  %v3622 = vmax.f32 %v3620, %v3621
  %v3623 = vsel %vm3538, %v3428, -inf
  %v3624 = vrot.slane %v3623, 4
  %v3625 = vmax.f32 %v3623, %v3624
  %v3626 = vrot.slane %v3625, 2
  %v3627 = vmax.f32 %v3625, %v3626
  %v3628 = vrot.slane %v3627, 1
  %v3629 = vmax.f32 %v3627, %v3628
  %v3630 = vsel %vm3538, %v3436, -inf
  %v3631 = vrot.slane %v3630, 4
  %v3632 = vmax.f32 %v3630, %v3631
  %v3633 = vrot.slane %v3632, 2
  %v3634 = vmax.f32 %v3632, %v3633
  %v3635 = vrot.slane %v3634, 1
  %v3636 = vmax.f32 %v3634, %v3635
  %v3637 = vsel %vm3538, %v3435, -inf
  %v3638 = vrot.slane %v3637, 4
  %v3639 = vmax.f32 %v3637, %v3638
  %v3640 = vrot.slane %v3639, 2
  %v3641 = vmax.f32 %v3639, %v3640
  %v3642 = vrot.slane %v3641, 1
  %v3643 = vmax.f32 %v3641, %v3642
  %v3644 = vsel %vm3538, %v3437, -inf
  %v3645 = vrot.slane %v3644, 4
  %v3646 = vmax.f32 %v3644, %v3645
  %v3647 = vrot.slane %v3646, 2
  %v3648 = vmax.f32 %v3646, %v3647
  %v3649 = vrot.slane %v3648, 1
  %v3650 = vmax.f32 %v3648, %v3649
  %v3651 = vsel %vm3538, %v3445, -inf
  %v3652 = vrot.slane %v3651, 4
  %v3653 = vmax.f32 %v3651, %v3652
  %v3654 = vrot.slane %v3653, 2
  %v3655 = vmax.f32 %v3653, %v3654
  %v3656 = vrot.slane %v3655, 1
  %v3657 = vmax.f32 %v3655, %v3656
  %v3658 = vsel %vm3538, %v3453, -inf
  %v3659 = vrot.slane %v3658, 4
  %v3660 = vmax.f32 %v3658, %v3659
  %v3661 = vrot.slane %v3660, 2
  %v3662 = vmax.f32 %v3660, %v3661
  %v3663 = vrot.slane %v3662, 1
  %v3664 = vmax.f32 %v3662, %v3663
  %v3665 = vsel %vm3538, %v3452, -inf
  %v3666 = vrot.slane %v3665, 4
  %v3667 = vmax.f32 %v3665, %v3666
  %v3668 = vrot.slane %v3667, 2
  %v3669 = vmax.f32 %v3667, %v3668
  %v3670 = vrot.slane %v3669, 1
  %v3671 = vmax.f32 %v3669, %v3670
  %v3672 = vsel %vm3538, %v3454, -inf
  %v3673 = vrot.slane %v3672, 4
  %v3674 = vmax.f32 %v3672, %v3673
  %v3675 = vrot.slane %v3674, 2
  %v3676 = vmax.f32 %v3674, %v3675
  %v3677 = vrot.slane %v3676, 1
  %v3678 = vmax.f32 %v3676, %v3677
  %v3679 = vsel %vm3538, %v3462, -inf
  %v3680 = vrot.slane %v3679, 4
  %v3681 = vmax.f32 %v3679, %v3680
  %v3682 = vrot.slane %v3681, 2
  %v3683 = vmax.f32 %v3681, %v3682
  %v3684 = vrot.slane %v3683, 1
  %v3685 = vmax.f32 %v3683, %v3684
  %v3686 = vsel %vm3538, %v3470, -inf
  %v3687 = vrot.slane %v3686, 4
  %v3688 = vmax.f32 %v3686, %v3687
  %v3689 = vrot.slane %v3688, 2
  %v3690 = vmax.f32 %v3688, %v3689
  %v3691 = vrot.slane %v3690, 1
  %v3692 = vmax.f32 %v3690, %v3691
  %v3693 = vsel %vm3538, %v3469, -inf
  %v3694 = vrot.slane %v3693, 4
  %v3695 = vmax.f32 %v3693, %v3694
  %v3696 = vrot.slane %v3695, 2
  %v3697 = vmax.f32 %v3695, %v3696
  %v3698 = vrot.slane %v3697, 1
  %v3699 = vmax.f32 %v3697, %v3698
  %v3700 = vsel %vm3538, %v3471, -inf
  %v3701 = vrot.slane %v3700, 4
  %v3702 = vmax.f32 %v3700, %v3701
  %v3703 = vrot.slane %v3702, 2
  %v3704 = vmax.f32 %v3702, %v3703
  %v3705 = vrot.slane %v3704, 1
  %v3706 = vmax.f32 %v3704, %v3705
  %v3707 = vsel %vm3538, %v3479, -inf
  %v3708 = vrot.slane %v3707, 4
  %v3709 = vmax.f32 %v3707, %v3708
  %v3710 = vrot.slane %v3709, 2
  %v3711 = vmax.f32 %v3709, %v3710
  %v3712 = vrot.slane %v3711, 1
  %v3713 = vmax.f32 %v3711, %v3712
  %v3714 = vsel %vm3538, %v3487, -inf
  %v3715 = vrot.slane %v3714, 4
  %v3716 = vmax.f32 %v3714, %v3715
  %v3717 = vrot.slane %v3716, 2
  %v3718 = vmax.f32 %v3716, %v3717
  %v3719 = vrot.slane %v3718, 1
  %v3720 = vmax.f32 %v3718, %v3719
  %v3721 = vsel %vm3538, %v3486, -inf
  %v3722 = vrot.slane %v3721, 4
  %v3723 = vmax.f32 %v3721, %v3722
  %v3724 = vrot.slane %v3723, 2
  %v3725 = vmax.f32 %v3723, %v3724
  %v3726 = vrot.slane %v3725, 1
  %v3727 = vmax.f32 %v3725, %v3726
  %v3728 = vsel %vm3538, %v3488, -inf
  %v3729 = vrot.slane %v3728, 4
  %v3730 = vmax.f32 %v3728, %v3729
  %v3731 = vrot.slane %v3730, 2
  %v3732 = vmax.f32 %v3730, %v3731
  %v3733 = vrot.slane %v3732, 1
  %v3734 = vmax.f32 %v3732, %v3733
  %v3735 = vsel %vm3538, %v3496, -inf
  %v3736 = vrot.slane %v3735, 4
  %v3737 = vmax.f32 %v3735, %v3736
  %v3738 = vrot.slane %v3737, 2
  %v3739 = vmax.f32 %v3737, %v3738
  %v3740 = vrot.slane %v3739, 1
  %v3741 = vmax.f32 %v3739, %v3740
  %v3742 = vsel %vm3538, %v3504, -inf
  %v3743 = vrot.slane %v3742, 4
  %v3744 = vmax.f32 %v3742, %v3743
  %v3745 = vrot.slane %v3744, 2
  %v3746 = vmax.f32 %v3744, %v3745
  %v3747 = vrot.slane %v3746, 1
  %v3748 = vmax.f32 %v3746, %v3747
  %v3749 = vsel %vm3538, %v3503, -inf
  %v3750 = vrot.slane %v3749, 4
  %v3751 = vmax.f32 %v3749, %v3750
  %v3752 = vrot.slane %v3751, 2
  %v3753 = vmax.f32 %v3751, %v3752
  %v3754 = vrot.slane %v3753, 1
  %v3755 = vmax.f32 %v3753, %v3754
  %v3756 = vsel %vm3538, %v3505, -inf
  %v3757 = vrot.slane %v3756, 4
  %v3758 = vmax.f32 %v3756, %v3757
  %v3759 = vrot.slane %v3758, 2
  %v3760 = vmax.f32 %v3758, %v3759
  %v3761 = vrot.slane %v3760, 1
  %v3762 = vmax.f32 %v3760, %v3761
  %v3763 = vld [vmem:[%s4] sm:$0x1]
  %v3765 = vlaneseq
  %v3766 = vshrl.u32 %v3765, 7
  %v3767 = vsub.s32 0, %v3766
  %v3768 = vrot.slane %v3763, %v3767
  %v3770 = vadd.f32 %v3545, %v3768
  %v3771 = vadd.f32 %v3552, %v3768
  %v3772 = vadd.f32 %v3559, %v3768
  %v3773 = vadd.f32 %v3566, %v3768
  %v3774 = vadd.f32 %v3573, %v3768
  %v3775 = vadd.f32 %v3580, %v3768
  %v3776 = vadd.f32 %v3587, %v3768
  %v3777 = vadd.f32 %v3594, %v3768
  %v3778 = vadd.f32 %v3601, %v3768
  %v3779 = vadd.f32 %v3608, %v3768
  %v3780 = vadd.f32 %v3615, %v3768
  %v3781 = vadd.f32 %v3622, %v3768
  %v3782 = vadd.f32 %v3629, %v3768
  %v3783 = vadd.f32 %v3636, %v3768
  %v3784 = vadd.f32 %v3643, %v3768
  %v3785 = vadd.f32 %v3650, %v3768
  %v3786 = vadd.f32 %v3657, %v3768
  %v3787 = vadd.f32 %v3664, %v3768
  %v3788 = vadd.f32 %v3671, %v3768
  %v3789 = vadd.f32 %v3678, %v3768
  %v3790 = vadd.f32 %v3685, %v3768
  %v3791 = vadd.f32 %v3692, %v3768
  %v3792 = vadd.f32 %v3699, %v3768
  %v3793 = vadd.f32 %v3706, %v3768
  %v3794 = vadd.f32 %v3713, %v3768
  %v3795 = vadd.f32 %v3720, %v3768
  %v3796 = vadd.f32 %v3727, %v3768
  %v3797 = vadd.f32 %v3734, %v3768
  %v3798 = vadd.f32 %v3741, %v3768
  %v3799 = vadd.f32 %v3748, %v3768
  %v3800 = vadd.f32 %v3755, %v3768
  %v3801 = vadd.f32 %v3762, %v3768
  %v3802 = vmax.f32 %v3770, 0.0
  %v3803 = vmax.f32 %v3771, 0.0
  %v3804 = vmax.f32 %v3772, 0.0
  %v3805 = vmax.f32 %v3773, 0.0
  %v3806 = vmax.f32 %v3774, 0.0
  %v3807 = vmax.f32 %v3775, 0.0
  %v3808 = vmax.f32 %v3776, 0.0
  %v3809 = vmax.f32 %v3777, 0.0
  %v3810 = vmax.f32 %v3778, 0.0
  %v3811 = vmax.f32 %v3779, 0.0
  %v3812 = vmax.f32 %v3780, 0.0
  %v3813 = vmax.f32 %v3781, 0.0
  %v3814 = vmax.f32 %v3782, 0.0
  %v3815 = vmax.f32 %v3783, 0.0
  %v3816 = vmax.f32 %v3784, 0.0
  %v3817 = vmax.f32 %v3785, 0.0
  %v3818 = vmax.f32 %v3786, 0.0
  %v3819 = vmax.f32 %v3787, 0.0
  %v3820 = vmax.f32 %v3788, 0.0
  %v3821 = vmax.f32 %v3789, 0.0
  %v3822 = vmax.f32 %v3790, 0.0
  %v3823 = vmax.f32 %v3791, 0.0
  %v3824 = vmax.f32 %v3792, 0.0
  %v3825 = vmax.f32 %v3793, 0.0
  %v3826 = vmax.f32 %v3794, 0.0
  %v3827 = vmax.f32 %v3795, 0.0
  %v3828 = vmax.f32 %v3796, 0.0
  %v3829 = vmax.f32 %v3797, 0.0
  %v3830 = vmax.f32 %v3798, 0.0
  %v3831 = vmax.f32 %v3799, 0.0
  %v3832 = vmax.f32 %v3800, 0.0
  %v3833 = vmax.f32 %v3801, 0.0
  %v3866 = vrot.slane %v3803, 7
  %vm3867 = vcmask 1041409
  %v3868 = vsel %vm3867, %v3866, %v3802
  %v3869 = vrot.slane %v3804, 6
  %vm3870 = vcmask 1042434
  %v3871 = vsel %vm3870, %v3869, %v3868
  %v3872 = vrot.slane %v3805, 5
  %vm3873 = vcmask 1043459
  %v3874 = vsel %vm3873, %v3872, %v3871
  %v3875 = vrot.slane %v3807, 7
  %v3876 = vsel %vm3867, %v3875, %v3806
  %v3877 = vrot.slane %v3808, 6
  %v3878 = vsel %vm3870, %v3877, %v3876
  %v3879 = vrot.slane %v3809, 5
  %v3880 = vsel %vm3873, %v3879, %v3878
  %v3881 = vrot.slane %v3811, 7
  %v3882 = vsel %vm3867, %v3881, %v3810
  %v3883 = vrot.slane %v3812, 6
  %v3884 = vsel %vm3870, %v3883, %v3882
  %v3885 = vrot.slane %v3813, 5
  %v3886 = vsel %vm3873, %v3885, %v3884
  %v3887 = vrot.slane %v3815, 7
  %v3888 = vsel %vm3867, %v3887, %v3814
  %v3889 = vrot.slane %v3816, 6
  %v3890 = vsel %vm3870, %v3889, %v3888
  %v3891 = vrot.slane %v3817, 5
  %v3892 = vsel %vm3873, %v3891, %v3890
  %v3893 = vrot.slane %v3819, 7
  %v3894 = vsel %vm3867, %v3893, %v3818
  %v3895 = vrot.slane %v3820, 6
  %v3896 = vsel %vm3870, %v3895, %v3894
  %v3897 = vrot.slane %v3821, 5
  %v3898 = vsel %vm3873, %v3897, %v3896
  %v3899 = vrot.slane %v3823, 7
  %v3900 = vsel %vm3867, %v3899, %v3822
  %v3901 = vrot.slane %v3824, 6
  %v3902 = vsel %vm3870, %v3901, %v3900
  %v3903 = vrot.slane %v3825, 5
  %v3904 = vsel %vm3873, %v3903, %v3902
  %v3905 = vrot.slane %v3827, 7
  %v3906 = vsel %vm3867, %v3905, %v3826
  %v3907 = vrot.slane %v3828, 6
  %v3908 = vsel %vm3870, %v3907, %v3906
  %v3909 = vrot.slane %v3829, 5
  %v3910 = vsel %vm3873, %v3909, %v3908
  %v3911 = vrot.slane %v3831, 7
  %v3912 = vsel %vm3867, %v3911, %v3830
  %v3913 = vrot.slane %v3832, 6
  %v3914 = vsel %vm3870, %v3913, %v3912
  %v3915 = vrot.slane %v3833, 5
  %v3916 = vsel %vm3873, %v3915, %v3914
  %v3925 = vcombine.low %v3874, %v3886
  %v3927 = vunpack.c.l.s4 1983009808
  %v3928 = vunpack.c.0.s8 %v3927
  %v3929 = vlaneseq
  %v3930 = vshrl.u32 %v3929, 7
  %v3931 = vsub.s32 %v3928, %v3930
  %v3932 = vrot.slane %v3925, %v3931
  %v3933 = vcombine.low %v3880, %v3892
  %v3935 = vunpack.c.l.s4 1983009808
  %v3936 = vunpack.c.0.s8 %v3935
  %v3937 = vlaneseq
  %v3938 = vshrl.u32 %v3937, 7
  %v3939 = vsub.s32 %v3936, %v3938
  %v3940 = vrot.slane %v3933, %v3939
  %v3941 = vcombine.low %v3898, %v3910
  %v3943 = vunpack.c.l.s4 1983009808
  %v3944 = vunpack.c.0.s8 %v3943
  %v3945 = vlaneseq
  %v3946 = vshrl.u32 %v3945, 7
  %v3947 = vsub.s32 %v3944, %v3946
  %v3948 = vrot.slane %v3941, %v3947
  %v3949 = vcombine.low %v3904, %v3916
  %v3951 = vunpack.c.l.s4 1983009808
  %v3952 = vunpack.c.0.s8 %v3951
  %v3953 = vlaneseq
  %v3954 = vshrl.u32 %v3953, 7
  %v3955 = vsub.s32 %v3952, %v3954
  %v3956 = vrot.slane %v3949, %v3955
  %v3957 = vcombine.low %v3932, %v3940
  %v3958 = vcombine.high %v3932, %v3940
  %v3960 = vunpack.c.l.s4 1934713408
  %v3961 = vunpack.c.0.s8 %v3960
  %v3962 = vlaneseq
  %v3963 = vshrl.u32 %v3962, 7
  %v3964 = vsub.s32 %v3961, %v3963
  %v3965 = vrot.slane %v3957, %v3964
  %v3967 = vunpack.c.l.s4 1934713408
  %v3968 = vunpack.c.0.s8 %v3967
  %v3969 = vlaneseq
  %v3970 = vshrl.u32 %v3969, 7
  %v3971 = vsub.s32 %v3968, %v3970
  %v3972 = vrot.slane %v3958, %v3971
  %v3973 = vcombine.low %v3948, %v3956
  %v3974 = vcombine.high %v3948, %v3956
  %v3976 = vunpack.c.l.s4 1934713408
  %v3977 = vunpack.c.0.s8 %v3976
  %v3978 = vlaneseq
  %v3979 = vshrl.u32 %v3978, 7
  %v3980 = vsub.s32 %v3977, %v3979
  %v3981 = vrot.slane %v3973, %v3980
  %v3983 = vunpack.c.l.s4 1934713408
  %v3984 = vunpack.c.0.s8 %v3983
  %v3985 = vlaneseq
  %v3986 = vshrl.u32 %v3985, 7
  %v3987 = vsub.s32 %v3984, %v3986
  %v3988 = vrot.slane %v3974, %v3987
  %v3989 = vcombine.low %v3965, %v3981
  %v3990 = vcombine.high %v3965, %v3981
  %v3991 = vcombine.low %v3972, %v3988
  %v3992 = vcombine.high %v3972, %v3988
  %v3993 = vpack.c.bf16 %v3989, %v3989
  %v3994 = vpack.c.bf16 %v3990, %v3990
  %v3995 = vpack.c.bf16 %v3991, %v3991
  %v3996 = vpack.c.bf16 %v3992, %v3992
  %v3997 = vld [vmem:[%s5] sm:$0xf]
  %v3998 = vld [vmem:[%s5 + $0x4] sm:$0xf]
  %v3999 = vld [vmem:[%s5 + $0x8] sm:$0xf]
  %v4000 = vld [vmem:[%s5 + $0xc] sm:$0xf]
  %v4001 = vld [vmem:[%s5 + $0x10] sm:$0xf]
  %v4002 = vld [vmem:[%s5 + $0x14] sm:$0xf]
  %v4003 = vld [vmem:[%s5 + $0x18] sm:$0xf]
  %v4004 = vld [vmem:[%s5 + $0x1c] sm:$0xf]
  %v4005 = vld [vmem:[%s5 + $0x20] sm:$0xf]
  %v4006 = vld [vmem:[%s5 + $0x24] sm:$0xf]
  %v4007 = vld [vmem:[%s5 + $0x28] sm:$0xf]
  %v4008 = vld [vmem:[%s5 + $0x2c] sm:$0xf]
  %v4009 = vld [vmem:[%s5 + $0x30] sm:$0xf]
  %v4010 = vld [vmem:[%s5 + $0x34] sm:$0xf]
  %v4011 = vld [vmem:[%s5 + $0x38] sm:$0xf]
  %v4012 = vld [vmem:[%s5 + $0x3c] sm:$0xf]
  %v4013 = vld [vmem:[%s5 + $0x40] sm:$0xf]
  %v4014 = vld [vmem:[%s5 + $0x44] sm:$0xf]
  %v4015 = vld [vmem:[%s5 + $0x48] sm:$0xf]
  %v4016 = vld [vmem:[%s5 + $0x4c] sm:$0xf]
  %v4017 = vld [vmem:[%s5 + $0x50] sm:$0xf]
  %v4018 = vld [vmem:[%s5 + $0x54] sm:$0xf]
  %v4019 = vld [vmem:[%s5 + $0x58] sm:$0xf]
  %v4020 = vld [vmem:[%s5 + $0x5c] sm:$0xf]
  %v4021 = vld [vmem:[%s5 + $0x60] sm:$0xf]
  %v4022 = vld [vmem:[%s5 + $0x64] sm:$0xf]
  %v4023 = vld [vmem:[%s5 + $0x68] sm:$0xf]
  %v4024 = vld [vmem:[%s5 + $0x6c] sm:$0xf]
  %v4025 = vld [vmem:[%s5 + $0x70] sm:$0xf]
  %v4026 = vld [vmem:[%s5 + $0x74] sm:$0xf]
  %v4027 = vld [vmem:[%s5 + $0x78] sm:$0xf]
  %v4028 = vld [vmem:[%s5 + $0x7c] sm:$0xf]
  %v4029 = vld [vmem:[%s5 + $0x80] sm:$0xf]
  %v4030 = vld [vmem:[%s5 + $0x84] sm:$0xf]
  %v4031 = vld [vmem:[%s5 + $0x88] sm:$0xf]
  %v4032 = vld [vmem:[%s5 + $0x8c] sm:$0xf]
  %v4033 = vld [vmem:[%s5 + $0x90] sm:$0xf]
  %v4034 = vld [vmem:[%s5 + $0x94] sm:$0xf]
  %v4035 = vld [vmem:[%s5 + $0x98] sm:$0xf]
  %v4036 = vld [vmem:[%s5 + $0x9c] sm:$0xf]
  %v4037 = vld [vmem:[%s5 + $0xa0] sm:$0xf]
  %v4038 = vld [vmem:[%s5 + $0xa4] sm:$0xf]
  %v4039 = vld [vmem:[%s5 + $0xa8] sm:$0xf]
  %v4040 = vld [vmem:[%s5 + $0xac] sm:$0xf]
  %v4041 = vld [vmem:[%s5 + $0xb0] sm:$0xf]
  %v4042 = vld [vmem:[%s5 + $0xb4] sm:$0xf]
  %v4043 = vld [vmem:[%s5 + $0xb8] sm:$0xf]
  %v4044 = vld [vmem:[%s5 + $0xbc] sm:$0xf]
  %v4045 = vld [vmem:[%s5 + $0xc0] sm:$0xf]
  %v4046 = vld [vmem:[%s5 + $0xc4] sm:$0xf]
  %v4047 = vld [vmem:[%s5 + $0xc8] sm:$0xf]
  %v4048 = vld [vmem:[%s5 + $0xcc] sm:$0xf]
  %v4049 = vld [vmem:[%s5 + $0xd0] sm:$0xf]
  %v4050 = vld [vmem:[%s5 + $0xd4] sm:$0xf]
  %v4051 = vld [vmem:[%s5 + $0xd8] sm:$0xf]
  %v4052 = vld [vmem:[%s5 + $0xdc] sm:$0xf]
  %v4053 = vld [vmem:[%s5 + $0xe0] sm:$0xf]
  %v4054 = vld [vmem:[%s5 + $0xe4] sm:$0xf]
  %v4055 = vld [vmem:[%s5 + $0xe8] sm:$0xf]
  %v4056 = vld [vmem:[%s5 + $0xec] sm:$0xf]
  %v4057 = vld [vmem:[%s5 + $0xf0] sm:$0xf]
  %v4058 = vld [vmem:[%s5 + $0xf4] sm:$0xf]
  %v4059 = vld [vmem:[%s5 + $0xf8] sm:$0xf]
  %v4060 = vld [vmem:[%s5 + $0xfc] sm:$0xf]
  %v4061 = vld [vmem:[%s6] sm:$0x1]
  %v4063 = vlaneseq
  %v4064 = vshrl.u32 %v4063, 7
  %v4065 = vsub.s32 0, %v4064
  %v4066 = vrot.slane %v4061, %v4065
  %v4132 = vunpack.c.l.b16 %v3997
  %v4133 = vunpack.c.l.b16 %v3998
  %v4134 = vunpack.c.l.b16 %v3999
  %v4135 = vunpack.c.l.b16 %v4000
  %v4136 = vunpack.c.l.b16 %v4001
  %v4137 = vunpack.c.l.b16 %v4002
  %v4138 = vunpack.c.l.b16 %v4003
  %v4139 = vunpack.c.l.b16 %v4004
  %v4140 = vunpack.c.l.b16 %v4005
  %v4141 = vunpack.c.l.b16 %v4006
  %v4142 = vunpack.c.l.b16 %v4007
  %v4143 = vunpack.c.l.b16 %v4008
  %v4144 = vunpack.c.l.b16 %v4009
  %v4145 = vunpack.c.l.b16 %v4010
  %v4146 = vunpack.c.l.b16 %v4011
  %v4147 = vunpack.c.l.b16 %v4012
  %v4148 = vunpack.c.l.b16 %v4013
  %v4149 = vunpack.c.l.b16 %v4014
  %v4150 = vunpack.c.l.b16 %v4015
  %v4151 = vunpack.c.l.b16 %v4016
  %v4152 = vunpack.c.l.b16 %v4017
  %v4153 = vunpack.c.l.b16 %v4018
  %v4154 = vunpack.c.l.b16 %v4019
  %v4155 = vunpack.c.l.b16 %v4020
  %v4156 = vunpack.c.l.b16 %v4021
  %v4157 = vunpack.c.l.b16 %v4022
  %v4158 = vunpack.c.l.b16 %v4023
  %v4159 = vunpack.c.l.b16 %v4024
  %v4160 = vunpack.c.l.b16 %v4025
  %v4161 = vunpack.c.l.b16 %v4026
  %v4162 = vunpack.c.l.b16 %v4027
  %v4163 = vunpack.c.l.b16 %v4028
  %v4164 = vunpack.c.l.b16 %v4029
  %v4165 = vunpack.c.l.b16 %v4030
  %v4166 = vunpack.c.l.b16 %v4031
  %v4167 = vunpack.c.l.b16 %v4032
  %v4168 = vunpack.c.l.b16 %v4033
  %v4169 = vunpack.c.l.b16 %v4034
  %v4170 = vunpack.c.l.b16 %v4035
  %v4171 = vunpack.c.l.b16 %v4036
  %v4172 = vunpack.c.l.b16 %v4037
  %v4173 = vunpack.c.l.b16 %v4038
  %v4174 = vunpack.c.l.b16 %v4039
  %v4175 = vunpack.c.l.b16 %v4040
  %v4176 = vunpack.c.l.b16 %v4041
  %v4177 = vunpack.c.l.b16 %v4042
  %v4178 = vunpack.c.l.b16 %v4043
  %v4179 = vunpack.c.l.b16 %v4044
  %v4180 = vunpack.c.l.b16 %v4045
  %v4181 = vunpack.c.l.b16 %v4046
  %v4182 = vunpack.c.l.b16 %v4047
  %v4183 = vunpack.c.l.b16 %v4048
  %v4184 = vunpack.c.l.b16 %v4049
  %v4185 = vunpack.c.l.b16 %v4050
  %v4186 = vunpack.c.l.b16 %v4051
  %v4187 = vunpack.c.l.b16 %v4052
  %v4188 = vunpack.c.l.b16 %v4053
  %v4189 = vunpack.c.l.b16 %v4054
  %v4190 = vunpack.c.l.b16 %v4055
  %v4191 = vunpack.c.l.b16 %v4056
  %v4192 = vunpack.c.l.b16 %v4057
  %v4193 = vunpack.c.l.b16 %v4058
  %v4194 = vunpack.c.l.b16 %v4059
  %v4195 = vunpack.c.l.b16 %v4060
  %v4196 = vpack.c.b16 %v4133, %v4132
  %v4197 = vpack.c.b16 %v4135, %v4134
  %v4198 = vpack.c.b16 %v4137, %v4136
  %v4199 = vpack.c.b16 %v4139, %v4138
  %v4200 = vpack.c.b16 %v4141, %v4140
  %v4201 = vpack.c.b16 %v4143, %v4142
  %v4202 = vpack.c.b16 %v4145, %v4144
  %v4203 = vpack.c.b16 %v4147, %v4146
  %v4204 = vpack.c.b16 %v4149, %v4148
  %v4205 = vpack.c.b16 %v4151, %v4150
  %v4206 = vpack.c.b16 %v4153, %v4152
  %v4207 = vpack.c.b16 %v4155, %v4154
  %v4208 = vpack.c.b16 %v4157, %v4156
  %v4209 = vpack.c.b16 %v4159, %v4158
  %v4210 = vpack.c.b16 %v4161, %v4160
  %v4211 = vpack.c.b16 %v4163, %v4162
  %v4212 = vpack.c.b16 %v4165, %v4164
  %v4213 = vpack.c.b16 %v4167, %v4166
  %v4214 = vpack.c.b16 %v4169, %v4168
  %v4215 = vpack.c.b16 %v4171, %v4170
  %v4216 = vpack.c.b16 %v4173, %v4172
  %v4217 = vpack.c.b16 %v4175, %v4174
  %v4218 = vpack.c.b16 %v4177, %v4176
  %v4219 = vpack.c.b16 %v4179, %v4178
  %v4220 = vpack.c.b16 %v4181, %v4180
  %v4221 = vpack.c.b16 %v4183, %v4182
  %v4222 = vpack.c.b16 %v4185, %v4184
  %v4223 = vpack.c.b16 %v4187, %v4186
  %v4224 = vpack.c.b16 %v4189, %v4188
  %v4225 = vpack.c.b16 %v4191, %v4190
  %v4226 = vpack.c.b16 %v4193, %v4192
  %v4227 = vpack.c.b16 %v4195, %v4194
  %4260 = vmatprep.subr.bf16.mxu0 0
  %4261 = vmatpush1.bf16.msra.mxu0 %v4203
  %4262 = vmatprep.subr.bf16.mxu0 0
  %4263 = vmatpush1.bf16.msra.mxu0 %v4202
  %4264 = vmatprep.subr.bf16.mxu0 0
  %4265 = vmatpush1.bf16.msra.mxu0 %v4201
  %4266 = vmatprep.subr.bf16.mxu0 0
  %4267 = vmatpush1.bf16.msra.mxu0 %v4200
  %4268 = vmatprep.subr.bf16.mxu0 0
  %4269 = vmatpush1.bf16.msra.mxu0 %v4199
  %4270 = vmatprep.subr.bf16.mxu0 0
  %4271 = vmatpush1.bf16.msra.mxu0 %v4198
  %4272 = vmatprep.subr.bf16.mxu0 0
  %4273 = vmatpush1.bf16.msra.mxu0 %v4197
  %4274 = vmatprep.subr.bf16.mxu0 0
  %4275 = vmatpush1.bf16.msra.mxu0 %v4196
  %4276 = vmatprep.subr.bf16.mxu0 0
  %4277 = vmatpush2.bf16.msra.mxu0 %v4211
  %4278 = vmatprep.subr.bf16.mxu0 0
  %4279 = vmatpush2.bf16.msra.mxu0 %v4210
  %4280 = vmatprep.subr.bf16.mxu0 0
  %4281 = vmatpush2.bf16.msra.mxu0 %v4209
  %4282 = vmatprep.subr.bf16.mxu0 0
  %4283 = vmatpush2.bf16.msra.mxu0 %v4208
  %4284 = vmatprep.subr.bf16.mxu0 0
  %4285 = vmatpush2.bf16.msra.mxu0 %v4207
  %4286 = vmatprep.subr.bf16.mxu0 0
  %4287 = vmatpush2.bf16.msra.mxu0 %v4206
  %4288 = vmatprep.subr.bf16.mxu0 0
  %4289 = vmatpush2.bf16.msra.mxu0 %v4205
  %4290 = vmatprep.subr.bf16.mxu0 0
  %4291 = vmatpush2.bf16.msra.mxu0 %v4204
  %4292 = vmatprep.mubr.bf16.mxu0 %v3994
  %4293 = vmatmul.mubr.bf16.gmra.mxu0 %v3993
  %v4294 = vpop.f32.mrf.mxu0
  %v4295 = vadd.f32 %v4066, %v4294
  %v4296 = vpop.f32.mrf.mxu0
  %v4297 = vpop.f32.mrf.mxu0
  %v4298 = vpop.f32.mrf.mxu0
  %4299 = vdwg.mxu0
  %4300 = vmatprep.subr.bf16.mxu0 0
  %4301 = vmatpush1.bf16.msra.mxu0 %v4219
  %4302 = vmatprep.subr.bf16.mxu0 0
  %4303 = vmatpush1.bf16.msra.mxu0 %v4218
  %4304 = vmatprep.subr.bf16.mxu0 0
  %4305 = vmatpush1.bf16.msra.mxu0 %v4217
  %4306 = vmatprep.subr.bf16.mxu0 0
  %4307 = vmatpush1.bf16.msra.mxu0 %v4216
  %4308 = vmatprep.subr.bf16.mxu0 0
  %4309 = vmatpush1.bf16.msra.mxu0 %v4215
  %4310 = vmatprep.subr.bf16.mxu0 0
  %4311 = vmatpush1.bf16.msra.mxu0 %v4214
  %4312 = vmatprep.subr.bf16.mxu0 0
  %4313 = vmatpush1.bf16.msra.mxu0 %v4213
  %4314 = vmatprep.subr.bf16.mxu0 0
  %4315 = vmatpush1.bf16.msra.mxu0 %v4212
  %4316 = vmatprep.subr.bf16.mxu0 0
  %4317 = vmatpush2.bf16.msra.mxu0 %v4227
  %4318 = vmatprep.subr.bf16.mxu0 0
  %4319 = vmatpush2.bf16.msra.mxu0 %v4226
  %4320 = vmatprep.subr.bf16.mxu0 0
  %4321 = vmatpush2.bf16.msra.mxu0 %v4225
  %4322 = vmatprep.subr.bf16.mxu0 0
  %4323 = vmatpush2.bf16.msra.mxu0 %v4224
  %4324 = vmatprep.subr.bf16.mxu0 0
  %4325 = vmatpush2.bf16.msra.mxu0 %v4223
  %4326 = vmatprep.subr.bf16.mxu0 0
  %4327 = vmatpush2.bf16.msra.mxu0 %v4222
  %4328 = vmatprep.subr.bf16.mxu0 0
  %4329 = vmatpush2.bf16.msra.mxu0 %v4221
  %4330 = vmatprep.subr.bf16.mxu0 0
  %4331 = vmatpush2.bf16.msra.mxu0 %v4220
  %4332 = vmatprep.mubr.bf16.mxu0 %v3996
  %4333 = vmatmul.mubr.bf16.gmra.mxu0 %v3995
  %v4334 = vpop.f32.mrf.mxu0
  %v4335 = vadd.f32 %v4295, %v4334
  %v4336 = vpop.f32.mrf.mxu0
  %v4337 = vpop.f32.mrf.mxu0
  %v4338 = vpop.f32.mrf.mxu0
  %4339 = vdwg.mxu0
  %4340 = vst [vmem:[%s7] sm:$0xff] %v4335
  // Predicated region
  $region30: #{model1_forward.1} parent=0 // pred_check
    _
  $region31: #{model1_forward.1} parent=0 // pred_check_branch
    %4342 = sbr.rel (0) target = $region33
  $region32: #{model1_forward.1} parent=0 // pred_region
    _
  $region33: #{model1_forward.1} parent=0 // pred_fallthru
    _
  // Predicated region
  $region34: #{model1_forward.1} parent=0 // pred_check
    _
  $region35: #{model1_forward.1} parent=0 // pred_check_branch
    %4344 = sbr.rel (0) target = $region37
  $region36: #{model1_forward.1} parent=0 // pred_region
    _
  $region37: #{model1_forward.1} parent=0 // pred_fallthru
    _

</llo_original>
